<compile_context>
chip_gen: v7x
topology: tpu7x:2x2x1
jax: 0.10.0
libtpu: 0.0.40
codegen_flags: <defaults>
</compile_context>

<pallas_src>
import functools

import jax
import jax.numpy as jnp
from jax.experimental import pallas as pl
from jax.experimental.pallas import tpu as pltpu

EPS = 1e-5   # nn.BatchNorm1d default eps
FEAT = 32    # width of cat([text_feat(16), img_feat(16)])
FP = 128     # lane-padded feature width


def _round_up(x, m):
    return ((x + m - 1) // m) * m


def _vmem_target_bytes():
    """Generation-aware scoped-VMEM target (~3/4 of per-core physical):
    ~96 MiB on v5e/v6e (128 MiB physical), ~48 MiB on v7x (64 MiB physical)."""
    try:
        cap = int(pltpu.get_tpu_info().vmem_capacity_bytes)
    except Exception:
        cap = 64 << 20          # conservative fallback (v7x physical size)
    return max(16 << 20, (cap * 3) // 4)


# --------------------------------------------------------------------------
# Kernel 1: batch-parallel feature extraction -> lane-dense (Bp, 128) slab
# --------------------------------------------------------------------------
def feature_kernel(ids_ref, mask_ref, img_ref, emb_ref, w_text_ref, wimg_ref,
                   bias_ref, feat_ref):
    # ids_ref   : (TB, S)   int32 token ids
    # mask_ref  : (TB, S)   float attention mask
    # img_ref   : (TB, C, HW) bf16 flattened NCHW image (HW on lanes)
    # emb_ref   : (Vp, Hp)  VMEM-resident zero-padded embedding table
    # w_text_ref: (Hp, FP)  [w_text | 0] text-head weight
    # wimg_ref  : (Cp, FP)  [0 | w_img] image-head weight (rows >= C are zero)
    # bias_ref  : (1, FP)   fused [b_text | b_img] bias row
    # feat_ref  : (TB, FP)  lane-dense fused feature slab (first 32 cols real)
    TB, S = ids_ref.shape
    Vp = emb_ref.shape[0]
    C = img_ref.shape[1]
    Cp = wimg_ref.shape[0]

    # --- TextModel surrogate: masked mean pooling + linear head ---
    # TODO(synk): pretrained BERT backbone (torch.load of a checkpoint) has no
    # clean equivalent; stubbed with masked-mean-pool + classifier head.
    mask = mask_ref[...]                                          # (TB, S)
    msum = jnp.maximum(jnp.sum(mask, axis=1, keepdims=True), 1.0)
    w = mask / msum                                               # scale on the SMALL tensor

    # In-kernel embedding "gather" via the weighted one-hot MXU trick: the
    # gathered (B, S, Hp) tensor is never materialized in HBM.
    # TODO(synk): at BERT-scale vocab the table no longer fits VMEM-resident;
    # switch to a manual-DMA row gather (pl.ANY + make_async_copy) there.
    ids = ids_ref[...]                                            # (TB, S) int32
    viota = jax.lax.broadcasted_iota(jnp.int32, (TB, S, Vp), 2)
    onehot_w = jnp.where(ids[:, :, None] == viota, w[:, :, None], 0.0)  # (TB,S,Vp)
    counts = jnp.sum(onehot_w, axis=1)                            # (TB, Vp)
    pooled_text = jnp.dot(counts, emb_ref[...],
                          preferred_element_type=jnp.float32)     # (TB, Hp)
    feat = jnp.dot(pooled_text, w_text_ref[...],
                   preferred_element_type=jnp.float32)            # (TB, FP)

    # --- ImageModel surrogate: global average pool + fc ---
    # TODO(synk): pretrained ResNet50 backbone (checkpoint load) stubbed with
    # its final avgpool + fc structure only.
    pooled_img = jnp.mean(img_ref[...].astype(jnp.float32), axis=-1)    # (TB, C)
    if C <= 8:
        # tiny C: per-channel VPU broadcast-FMAs are free filler under DMA
        wimg = wimg_ref[...]
        for c in range(C):
            feat = feat + pooled_img[:, c:c + 1] * wimg[c:c + 1, :]
    else:
        # realistic C (e.g. ResNet fc K=2048): a single MXU pass instead
        pimg = jnp.pad(pooled_img, ((0, 0), (0, Cp - C)))
        feat = feat + jnp.dot(pimg, wimg_ref[...],
                              preferred_element_type=jnp.float32)

    feat_ref[...] = feat + bias_ref[...]                          # fused biases


# --------------------------------------------------------------------------
# Kernel 2: BatchNorm1d (train-mode global batch stats) + Linear
# --------------------------------------------------------------------------
def bn_linear_kernel(feat_ref, bn_ref, w_cls_ref, b_cls_ref, out_ref, *, b_real):
    # feat_ref : (Bp, FP)  Bp-padded fused feature slab (padded rows masked out)
    # bn_ref   : (2, FP)   row 0 = gamma, row 1 = beta (zero on padded lanes)
    # w_cls_ref: (FP, NL)  zero-padded Linear(32, num_labels) weight
    # b_cls_ref: (1, NL)   zero-padded bias
    # out_ref  : (B, NL)   lane-dense padded logits (real batch rows only)
    # NOTE: padded lanes 32..127 must stay exactly zero (zero feat cols, zero
    # gamma/beta, zero w_cls rows) for the BN statistics of real lanes to be
    # unaffected; this invariant is maintained by pack_params/feature_kernel.
    Bp = feat_ref.shape[0]
    feat = feat_ref[...]

    # BatchNorm1d train-mode batch statistics (biased variance) over the REAL
    # batch only.  b_real is a trace-time constant, so masking compiles to a
    # constant row mask (no SMEM scalar read, no XLA slice between kernels).
    if b_real < Bp:
        row = jax.lax.broadcasted_iota(jnp.int32, (Bp, 1), 0)
        valid = (row < b_real).astype(jnp.float32)
        inv_n = 1.0 / float(b_real)
        mu = jnp.sum(feat * valid, axis=0, keepdims=True) * inv_n
        diff = (feat - mu) * valid
        var = jnp.sum(diff * diff, axis=0, keepdims=True) * inv_n
    else:
        mu = jnp.mean(feat, axis=0, keepdims=True)
        var = jnp.mean((feat - mu) ** 2, axis=0, keepdims=True)

    bn = bn_ref[...]
    normed = (feat - mu) * jax.lax.rsqrt(var + EPS) * bn[0:1, :] + bn[1:2, :]
    logits = (jnp.dot(normed, w_cls_ref[...], preferred_element_type=jnp.float32)
              + b_cls_ref[...])
    out_ref[...] = logits[:out_ref.shape[0], :]


# --------------------------------------------------------------------------
# One-time parameter packing (hoisted OUT of the jitted forward)
# --------------------------------------------------------------------------
def pack_params(params):
    vocab, htxt = params["embedding"].shape
    C = params["w_img"].shape[0]
    num_labels = params["w_cls"].shape[1]
    Vp = _round_up(vocab, 128)
    Hp = _round_up(htxt, 128)
    Cp = _round_up(C, 8)
    NL = _round_up(num_labels, 128)

    emb_p = jnp.zeros((Vp, Hp), jnp.float32).at[:vocab, :htxt].set(
        params["embedding"].astype(jnp.float32))
    w_text_p = jnp.zeros((Hp, FP), jnp.float32).at[:htxt, :16].set(params["w_text"])
    wimg_p = jnp.zeros((Cp, FP), jnp.float32).at[:C, 16:32].set(params["w_img"])
    bias_p = jnp.zeros((1, FP), jnp.float32)
    bias_p = bias_p.at[0, :16].set(params["b_text"][0])
    bias_p = bias_p.at[0, 16:32].set(params["b_img"][0])
    bn_p = jnp.zeros((2, FP), jnp.float32)
    bn_p = bn_p.at[0, :FEAT].set(params["bn_gamma"][0])
    bn_p = bn_p.at[1, :FEAT].set(params["bn_beta"][0])
    w_cls_p = jnp.zeros((FP, NL), jnp.float32).at[:FEAT, :num_labels].set(params["w_cls"])
    b_cls_p = jnp.zeros((1, NL), jnp.float32).at[:, :num_labels].set(params["b_cls"])
    packed = {"emb": emb_p, "w_text": w_text_p, "w_img": wimg_p, "bias": bias_p,
              "bn": bn_p, "w_cls": w_cls_p, "b_cls": b_cls_p}
    return packed, num_labels


# --------------------------------------------------------------------------
# Forward
# --------------------------------------------------------------------------
@functools.partial(jax.jit, static_argnames=("num_labels",))
def cat_model_forward(text_ids, masks, image, packed, *, num_labels):
    """text_ids, masks: (B, S); image: (B, C, H, W) NCHW; packed: pack_params output."""
    assert text_ids.shape == masks.shape, (
        "error! bert_inputs and masks must have same shape!"
    )
    B, S = text_ids.shape
    _, C, H, W = image.shape
    HW = H * W

    emb_p = packed["emb"]
    w_text_p = packed["w_text"]
    wimg_p = packed["w_img"]
    bias_p = packed["bias"]
    bn_p = packed["bn"]
    w_cls_p = packed["w_cls"]
    b_cls_p = packed["b_cls"]
    Vp, Hp = emb_p.shape
    Cp = wimg_p.shape[0]
    NL = w_cls_p.shape[1]

    ids = text_ids.astype(jnp.int32)
    masks_f = masks.astype(jnp.float32)
    # bf16 streaming for the dominant image stream (f32 accumulation in-kernel).
    img_flat = image.reshape(B, C, HW).astype(jnp.bfloat16)

    # ---- TB from per-row streamed bytes + generation-aware VMEM budget ----
    budget = _vmem_target_bytes()
    img_itemsize = img_flat.dtype.itemsize
    row_stream = S * 4 + S * 4 + C * HW * img_itemsize + FP * 4          # ids+mask+img+feat
    row_scratch = S * Vp * 4 + Hp * 4 + Vp * 4                           # one-hot + pooled
    resident = 4 * (Vp * Hp + Hp * FP + Cp * FP + FP)                    # small weights
    headroom = 2 << 20
    avail = max(budget - 2 * resident - headroom, 1 << 20)
    tb_cap = max(8, (avail // (2 * row_stream + row_scratch)) // 8 * 8)  # 2x = double-buffer
    TB = max(8, min(256, _round_up(B, 8), tb_cap))
    if B > 8:
        # keep >= 2 grid steps so megacore (v7x) can split the batch
        TB = min(TB, max(8, _round_up(pl.cdiv(B, 2), 8)))
    Bp = _round_up(B, TB)
    nb = Bp // TB

    if Bp != B:
        padb = Bp - B
        ids = jnp.pad(ids, ((0, padb), (0, 0)))
        masks_f = jnp.pad(masks_f, ((0, padb), (0, 0)))
        img_flat = jnp.pad(img_flat, ((0, padb), (0, 0), (0, 0)))

    vmem_limit = int(min(budget,
                         2 * TB * row_stream + 2 * resident
                         + TB * row_scratch + headroom))
    vmem_limit = max(vmem_limit, 8 << 20)

    # ---- kernel 1: batch-parallel feature extraction -> lane-dense (Bp, FP) ----
    feat_pad = pl.pallas_call(
        feature_kernel,
        out_shape=jax.ShapeDtypeStruct((Bp, FP), jnp.float32),
        grid=(nb,),
        in_specs=[
            pl.BlockSpec((TB, S), lambda i: (i, 0)),
            pl.BlockSpec((TB, S), lambda i: (i, 0)),
            pl.BlockSpec((TB, C, HW), lambda i: (i, 0, 0)),
            pl.BlockSpec((Vp, Hp), lambda i: (0, 0)),    # resident params
            pl.BlockSpec((Hp, FP), lambda i: (0, 0)),
            pl.BlockSpec((Cp, FP), lambda i: (0, 0)),
            pl.BlockSpec((1, FP), lambda i: (0, 0)),
        ],
        out_specs=pl.BlockSpec((TB, FP), lambda i: (i, 0)),
        compiler_params=pltpu.CompilerParams(
            dimension_semantics=("parallel",),
            vmem_limit_bytes=vmem_limit),
    )(ids, masks_f, img_flat, emb_p, w_text_p, wimg_p, bias_p)

    # ---- kernel 2: BatchNorm1d (masked global batch stats) + Linear ----
    # TODO(synk): for large B, tile kernel 2 too (two-pass partial sum/sumsq
    # accumulation, then normalize+Linear); single block is fine at these sizes.
    out_pad = pl.pallas_call(
        functools.partial(bn_linear_kernel, b_real=B),
        out_shape=jax.ShapeDtypeStruct((B, NL), jnp.float32),
        in_specs=[pl.BlockSpec(memory_space=pltpu.MemorySpace.VMEM)] * 4,
        out_specs=pl.BlockSpec(memory_space=pltpu.MemorySpace.VMEM),
        compiler_params=pltpu.CompilerParams(vmem_limit_bytes=32 << 20),
    )(feat_pad, bn_p, w_cls_p, b_cls_p)

    return out_pad if NL == num_labels else out_pad[:, :num_labels]


def init_params(key, *, vocab=64, htxt=32, channels=3, num_labels=10):
    k0, k1, k2, k3 = jax.random.split(key, 4)
    return {
        # text surrogate
        "embedding": 0.02 * jax.random.normal(k0, (vocab, htxt), jnp.float32),
        "w_text": 0.1 * jax.random.normal(k1, (htxt, 16), jnp.float32),
        "b_text": jnp.zeros((1, 16), jnp.float32),
        # image surrogate
        "w_img": 0.1 * jax.random.normal(k2, (channels, 16), jnp.float32),
        "b_img": jnp.zeros((1, 16), jnp.float32),
        # classifier head: BatchNorm1d(32) (PyTorch default gamma=1, beta=0) + Linear(32, num_labels)
        "bn_gamma": jnp.ones((1, 32), jnp.float32),
        "bn_beta": jnp.zeros((1, 32), jnp.float32),
        "w_cls": 0.1 * jax.random.normal(k3, (32, num_labels), jnp.float32),
        "b_cls": jnp.zeros((1, num_labels), jnp.float32),
    }


if __name__ == "__main__":
    B, S, C, HWDIM = 2, 8, 3, 16
    VOCAB, NUM_LABELS = 64, 10

    key = jax.random.PRNGKey(0)
    k_par, k_ids, k_img = jax.random.split(key, 3)

    params = init_params(k_par, vocab=VOCAB, htxt=32, channels=C,
                         num_labels=NUM_LABELS)
    packed, num_labels = pack_params(params)      # one-time packing (outside jit)

    text_ids = jax.random.randint(k_ids, (B, S), 0, VOCAB, dtype=jnp.int32)
    masks = jnp.array([[1, 1, 1, 1, 1, 1, 0, 0],
                       [1, 1, 1, 1, 1, 1, 1, 1]], dtype=jnp.float32)
    image = jax.random.normal(k_img, (B, C, HWDIM, HWDIM), jnp.float32)  # NCHW

    preds = cat_model_forward(text_ids, masks, image, packed,
                              num_labels=num_labels)
    jax.block_until_ready(preds)
    assert preds.shape == (B, NUM_LABELS)
    print("KERNEL_OK")
</pallas_src>

<mosaic_0001>
module attributes {stable_mosaic.version = 11 : i64} {
  func.func @feature_kernel(%arg0: i32, %arg1: memref<8x8xi32, #tpu.memory_space<vmem>>, %arg2: memref<8x8xf32, #tpu.memory_space<vmem>>, %arg3: memref<8x3x256xbf16, #tpu.memory_space<vmem>>, %arg4: memref<128x128xf32, #tpu.memory_space<vmem>>, %arg5: memref<128x128xf32, #tpu.memory_space<vmem>>, %arg6: memref<8x128xf32, #tpu.memory_space<vmem>>, %arg7: memref<1x128xf32, #tpu.memory_space<vmem>>, %arg8: memref<8x128xf32, #tpu.memory_space<vmem>>) attributes {dimension_semantics = [#tpu.dimension_semantics<parallel>], iteration_bounds = array<i64: 1>, scalar_prefetch = 0 : i64, scratch_operands = 0 : i64, tpu.core_type = #tpu.core_type<tc>, window_params = [{transform_indices = @transform_0, window_bounds = array<i64: 8, 8>}, {transform_indices = @transform_1, window_bounds = array<i64: 8, 8>}, {transform_indices = @transform_2, window_bounds = array<i64: 8, 3, 256>}, {pipeline_mode = #tpu.pipeline_mode<synchronous>, transform_indices = @transform_3, window_bounds = array<i64: 128, 128>}, {pipeline_mode = #tpu.pipeline_mode<synchronous>, transform_indices = @transform_4, window_bounds = array<i64: 128, 128>}, {pipeline_mode = #tpu.pipeline_mode<synchronous>, transform_indices = @transform_5, window_bounds = array<i64: 8, 128>}, {pipeline_mode = #tpu.pipeline_mode<synchronous>, transform_indices = @transform_6, window_bounds = array<i64: 1, 128>}, {transform_indices = @transform_7, window_bounds = array<i64: 8, 128>}]} {
    %c0 = arith.constant 0 : index
    %c0_0 = arith.constant 0 : index
    %0 = vector.load %arg2[%c0, %c0_0] : memref<8x8xf32, #tpu.memory_space<vmem>>, vector<8x8xf32>
    %cst = arith.constant dense<0.000000e+00> : vector<8xf32>
    %1 = vector.multi_reduction <add>, %0, %cst [1] : vector<8x8xf32> to vector<8xf32>
    %2 = vector.shape_cast %1 : vector<8xf32> to vector<8x1xf32>
    %cst_1 = arith.constant 1.000000e+00 : f32
    %3 = vector.broadcast %cst_1 : f32 to vector<8x1xf32>
    %4 = arith.maximumf %2, %3 : vector<8x1xf32>
    %5 = vector.broadcast %4 : vector<8x1xf32> to vector<8x8xf32>
    %6 = arith.divf %0, %5 : vector<8x8xf32>
    %c0_2 = arith.constant 0 : index
    %c0_3 = arith.constant 0 : index
    %7 = vector.load %arg1[%c0_2, %c0_3] : memref<8x8xi32, #tpu.memory_space<vmem>>, vector<8x8xi32>
    %8 = tpu.iota {dimensions = array<i32: 2>} : vector<8x8x128xi32>
    %9 = vector.shape_cast %7 : vector<8x8xi32> to vector<8x8x1xi32>
    %10 = vector.broadcast %9 : vector<8x8x1xi32> to vector<8x8x128xi32>
    %11 = arith.cmpi eq, %10, %8 : vector<8x8x128xi32>
    %12 = vector.shape_cast %6 : vector<8x8xf32> to vector<8x8x1xf32>
    %cst_4 = arith.constant 0.000000e+00 : f32
    %13 = vector.shape_cast %12 : vector<8x8x1xf32> to vector<8x8x1xf32>
    %14 = vector.broadcast %13 : vector<8x8x1xf32> to vector<8x8x128xf32>
    %15 = vector.broadcast %cst_4 : f32 to vector<8x8x128xf32>
    %16 = arith.select %11, %14, %15 : vector<8x8x128xi1>, vector<8x8x128xf32>
    %cst_5 = arith.constant dense<0.000000e+00> : vector<8x128xf32>
    %17 = vector.multi_reduction <add>, %16, %cst_5 [1] : vector<8x8x128xf32> to vector<8x128xf32>
    %c0_6 = arith.constant 0 : index
    %c0_7 = arith.constant 0 : index
    %18 = vector.load %arg4[%c0_6, %c0_7] : memref<128x128xf32, #tpu.memory_space<vmem>>, vector<128x128xf32>
    %cst_8 = arith.constant dense<0.000000e+00> : vector<8x128xf32>
    %19 = tpu.matmul %17, %18, %cst_8 {dimension_numbers = #tpu.dot_dimension_numbers<[1], [0], [0], [1], [0, 0, 1, 1], [], []>} : vector<8x128xf32>, vector<128x128xf32>, vector<8x128xf32> -> vector<8x128xf32>
    %c0_9 = arith.constant 0 : index
    %c0_10 = arith.constant 0 : index
    %20 = vector.load %arg5[%c0_9, %c0_10] : memref<128x128xf32, #tpu.memory_space<vmem>>, vector<128x128xf32>
    %cst_11 = arith.constant dense<0.000000e+00> : vector<8x128xf32>
    %21 = tpu.matmul %19, %20, %cst_11 {dimension_numbers = #tpu.dot_dimension_numbers<[1], [0], [0], [1], [0, 0, 1, 1], [], []>} : vector<8x128xf32>, vector<128x128xf32>, vector<8x128xf32> -> vector<8x128xf32>
    %c0_12 = arith.constant 0 : index
    %c0_13 = arith.constant 0 : index
    %c0_14 = arith.constant 0 : index
    %22 = vector.load %arg3[%c0_12, %c0_13, %c0_14] : memref<8x3x256xbf16, #tpu.memory_space<vmem>>, vector<8x3x256xbf16>
    %23 = arith.extf %22 : vector<8x3x256xbf16> to vector<8x3x256xf32>
    %cst_15 = arith.constant dense<0.000000e+00> : vector<8x3xf32>
    %24 = vector.multi_reduction <add>, %23, %cst_15 [2] : vector<8x3x256xf32> to vector<8x3xf32>
    %cst_16 = arith.constant 2.560000e+02 : f32
    %25 = vector.broadcast %cst_16 : f32 to vector<8x3xf32>
    %26 = arith.divf %24, %25 : vector<8x3xf32>
    %c0_17 = arith.constant 0 : index
    %c0_18 = arith.constant 0 : index
    %27 = vector.load %arg6[%c0_17, %c0_18] : memref<8x128xf32, #tpu.memory_space<vmem>>, vector<8x128xf32>
    %28 = vector.extract_strided_slice %26 {offsets = [0, 0], sizes = [8, 1], strides = [1, 1]} : vector<8x3xf32> to vector<8x1xf32>
    %29 = vector.extract_strided_slice %27 {offsets = [0, 0], sizes = [1, 128], strides = [1, 1]} : vector<8x128xf32> to vector<1x128xf32>
    %30 = vector.broadcast %28 : vector<8x1xf32> to vector<8x128xf32>
    %31 = vector.broadcast %29 : vector<1x128xf32> to vector<8x128xf32>
    %32 = arith.mulf %30, %31 : vector<8x128xf32>
    %33 = arith.addf %21, %32 : vector<8x128xf32>
    %34 = vector.extract_strided_slice %26 {offsets = [0, 1], sizes = [8, 1], strides = [1, 1]} : vector<8x3xf32> to vector<8x1xf32>
    %35 = vector.extract_strided_slice %27 {offsets = [1, 0], sizes = [1, 128], strides = [1, 1]} : vector<8x128xf32> to vector<1x128xf32>
    %36 = vector.broadcast %34 : vector<8x1xf32> to vector<8x128xf32>
    %37 = vector.broadcast %35 : vector<1x128xf32> to vector<8x128xf32>
    %38 = arith.mulf %36, %37 : vector<8x128xf32>
    %39 = arith.addf %33, %38 : vector<8x128xf32>
    %40 = vector.extract_strided_slice %26 {offsets = [0, 2], sizes = [8, 1], strides = [1, 1]} : vector<8x3xf32> to vector<8x1xf32>
    %41 = vector.extract_strided_slice %27 {offsets = [2, 0], sizes = [1, 128], strides = [1, 1]} : vector<8x128xf32> to vector<1x128xf32>
    %42 = vector.broadcast %40 : vector<8x1xf32> to vector<8x128xf32>
    %43 = vector.broadcast %41 : vector<1x128xf32> to vector<8x128xf32>
    %44 = arith.mulf %42, %43 : vector<8x128xf32>
    %45 = arith.addf %39, %44 : vector<8x128xf32>
    %c0_19 = arith.constant 0 : index
    %c0_20 = arith.constant 0 : index
    %46 = vector.load %arg7[%c0_19, %c0_20] : memref<1x128xf32, #tpu.memory_space<vmem>>, vector<1x128xf32>
    %47 = vector.broadcast %46 : vector<1x128xf32> to vector<8x128xf32>
    %48 = arith.addf %45, %47 : vector<8x128xf32>
    %c0_21 = arith.constant 0 : index
    %c0_22 = arith.constant 0 : index
    %49 = vector.load %arg8[%c0_21, %c0_22] : memref<8x128xf32, #tpu.memory_space<vmem>>, vector<8x128xf32>
    tpu.vector_store %arg8[%c0_21, %c0_22], %48 {strides = array<i32>} : memref<8x128xf32, #tpu.memory_space<vmem>>, vector<8x128xf32>,
    return
  }
  func.func @transform_0(%arg0: i32) -> (i32, i32) {
    %c0_i32 = arith.constant 0 : i32
    %c0_i32_0 = arith.constant 0 : i32
    return %arg0, %c0_i32 : i32, i32
  }
  func.func @transform_1(%arg0: i32) -> (i32, i32) {
    %c0_i32 = arith.constant 0 : i32
    %c0_i32_0 = arith.constant 0 : i32
    return %arg0, %c0_i32 : i32, i32
  }
  func.func @transform_2(%arg0: i32) -> (i32, i32, i32) {
    %c0_i32 = arith.constant 0 : i32
    %c0_i32_0 = arith.constant 0 : i32
    %c0_i32_1 = arith.constant 0 : i32
    return %arg0, %c0_i32, %c0_i32_0 : i32, i32, i32
  }
  func.func @transform_3(%arg0: i32) -> (i32, i32) {
    %c0_i32 = arith.constant 0 : i32
    %c0_i32_0 = arith.constant 0 : i32
    %c0_i32_1 = arith.constant 0 : i32
    return %c0_i32, %c0_i32_0 : i32, i32
  }
  func.func @transform_4(%arg0: i32) -> (i32, i32) {
    %c0_i32 = arith.constant 0 : i32
    %c0_i32_0 = arith.constant 0 : i32
    %c0_i32_1 = arith.constant 0 : i32
    return %c0_i32, %c0_i32_0 : i32, i32
  }
  func.func @transform_5(%arg0: i32) -> (i32, i32) {
    %c0_i32 = arith.constant 0 : i32
    %c0_i32_0 = arith.constant 0 : i32
    %c0_i32_1 = arith.constant 0 : i32
    return %c0_i32, %c0_i32_0 : i32, i32
  }
  func.func @transform_6(%arg0: i32) -> (i32, i32) {
    %c0_i32 = arith.constant 0 : i32
    %c0_i32_0 = arith.constant 0 : i32
    %c0_i32_1 = arith.constant 0 : i32
    return %c0_i32, %c0_i32_0 : i32, i32
  }
  func.func @transform_7(%arg0: i32) -> (i32, i32) {
    %c0_i32 = arith.constant 0 : i32
    %c0_i32_0 = arith.constant 0 : i32
    return %arg0, %c0_i32 : i32, i32
  }
}

module attributes {stable_mosaic.version = 11 : i64} {
  func.func @bn_linear_kernel(%arg0: memref<8x128xf32, #tpu.memory_space<vmem>>, %arg1: memref<2x128xf32, #tpu.memory_space<vmem>>, %arg2: memref<128x128xf32, #tpu.memory_space<vmem>>, %arg3: memref<1x128xf32, #tpu.memory_space<vmem>>, %arg4: memref<2x128xf32, #tpu.memory_space<vmem>>) attributes {dimension_semantics = [], scalar_prefetch = 0 : i64, scratch_operands = 0 : i64, tpu.core_type = #tpu.core_type<tc>} {
    %c0 = arith.constant 0 : index
    %c0_0 = arith.constant 0 : index
    %0 = vector.load %arg0[%c0, %c0_0] : memref<8x128xf32, #tpu.memory_space<vmem>>, vector<8x128xf32>
    %1 = tpu.iota {dimensions = array<i32: 0>} : vector<8x1xi32>
    %c2_i32 = arith.constant 2 : i32
    %2 = vector.broadcast %c2_i32 : i32 to vector<8x1xi32>
    %3 = arith.cmpi slt, %1, %2 : vector<8x1xi32>
    %4 = arith.extui %3 : vector<8x1xi1> to vector<8x1xi32>
    %5 = arith.sitofp %4 : vector<8x1xi32> to vector<8x1xf32>
    %6 = vector.broadcast %5 : vector<8x1xf32> to vector<8x128xf32>
    %7 = arith.mulf %0, %6 : vector<8x128xf32>
    %cst = arith.constant dense<0.000000e+00> : vector<128xf32>
    %8 = vector.multi_reduction <add>, %7, %cst [0] : vector<8x128xf32> to vector<128xf32>
    %9 = vector.shape_cast %8 : vector<128xf32> to vector<1x128xf32>
    %cst_1 = arith.constant 5.000000e-01 : f32
    %10 = vector.broadcast %cst_1 : f32 to vector<1x128xf32>
    %11 = arith.mulf %9, %10 : vector<1x128xf32>
    %12 = vector.broadcast %11 : vector<1x128xf32> to vector<8x128xf32>
    %13 = arith.subf %0, %12 : vector<8x128xf32>
    %14 = vector.broadcast %5 : vector<8x1xf32> to vector<8x128xf32>
    %15 = arith.mulf %13, %14 : vector<8x128xf32>
    %16 = arith.mulf %15, %15 : vector<8x128xf32>
    %cst_2 = arith.constant dense<0.000000e+00> : vector<128xf32>
    %17 = vector.multi_reduction <add>, %16, %cst_2 [0] : vector<8x128xf32> to vector<128xf32>
    %18 = vector.shape_cast %17 : vector<128xf32> to vector<1x128xf32>
    %cst_3 = arith.constant 5.000000e-01 : f32
    %19 = vector.broadcast %cst_3 : f32 to vector<1x128xf32>
    %20 = arith.mulf %18, %19 : vector<1x128xf32>
    %c0_4 = arith.constant 0 : index
    %c0_5 = arith.constant 0 : index
    %21 = vector.load %arg1[%c0_4, %c0_5] : memref<2x128xf32, #tpu.memory_space<vmem>>, vector<2x128xf32>
    %22 = vector.broadcast %11 : vector<1x128xf32> to vector<8x128xf32>
    %23 = arith.subf %0, %22 : vector<8x128xf32>
    %cst_6 = arith.constant 9.99999974E-6 : f32
    %24 = vector.broadcast %cst_6 : f32 to vector<1x128xf32>
    %25 = arith.addf %20, %24 : vector<1x128xf32>
    %26 = math.rsqrt %25 : vector<1x128xf32>
    %27 = vector.broadcast %26 : vector<1x128xf32> to vector<8x128xf32>
    %28 = arith.mulf %23, %27 : vector<8x128xf32>
    %29 = vector.extract_strided_slice %21 {offsets = [0, 0], sizes = [1, 128], strides = [1, 1]} : vector<2x128xf32> to vector<1x128xf32>
    %30 = vector.broadcast %29 : vector<1x128xf32> to vector<8x128xf32>
    %31 = arith.mulf %28, %30 : vector<8x128xf32>
    %32 = vector.extract_strided_slice %21 {offsets = [1, 0], sizes = [1, 128], strides = [1, 1]} : vector<2x128xf32> to vector<1x128xf32>
    %33 = vector.broadcast %32 : vector<1x128xf32> to vector<8x128xf32>
    %34 = arith.addf %31, %33 : vector<8x128xf32>
    %c0_7 = arith.constant 0 : index
    %c0_8 = arith.constant 0 : index
    %35 = vector.load %arg2[%c0_7, %c0_8] : memref<128x128xf32, #tpu.memory_space<vmem>>, vector<128x128xf32>
    %cst_9 = arith.constant dense<0.000000e+00> : vector<8x128xf32>
    %36 = tpu.matmul %34, %35, %cst_9 {dimension_numbers = #tpu.dot_dimension_numbers<[1], [0], [0], [1], [0, 0, 1, 1], [], []>} : vector<8x128xf32>, vector<128x128xf32>, vector<8x128xf32> -> vector<8x128xf32>
    %c0_10 = arith.constant 0 : index
    %c0_11 = arith.constant 0 : index
    %37 = vector.load %arg3[%c0_10, %c0_11] : memref<1x128xf32, #tpu.memory_space<vmem>>, vector<1x128xf32>
    %38 = vector.broadcast %37 : vector<1x128xf32> to vector<8x128xf32>
    %39 = arith.addf %36, %38 : vector<8x128xf32>
    %40 = vector.extract_strided_slice %39 {offsets = [0, 0], sizes = [2, 128], strides = [1, 1]} : vector<8x128xf32> to vector<2x128xf32>
    %c0_12 = arith.constant 0 : index
    %c0_13 = arith.constant 0 : index
    %41 = vector.load %arg4[%c0_12, %c0_13] : memref<2x128xf32, #tpu.memory_space<vmem>>, vector<2x128xf32>
    tpu.vector_store %arg4[%c0_12, %c0_13], %40 {strides = array<i32>} : memref<2x128xf32, #tpu.memory_space<vmem>>, vector<2x128xf32>,
    return
  }
}

</mosaic_0001>

<llo_original>
// kernel: cat_model_forward.3
$region0: #{cat_model_forward.3}
  #allocation0 [shape = 'u32[]', space=smem, size = 0x4, offset = 0x4, fixed_abs, tag = 'smem constant byte address 0x4 - core index']
  #allocation1 [shape = 'u32[144,128]{1,0:T(1,128)}', space=vmem, size = 0x12000, scoped, tag = 'internal scratch']
  %s0 = inlined_call_operand.vmem [shape: f32[8,128], index: 0, kind: input, shape index: {}]
  %s1 = inlined_call_operand.vmem [shape: f32[2,128], index: 1, kind: input, shape index: {}]
  %s2 = inlined_call_operand.vmem [shape: f32[128,128], index: 2, kind: input, shape index: {}]
  %s3 = inlined_call_operand.vmem [shape: f32[1,128], index: 3, kind: input, shape index: {}]
  %s4 = inlined_call_operand.hbm [shape: f32[2,128], index: 4, kind: output, shape index: {}]
  %s5 = sld [smem:[#allocation0]]
  $region26: #{cat_model_forward.3} parent=0
    _
  %s7 = ssub.s32 1, %s5
  %s8 = scalar_select 0, %s7, %s5
  $region1: #{cat_model_forward.3} parent=0
    #allocation2 [shape = 'u8[1024]{0}', space=vmem, size = 0x400, scoped, tag = 'output window, operand 0, single buffered']
    #allocation3 [shape = 's32[1]{0}', space=sflag, size = 0x4, scoped, tag = 'scoped memory for cat_model_forward.3']
    %9 = vsyncpa [#allocation3], 0
    // Predicated region
    $region2: #{cat_model_forward.3} parent=1 // pred_check
      _
    $region3: #{cat_model_forward.3} parent=1 // pred_check_branch
      %11 = sbr.rel (0) target = $region5
    $region4: #{cat_model_forward.3} parent=1 // pred_region
      _
    $region5: #{cat_model_forward.3} parent=1 // pred_fallthru
      _
    // Predicated region
    $region6: #{cat_model_forward.3} parent=1 // pred_check
      _
    $region7: #{cat_model_forward.3} parent=1 // pred_check_branch
      %13 = sbr.rel (0) target = $region9
    $region8: #{cat_model_forward.3} parent=1 // pred_region
      _
    $region9: #{cat_model_forward.3} parent=1 // pred_fallthru
      _
    // Predicated region
    $region10: #{cat_model_forward.3} parent=1 // pred_check
      _
    $region11: #{cat_model_forward.3} parent=1 // pred_check_branch
      %15 = sbr.rel (0) target = $region13
    $region12: #{cat_model_forward.3} parent=1 // pred_region
      _
    $region13: #{cat_model_forward.3} parent=1 // pred_fallthru
      _
    // Predicated region
    $region14: #{cat_model_forward.3} parent=1 // pred_check
      _
    $region15: #{cat_model_forward.3} parent=1 // pred_check_branch
      %17 = sbr.rel (0) target = $region17
    $region16: #{cat_model_forward.3} parent=1 // pred_region
      _
    $region17: #{cat_model_forward.3} parent=1 // pred_fallthru
      _
    %v18 = vld [vmem:[%s0] sm:$0xff]
    %v19 = vlaneseq
    %v20 = vshrl.u32 %v19, 7
    %vm21 = vcmp.lt.s32.totalorder %v20, 2
    %v22 = vsel %vm21, 1, 0
    %v23 = vcvt.s32.f32 %v22
    %v24 = vmul.f32 %v18, %v23
    %v25 = vrot.slane %v24, 4
    %v26 = vadd.f32 %v24, %v25
    %v27 = vrot.slane %v26, 2
    %v28 = vadd.f32 %v26, %v27
    %v29 = vrot.slane %v28, 1
    %v30 = vadd.f32 %v28, %v29
    %v31 = vmul.f32 %v30, 0.5
    %v32 = vsub.f32 %v18, %v31
    %v33 = vmul.f32 %v32, %v23
    %v34 = vmul.f32 %v33, %v33
    %v35 = vrot.slane %v34, 4
    %v36 = vadd.f32 %v34, %v35
    %v37 = vrot.slane %v36, 2
    %v38 = vadd.f32 %v36, %v37
    %v39 = vrot.slane %v38, 1
    %v40 = vadd.f32 %v38, %v39
    %v41 = vmul.f32 %v40, 0.5
    %v42 = vld [vmem:[%s1] sm:$0x3]
    %v43 = vadd.f32 %v41, 1e-05
    %v44 = vrsqrt.pop %v43
    %v45 = vmul.f32 %v32, %v44
    %v46 = vlaneseq
    %v47 = vshrl.u32 %v46, 7
    %v48 = vsub.s32 0, %v47
    %v49 = vrot.slane %v42, %v48
    %v50 = vmul.f32 %v45, %v49
    %v51 = vlaneseq
    %v52 = vshrl.u32 %v51, 7
    %v53 = vsub.s32 1, %v52
    %v54 = vrot.slane %v42, %v53
    %v55 = vadd.f32 %v50, %v54
    %v56 = vld [vmem:[%s2] sm:$0xff]
    %v57 = vld [vmem:[%s2 + $0x8] sm:$0xff]
    %v58 = vld [vmem:[%s2 + $0x10] sm:$0xff]
    %v59 = vld [vmem:[%s2 + $0x18] sm:$0xff]
    %v60 = vld [vmem:[%s2 + $0x20] sm:$0xff]
    %v61 = vld [vmem:[%s2 + $0x28] sm:$0xff]
    %v62 = vld [vmem:[%s2 + $0x30] sm:$0xff]
    %v63 = vld [vmem:[%s2 + $0x38] sm:$0xff]
    %v64 = vld [vmem:[%s2 + $0x40] sm:$0xff]
    %v65 = vld [vmem:[%s2 + $0x48] sm:$0xff]
    %v66 = vld [vmem:[%s2 + $0x50] sm:$0xff]
    %v67 = vld [vmem:[%s2 + $0x58] sm:$0xff]
    %v68 = vld [vmem:[%s2 + $0x60] sm:$0xff]
    %v69 = vld [vmem:[%s2 + $0x68] sm:$0xff]
    %v70 = vld [vmem:[%s2 + $0x70] sm:$0xff]
    %v71 = vld [vmem:[%s2 + $0x78] sm:$0xff]
    %v72 = vld [vmem:[%s3] sm:$0x1]
    %v74 = vlaneseq
    %v75 = vshrl.u32 %v74, 7
    %v76 = vsub.s32 0, %v75
    %v77 = vrot.slane %v72, %v76
    %79 = vmatprep.subr.mxu0 0.0
    %80 = vmatpush1.msra.mxu0 %v56
    %81 = vmatprep.subr.mxu0 0.0
    %82 = vmatpush1.msra.mxu0 %v57
    %83 = vmatprep.subr.mxu0 0.0
    %84 = vmatpush1.msra.mxu0 %v58
    %85 = vmatprep.subr.mxu0 0.0
    %86 = vmatpush1.msra.mxu0 %v59
    %87 = vmatprep.subr.mxu0 0.0
    %88 = vmatpush1.msra.mxu0 %v60
    %89 = vmatprep.subr.mxu0 0.0
    %90 = vmatpush1.msra.mxu0 %v61
    %91 = vmatprep.subr.mxu0 0.0
    %92 = vmatpush1.msra.mxu0 %v62
    %93 = vmatprep.subr.mxu0 0.0
    %94 = vmatpush1.msra.mxu0 %v63
    %95 = vmatprep.subr.mxu0 0.0
    %96 = vmatpush1.msra.mxu0 %v64
    %97 = vmatprep.subr.mxu0 0.0
    %98 = vmatpush1.msra.mxu0 %v65
    %99 = vmatprep.subr.mxu0 0.0
    %100 = vmatpush1.msra.mxu0 %v66
    %101 = vmatprep.subr.mxu0 0.0
    %102 = vmatpush1.msra.mxu0 %v67
    %103 = vmatprep.subr.mxu0 0.0
    %104 = vmatpush1.msra.mxu0 %v68
    %105 = vmatprep.subr.mxu0 0.0
    %106 = vmatpush1.msra.mxu0 %v69
    %107 = vmatprep.subr.mxu0 0.0
    %108 = vmatpush1.msra.mxu0 %v70
    %109 = vmatprep.subr.mxu0 0.0
    %110 = vmatpush1.msra.mxu0 %v71
    %111 = vmatprep.subr.mxu0 0.0
    %112 = vmatpush1.msra.mxu0 0.0
    %113 = vmatprep.subr.mxu0 0.0
    %114 = vmatpush1.msra.mxu0 0.0
    %115 = vmatprep.subr.mxu0 0.0
    %116 = vmatpush1.msra.mxu0 0.0
    %117 = vmatprep.subr.mxu0 0.0
    %118 = vmatpush1.msra.mxu0 0.0
    %119 = vmatprep.subr.mxu0 0.0
    %120 = vmatpush1.msra.mxu0 0.0
    %121 = vmatprep.subr.mxu0 0.0
    %122 = vmatpush1.msra.mxu0 0.0
    %123 = vmatprep.subr.mxu0 0.0
    %124 = vmatpush1.msra.mxu0 0.0
    %125 = vmatprep.subr.mxu0 0.0
    %126 = vmatpush1.msra.mxu0 0.0
    %127 = vmatprep.subr.mxu0 0.0
    %128 = vmatpush1.msra.mxu0 0.0
    %129 = vmatprep.subr.mxu0 0.0
    %130 = vmatpush1.msra.mxu0 0.0
    %131 = vmatprep.subr.mxu0 0.0
    %132 = vmatpush1.msra.mxu0 0.0
    %133 = vmatprep.subr.mxu0 0.0
    %134 = vmatpush1.msra.mxu0 0.0
    %135 = vmatprep.subr.mxu0 0.0
    %136 = vmatpush1.msra.mxu0 0.0
    %137 = vmatprep.subr.mxu0 0.0
    %138 = vmatpush1.msra.mxu0 0.0
    %139 = vmatprep.subr.mxu0 0.0
    %140 = vmatpush1.msra.mxu0 0.0
    %141 = vmatprep.subr.mxu0 0.0
    %142 = vmatpush1.msra.mxu0 0.0
    %143 = vmatprep.mubr.f32.mxu0 0.0
    %144 = vmatmul.mubr.f32.gmra.mrb[0].mxu0 %v55
    %v145 = vpop.f32.mrb[0].mxu0
    %v146 = vadd.f32 %v77, %v145
    %v147 = vpop.f32.mrb[0].mxu0
    %148 = vdwg.mxu0
    %149 = vst [vmem:[#allocation2] sm:$0x3] %v146
    // Predicated region
    $region18: #{cat_model_forward.3} parent=1 // pred_check
      _
    $region19: #{cat_model_forward.3} parent=1 // pred_check_branch
      %151 = sbr.rel (0) target = $region21
    $region20: #{cat_model_forward.3} parent=1 // pred_region
      %s153 = ssub.s32 32, 32
      %154 = vsyncadd [#allocation3], %s153
      %s156 = sshll.u32 [#allocation2], 4
      %s157 = int_to_ptr.vmem [resolvable:$true] %s156
      %159 = dma.vmem_to_hbm [thread:$0]  %s157, 32, %s4, [#allocation3]
    $region21: #{cat_model_forward.3} parent=1 // pred_fallthru
      _
    // Predicated region
    $region22: #{cat_model_forward.3} parent=1 // pred_check
      _
    $region23: #{cat_model_forward.3} parent=1 // pred_check_branch
      %161 = sbr.rel (0) target = $region25
    $region24: #{cat_model_forward.3} parent=1 // pred_region
      %162 = dma.done [#allocation3], 32
    $region25: #{cat_model_forward.3} parent=1 // pred_fallthru
      _
    %163 = vsyncpa [#allocation3], 1

// kernel: cat_model_forward.2
$region0: #{cat_model_forward.2}
  #allocation0 [shape = 'u32[]', space=smem, size = 0x4, offset = 0x4, fixed_abs, tag = 'smem constant byte address 0x4 - core index']
  #allocation1 [shape = 'u32[144,128]{1,0:T(1,128)}', space=vmem, size = 0x12000, scoped, tag = 'internal scratch']
  %s0 = inlined_call_operand.vmem [shape: s32[8,8], index: 0, kind: input, shape index: {}]
  %s1 = inlined_call_operand.vmem [shape: f32[8,8], index: 1, kind: input, shape index: {}]
  %s2 = inlined_call_operand.vmem [shape: bf16[8,3,256], index: 2, kind: input, shape index: {}]
  %s3 = inlined_call_operand.vmem [shape: f32[128,128], index: 3, kind: input, shape index: {}]
  %s4 = inlined_call_operand.vmem [shape: f32[128,128], index: 4, kind: input, shape index: {}]
  %s5 = inlined_call_operand.vmem [shape: f32[8,128], index: 5, kind: input, shape index: {}]
  %s6 = inlined_call_operand.vmem [shape: f32[1,128], index: 6, kind: input, shape index: {}]
  %s7 = inlined_call_operand.vmem [shape: f32[8,128], index: 7, kind: output, shape index: {}]
  %s8 = sld [smem:[#allocation0]]
  $region38: #{cat_model_forward.2} parent=0
    _
  %s10 = ssub.s32 1, %s8
  %s11 = scalar_select 0, %s10, %s8
  // Predicated region
  $region2: #{cat_model_forward.2} parent=0 // pred_check
    _
  $region3: #{cat_model_forward.2} parent=0 // pred_check_branch
    %13 = sbr.rel (0) target = $region5
  $region4: #{cat_model_forward.2} parent=0 // pred_region
    _
  $region5: #{cat_model_forward.2} parent=0 // pred_fallthru
    _
  // Predicated region
  $region6: #{cat_model_forward.2} parent=0 // pred_check
    _
  $region7: #{cat_model_forward.2} parent=0 // pred_check_branch
    %15 = sbr.rel (0) target = $region9
  $region8: #{cat_model_forward.2} parent=0 // pred_region
    _
  $region9: #{cat_model_forward.2} parent=0 // pred_fallthru
    _
  // Predicated region
  $region10: #{cat_model_forward.2} parent=0 // pred_check
    _
  $region11: #{cat_model_forward.2} parent=0 // pred_check_branch
    %17 = sbr.rel (0) target = $region13
  $region12: #{cat_model_forward.2} parent=0 // pred_region
    _
  $region13: #{cat_model_forward.2} parent=0 // pred_fallthru
    _
  // Predicated region
  $region14: #{cat_model_forward.2} parent=0 // pred_check
    _
  $region15: #{cat_model_forward.2} parent=0 // pred_check_branch
    %19 = sbr.rel (0) target = $region17
  $region16: #{cat_model_forward.2} parent=0 // pred_region
    _
  $region17: #{cat_model_forward.2} parent=0 // pred_fallthru
    _
  // Predicated region
  $region18: #{cat_model_forward.2} parent=0 // pred_check
    _
  $region19: #{cat_model_forward.2} parent=0 // pred_check_branch
    %21 = sbr.rel (0) target = $region21
  $region20: #{cat_model_forward.2} parent=0 // pred_region
    _
  $region21: #{cat_model_forward.2} parent=0 // pred_fallthru
    _
  // Predicated region
  $region22: #{cat_model_forward.2} parent=0 // pred_check
    _
  $region23: #{cat_model_forward.2} parent=0 // pred_check_branch
    %23 = sbr.rel (0) target = $region25
  $region24: #{cat_model_forward.2} parent=0 // pred_region
    _
  $region25: #{cat_model_forward.2} parent=0 // pred_fallthru
    _
  // Predicated region
  $region26: #{cat_model_forward.2} parent=0 // pred_check
    _
  $region27: #{cat_model_forward.2} parent=0 // pred_check_branch
    %25 = sbr.rel (0) target = $region29
  $region28: #{cat_model_forward.2} parent=0 // pred_region
    _
  $region29: #{cat_model_forward.2} parent=0 // pred_fallthru
    _
  %v26 = vld [vmem:[%s1] sm:$0xff]
  %vm27 = vcmask 64512
  %v28 = vsel %vm27, %v26, 0.0
  %29 = vadd.xlane.f32.xlu0 %v28
  %v30 = vpop.xlane.xlu0 %29
  %v31 = vmax.f32 %v30, 1.0
  %v32 = vrcp.pop %v31
  %v33 = vmul.f32 %v26, %v32
  %v34 = vld [vmem:[%s0] sm:$0xff]
  %v35 = vlaneseq
  %v36 = vand.u32 %v35, 127
  %v37 = vlaneseq
  %v38 = vshrl.u32 %v37, 7
  %v39 = vsub.s32 0, %v38
  %v40 = vrot.slane %v34, %v39
  %42 = vbcast.lane.b32.xlu0 %v40, 256
  %v43 = vpop.permute.xlu0 %42
  %v44 = vlaneseq
  %v45 = vshrl.u32 %v44, 7
  %v46 = vsub.s32 1, %v45
  %v47 = vrot.slane %v34, %v46
  %49 = vbcast.lane.b32.xlu0 %v47, 256
  %v50 = vpop.permute.xlu0 %49
  %v51 = vlaneseq
  %v52 = vshrl.u32 %v51, 7
  %v53 = vsub.s32 2, %v52
  %v54 = vrot.slane %v34, %v53
  %56 = vbcast.lane.b32.xlu0 %v54, 256
  %v57 = vpop.permute.xlu0 %56
  %v58 = vlaneseq
  %v59 = vshrl.u32 %v58, 7
  %v60 = vsub.s32 3, %v59
  %v61 = vrot.slane %v34, %v60
  %63 = vbcast.lane.b32.xlu0 %v61, 256
  %v64 = vpop.permute.xlu0 %63
  %v65 = vlaneseq
  %v66 = vshrl.u32 %v65, 7
  %v67 = vsub.s32 4, %v66
  %v68 = vrot.slane %v34, %v67
  %70 = vbcast.lane.b32.xlu0 %v68, 256
  %v71 = vpop.permute.xlu0 %70
  %v72 = vlaneseq
  %v73 = vshrl.u32 %v72, 7
  %v74 = vsub.s32 5, %v73
  %v75 = vrot.slane %v34, %v74
  %77 = vbcast.lane.b32.xlu0 %v75, 256
  %v78 = vpop.permute.xlu0 %77
  %v79 = vlaneseq
  %v80 = vshrl.u32 %v79, 7
  %v81 = vsub.s32 6, %v80
  %v82 = vrot.slane %v34, %v81
  %84 = vbcast.lane.b32.xlu0 %v82, 256
  %v85 = vpop.permute.xlu0 %84
  %v86 = vlaneseq
  %v87 = vshrl.u32 %v86, 7
  %v88 = vsub.s32 7, %v87
  %v89 = vrot.slane %v34, %v88
  %91 = vbcast.lane.b32.xlu0 %v89, 256
  %v92 = vpop.permute.xlu0 %91
  %vm93 = vcmp.eq.s32.totalorder %v43, %v36
  %vm94 = vcmp.eq.s32.totalorder %v50, %v36
  %vm95 = vcmp.eq.s32.totalorder %v57, %v36
  %vm96 = vcmp.eq.s32.totalorder %v64, %v36
  %vm97 = vcmp.eq.s32.totalorder %v71, %v36
  %vm98 = vcmp.eq.s32.totalorder %v78, %v36
  %vm99 = vcmp.eq.s32.totalorder %v85, %v36
  %vm100 = vcmp.eq.s32.totalorder %v92, %v36
  %v101 = vlaneseq
  %v102 = vshrl.u32 %v101, 7
  %v103 = vsub.s32 0, %v102
  %v104 = vrot.slane %v33, %v103
  %106 = vbcast.lane.b32.xlu0 %v104, 256
  %v107 = vpop.permute.xlu0 %106
  %v108 = vlaneseq
  %v109 = vshrl.u32 %v108, 7
  %v110 = vsub.s32 1, %v109
  %v111 = vrot.slane %v33, %v110
  %113 = vbcast.lane.b32.xlu0 %v111, 256
  %v114 = vpop.permute.xlu0 %113
  %v115 = vlaneseq
  %v116 = vshrl.u32 %v115, 7
  %v117 = vsub.s32 2, %v116
  %v118 = vrot.slane %v33, %v117
  %120 = vbcast.lane.b32.xlu0 %v118, 256
  %v121 = vpop.permute.xlu0 %120
  %v122 = vlaneseq
  %v123 = vshrl.u32 %v122, 7
  %v124 = vsub.s32 3, %v123
  %v125 = vrot.slane %v33, %v124
  %127 = vbcast.lane.b32.xlu0 %v125, 256
  %v128 = vpop.permute.xlu0 %127
  %v129 = vlaneseq
  %v130 = vshrl.u32 %v129, 7
  %v131 = vsub.s32 4, %v130
  %v132 = vrot.slane %v33, %v131
  %134 = vbcast.lane.b32.xlu0 %v132, 256
  %v135 = vpop.permute.xlu0 %134
  %v136 = vlaneseq
  %v137 = vshrl.u32 %v136, 7
  %v138 = vsub.s32 5, %v137
  %v139 = vrot.slane %v33, %v138
  %141 = vbcast.lane.b32.xlu0 %v139, 256
  %v142 = vpop.permute.xlu0 %141
  %v143 = vlaneseq
  %v144 = vshrl.u32 %v143, 7
  %v145 = vsub.s32 6, %v144
  %v146 = vrot.slane %v33, %v145
  %148 = vbcast.lane.b32.xlu0 %v146, 256
  %v149 = vpop.permute.xlu0 %148
  %v150 = vlaneseq
  %v151 = vshrl.u32 %v150, 7
  %v152 = vsub.s32 7, %v151
  %v153 = vrot.slane %v33, %v152
  %155 = vbcast.lane.b32.xlu0 %v153, 256
  %v156 = vpop.permute.xlu0 %155
  %v157 = vsel %vm93, %v107, 0.0
  %v158 = vsel %vm94, %v114, 0.0
  %v159 = vsel %vm95, %v121, 0.0
  %v160 = vsel %vm96, %v128, 0.0
  %v161 = vsel %vm97, %v135, 0.0
  %v162 = vsel %vm98, %v142, 0.0
  %v163 = vsel %vm99, %v149, 0.0
  %v164 = vsel %vm100, %v156, 0.0
  %v165 = vrot.slane %v157, 4
  %v166 = vadd.f32 %v157, %v165
  %v167 = vrot.slane %v166, 2
  %v168 = vadd.f32 %v166, %v167
  %v169 = vrot.slane %v168, 1
  %v170 = vadd.f32 %v168, %v169
  %v171 = vrot.slane %v158, 4
  %v172 = vadd.f32 %v158, %v171
  %v173 = vrot.slane %v172, 2
  %v174 = vadd.f32 %v172, %v173
  %v175 = vrot.slane %v174, 1
  %v176 = vadd.f32 %v174, %v175
  %v177 = vrot.slane %v159, 4
  %v178 = vadd.f32 %v159, %v177
  %v179 = vrot.slane %v178, 2
  %v180 = vadd.f32 %v178, %v179
  %v181 = vrot.slane %v180, 1
  %v182 = vadd.f32 %v180, %v181
  %v183 = vrot.slane %v160, 4
  %v184 = vadd.f32 %v160, %v183
  %v185 = vrot.slane %v184, 2
  %v186 = vadd.f32 %v184, %v185
  %v187 = vrot.slane %v186, 1
  %v188 = vadd.f32 %v186, %v187
  %v189 = vrot.slane %v161, 4
  %v190 = vadd.f32 %v161, %v189
  %v191 = vrot.slane %v190, 2
  %v192 = vadd.f32 %v190, %v191
  %v193 = vrot.slane %v192, 1
  %v194 = vadd.f32 %v192, %v193
  %v195 = vrot.slane %v162, 4
  %v196 = vadd.f32 %v162, %v195
  %v197 = vrot.slane %v196, 2
  %v198 = vadd.f32 %v196, %v197
  %v199 = vrot.slane %v198, 1
  %v200 = vadd.f32 %v198, %v199
  %v201 = vrot.slane %v163, 4
  %v202 = vadd.f32 %v163, %v201
  %v203 = vrot.slane %v202, 2
  %v204 = vadd.f32 %v202, %v203
  %v205 = vrot.slane %v204, 1
  %v206 = vadd.f32 %v204, %v205
  %v207 = vrot.slane %v164, 4
  %v208 = vadd.f32 %v164, %v207
  %v209 = vrot.slane %v208, 2
  %v210 = vadd.f32 %v208, %v209
  %v211 = vrot.slane %v210, 1
  %v212 = vadd.f32 %v210, %v211
  %v213 = vld [vmem:[%s3] sm:$0xff]
  %v214 = vld [vmem:[%s3 + $0x8] sm:$0xff]
  %v215 = vld [vmem:[%s3 + $0x10] sm:$0xff]
  %v216 = vld [vmem:[%s3 + $0x18] sm:$0xff]
  %v217 = vld [vmem:[%s3 + $0x20] sm:$0xff]
  %v218 = vld [vmem:[%s3 + $0x28] sm:$0xff]
  %v219 = vld [vmem:[%s3 + $0x30] sm:$0xff]
  %v220 = vld [vmem:[%s3 + $0x38] sm:$0xff]
  %v221 = vld [vmem:[%s3 + $0x40] sm:$0xff]
  %v222 = vld [vmem:[%s3 + $0x48] sm:$0xff]
  %v223 = vld [vmem:[%s3 + $0x50] sm:$0xff]
  %v224 = vld [vmem:[%s3 + $0x58] sm:$0xff]
  %v225 = vld [vmem:[%s3 + $0x60] sm:$0xff]
  %v226 = vld [vmem:[%s3 + $0x68] sm:$0xff]
  %v227 = vld [vmem:[%s3 + $0x70] sm:$0xff]
  %v228 = vld [vmem:[%s3 + $0x78] sm:$0xff]
  %vm237 = vcmask 1041409
  %v238 = vsel %vm237, %v176, %v170
  %vm239 = vcmask 1042434
  %v240 = vsel %vm239, %v182, %v238
  %vm241 = vcmask 1043459
  %v242 = vsel %vm241, %v188, %v240
  %vm243 = vcmask 1044484
  %v244 = vsel %vm243, %v194, %v242
  %vm245 = vcmask 1045509
  %v246 = vsel %vm245, %v200, %v244
  %vm247 = vcmask 1046534
  %v248 = vsel %vm247, %v206, %v246
  %vm249 = vcmask 1047559
  %v250 = vsel %vm249, %v212, %v248
  %252 = vmatprep.subr.mxu0 0.0
  %253 = vmatpush1.msra.mxu0 %v213
  %254 = vmatprep.subr.mxu0 0.0
  %255 = vmatpush1.msra.mxu0 %v214
  %256 = vmatprep.subr.mxu0 0.0
  %257 = vmatpush1.msra.mxu0 %v215
  %258 = vmatprep.subr.mxu0 0.0
  %259 = vmatpush1.msra.mxu0 %v216
  %260 = vmatprep.subr.mxu0 0.0
  %261 = vmatpush1.msra.mxu0 %v217
  %262 = vmatprep.subr.mxu0 0.0
  %263 = vmatpush1.msra.mxu0 %v218
  %264 = vmatprep.subr.mxu0 0.0
  %265 = vmatpush1.msra.mxu0 %v219
  %266 = vmatprep.subr.mxu0 0.0
  %267 = vmatpush1.msra.mxu0 %v220
  %268 = vmatprep.subr.mxu0 0.0
  %269 = vmatpush1.msra.mxu0 %v221
  %270 = vmatprep.subr.mxu0 0.0
  %271 = vmatpush1.msra.mxu0 %v222
  %272 = vmatprep.subr.mxu0 0.0
  %273 = vmatpush1.msra.mxu0 %v223
  %274 = vmatprep.subr.mxu0 0.0
  %275 = vmatpush1.msra.mxu0 %v224
  %276 = vmatprep.subr.mxu0 0.0
  %277 = vmatpush1.msra.mxu0 %v225
  %278 = vmatprep.subr.mxu0 0.0
  %279 = vmatpush1.msra.mxu0 %v226
  %280 = vmatprep.subr.mxu0 0.0
  %281 = vmatpush1.msra.mxu0 %v227
  %282 = vmatprep.subr.mxu0 0.0
  %283 = vmatpush1.msra.mxu0 %v228
  %284 = vmatprep.subr.mxu0 0.0
  %285 = vmatpush1.msra.mxu0 0.0
  %286 = vmatprep.subr.mxu0 0.0
  %287 = vmatpush1.msra.mxu0 0.0
  %288 = vmatprep.subr.mxu0 0.0
  %289 = vmatpush1.msra.mxu0 0.0
  %290 = vmatprep.subr.mxu0 0.0
  %291 = vmatpush1.msra.mxu0 0.0
  %292 = vmatprep.subr.mxu0 0.0
  %293 = vmatpush1.msra.mxu0 0.0
  %294 = vmatprep.subr.mxu0 0.0
  %295 = vmatpush1.msra.mxu0 0.0
  %296 = vmatprep.subr.mxu0 0.0
  %297 = vmatpush1.msra.mxu0 0.0
  %298 = vmatprep.subr.mxu0 0.0
  %299 = vmatpush1.msra.mxu0 0.0
  %300 = vmatprep.subr.mxu0 0.0
  %301 = vmatpush1.msra.mxu0 0.0
  %302 = vmatprep.subr.mxu0 0.0
  %303 = vmatpush1.msra.mxu0 0.0
  %304 = vmatprep.subr.mxu0 0.0
  %305 = vmatpush1.msra.mxu0 0.0
  %306 = vmatprep.subr.mxu0 0.0
  %307 = vmatpush1.msra.mxu0 0.0
  %308 = vmatprep.subr.mxu0 0.0
  %309 = vmatpush1.msra.mxu0 0.0
  %310 = vmatprep.subr.mxu0 0.0
  %311 = vmatpush1.msra.mxu0 0.0
  %312 = vmatprep.subr.mxu0 0.0
  %313 = vmatpush1.msra.mxu0 0.0
  %314 = vmatprep.subr.mxu0 0.0
  %315 = vmatpush1.msra.mxu0 0.0
  %316 = vmatprep.mubr.f32.mxu0 0.0
  %317 = vmatmul.mubr.f32.gmra.mrb[0].mxu0 %v250
  %v318 = vpop.f32.mrb[0].mxu0
  %v319 = vadd.f32 0.0, %v318
  %v320 = vpop.f32.mrb[0].mxu0
  %321 = vdwg.mxu0
  %v322 = vld [vmem:[%s4] sm:$0xff]
  %v323 = vld [vmem:[%s4 + $0x8] sm:$0xff]
  %v324 = vld [vmem:[%s4 + $0x10] sm:$0xff]
  %v325 = vld [vmem:[%s4 + $0x18] sm:$0xff]
  %v326 = vld [vmem:[%s4 + $0x20] sm:$0xff]
  %v327 = vld [vmem:[%s4 + $0x28] sm:$0xff]
  %v328 = vld [vmem:[%s4 + $0x30] sm:$0xff]
  %v329 = vld [vmem:[%s4 + $0x38] sm:$0xff]
  %v330 = vld [vmem:[%s4 + $0x40] sm:$0xff]
  %v331 = vld [vmem:[%s4 + $0x48] sm:$0xff]
  %v332 = vld [vmem:[%s4 + $0x50] sm:$0xff]
  %v333 = vld [vmem:[%s4 + $0x58] sm:$0xff]
  %v334 = vld [vmem:[%s4 + $0x60] sm:$0xff]
  %v335 = vld [vmem:[%s4 + $0x68] sm:$0xff]
  %v336 = vld [vmem:[%s4 + $0x70] sm:$0xff]
  %v337 = vld [vmem:[%s4 + $0x78] sm:$0xff]
  %v338 = vld [vmem:[%s2] sm:$0xf]
  %v339 = vld [vmem:[%s2 + $0x4] sm:$0xf]
  %v340 = vld [vmem:[%s2 + $0x8] sm:$0xf]
  %v341 = vld [vmem:[%s2 + $0xc] sm:$0xf]
  %v342 = vld [vmem:[%s2 + $0x10] sm:$0xf]
  %v343 = vld [vmem:[%s2 + $0x14] sm:$0xf]
  %v344 = vld [vmem:[%s2 + $0x18] sm:$0xf]
  %v345 = vld [vmem:[%s2 + $0x1c] sm:$0xf]
  %v346 = vunpack.c.l.bf16 %v338
  %v347 = vunpack.c.l.bf16 %v339
  %v348 = vunpack.c.l.bf16 %v340
  %v349 = vunpack.c.l.bf16 %v341
  %v350 = vunpack.c.l.bf16 %v342
  %v351 = vunpack.c.l.bf16 %v343
  %v352 = vunpack.c.l.bf16 %v344
  %v353 = vunpack.c.l.bf16 %v345
  %v362 = vcombine.high %v346, %v346
  %v363 = vcombine.high %v347, %v347
  %v364 = vcombine.high %v348, %v348
  %v365 = vcombine.high %v349, %v349
  %v366 = vcombine.high %v350, %v350
  %v367 = vcombine.high %v351, %v351
  %v368 = vcombine.high %v352, %v352
  %v369 = vcombine.high %v353, %v353
  %vm378 = vcmask 1042432
  %v379 = vsel %vm378, %v346, 0.0
  %v380 = vsel %vm378, %v362, 0.0
  %v381 = vadd.f32 %v379, %v380
  %382 = vadd.xlane.f32.xlu0 %v381
  %v383 = vpop.xlane.xlu0 %382
  %v384 = vsel %vm378, %v347, 0.0
  %v385 = vsel %vm378, %v363, 0.0
  %v386 = vadd.f32 %v384, %v385
  %387 = vadd.xlane.f32.xlu0 %v386
  %v388 = vpop.xlane.xlu0 %387
  %v389 = vsel %vm378, %v348, 0.0
  %v390 = vsel %vm378, %v364, 0.0
  %v391 = vadd.f32 %v389, %v390
  %392 = vadd.xlane.f32.xlu0 %v391
  %v393 = vpop.xlane.xlu0 %392
  %v394 = vsel %vm378, %v349, 0.0
  %v395 = vsel %vm378, %v365, 0.0
  %v396 = vadd.f32 %v394, %v395
  %397 = vadd.xlane.f32.xlu0 %v396
  %v398 = vpop.xlane.xlu0 %397
  %v399 = vsel %vm378, %v350, 0.0
  %v400 = vsel %vm378, %v366, 0.0
  %v401 = vadd.f32 %v399, %v400
  %402 = vadd.xlane.f32.xlu0 %v401
  %v403 = vpop.xlane.xlu0 %402
  %v404 = vsel %vm378, %v351, 0.0
  %v405 = vsel %vm378, %v367, 0.0
  %v406 = vadd.f32 %v404, %v405
  %407 = vadd.xlane.f32.xlu0 %v406
  %v408 = vpop.xlane.xlu0 %407
  %v409 = vsel %vm378, %v352, 0.0
  %v410 = vsel %vm378, %v368, 0.0
  %v411 = vadd.f32 %v409, %v410
  %412 = vadd.xlane.f32.xlu0 %v411
  %v413 = vpop.xlane.xlu0 %412
  %v414 = vsel %vm378, %v353, 0.0
  %v415 = vsel %vm378, %v369, 0.0
  %v416 = vadd.f32 %v414, %v415
  %417 = vadd.xlane.f32.xlu0 %v416
  %v418 = vpop.xlane.xlu0 %417
  %v419 = vrcp.pop 256.0
  %v420 = vmul.f32 %v383, %v419
  %v421 = vmul.f32 %v388, %v419
  %v422 = vmul.f32 %v393, %v419
  %v423 = vmul.f32 %v398, %v419
  %v424 = vmul.f32 %v403, %v419
  %v425 = vmul.f32 %v408, %v419
  %v426 = vmul.f32 %v413, %v419
  %v427 = vmul.f32 %v418, %v419
  %v428 = vld [vmem:[%s5] sm:$0xff]
  %v429 = vlaneseq
  %v430 = vshrl.u32 %v429, 7
  %v431 = vsub.s32 0, %v430
  %v432 = vrot.slane %v420, %v431
  %v433 = vlaneseq
  %v434 = vshrl.u32 %v433, 7
  %v435 = vsub.s32 0, %v434
  %v436 = vrot.slane %v421, %v435
  %v437 = vlaneseq
  %v438 = vshrl.u32 %v437, 7
  %v439 = vsub.s32 0, %v438
  %v440 = vrot.slane %v422, %v439
  %v441 = vlaneseq
  %v442 = vshrl.u32 %v441, 7
  %v443 = vsub.s32 0, %v442
  %v444 = vrot.slane %v423, %v443
  %v445 = vlaneseq
  %v446 = vshrl.u32 %v445, 7
  %v447 = vsub.s32 0, %v446
  %v448 = vrot.slane %v424, %v447
  %v449 = vlaneseq
  %v450 = vshrl.u32 %v449, 7
  %v451 = vsub.s32 0, %v450
  %v452 = vrot.slane %v425, %v451
  %v453 = vlaneseq
  %v454 = vshrl.u32 %v453, 7
  %v455 = vsub.s32 0, %v454
  %v456 = vrot.slane %v426, %v455
  %v457 = vlaneseq
  %v458 = vshrl.u32 %v457, 7
  %v459 = vsub.s32 0, %v458
  %v460 = vrot.slane %v427, %v459
  %v461 = vlaneseq
  %v462 = vshrl.u32 %v461, 7
  %v463 = vsub.s32 0, %v462
  %v464 = vrot.slane %v428, %v463
  %467 = vbcast.lane.b32.xlu0 %v464, 256
  %v468 = vpop.permute.xlu0 %467
  %s470 = sor.u32 256, 8
  %471 = vbcast.lane.b32.xlu0 %v464, %s470
  %v472 = vpop.permute.xlu0 %471
  %s474 = sor.u32 256, 16
  %475 = vbcast.lane.b32.xlu0 %v464, %s474
  %v476 = vpop.permute.xlu0 %475
  %s478 = sor.u32 256, 24
  %479 = vbcast.lane.b32.xlu0 %v464, %s478
  %v480 = vpop.permute.xlu0 %479
  %s482 = sor.u32 256, 32
  %483 = vbcast.lane.b32.xlu0 %v464, %s482
  %v484 = vpop.permute.xlu0 %483
  %s486 = sor.u32 256, 40
  %487 = vbcast.lane.b32.xlu0 %v464, %s486
  %v488 = vpop.permute.xlu0 %487
  %s490 = sor.u32 256, 48
  %491 = vbcast.lane.b32.xlu0 %v464, %s490
  %v492 = vpop.permute.xlu0 %491
  %s494 = sor.u32 256, 56
  %495 = vbcast.lane.b32.xlu0 %v464, %s494
  %v496 = vpop.permute.xlu0 %495
  %s498 = sor.u32 256, 64
  %499 = vbcast.lane.b32.xlu0 %v464, %s498
  %v500 = vpop.permute.xlu0 %499
  %s502 = sor.u32 256, 72
  %503 = vbcast.lane.b32.xlu0 %v464, %s502
  %v504 = vpop.permute.xlu0 %503
  %s506 = sor.u32 256, 80
  %507 = vbcast.lane.b32.xlu0 %v464, %s506
  %v508 = vpop.permute.xlu0 %507
  %s510 = sor.u32 256, 88
  %511 = vbcast.lane.b32.xlu0 %v464, %s510
  %v512 = vpop.permute.xlu0 %511
  %s514 = sor.u32 256, 96
  %515 = vbcast.lane.b32.xlu0 %v464, %s514
  %v516 = vpop.permute.xlu0 %515
  %s518 = sor.u32 256, 104
  %519 = vbcast.lane.b32.xlu0 %v464, %s518
  %v520 = vpop.permute.xlu0 %519
  %s522 = sor.u32 256, 112
  %523 = vbcast.lane.b32.xlu0 %v464, %s522
  %v524 = vpop.permute.xlu0 %523
  %s526 = sor.u32 256, 120
  %527 = vbcast.lane.b32.xlu0 %v464, %s526
  %v528 = vpop.permute.xlu0 %527
  %v545 = vmul.f32 %v432, %v468
  %v546 = vmul.f32 %v432, %v472
  %v547 = vmul.f32 %v432, %v476
  %v548 = vmul.f32 %v432, %v480
  %v549 = vmul.f32 %v432, %v484
  %v550 = vmul.f32 %v432, %v488
  %v551 = vmul.f32 %v432, %v492
  %v552 = vmul.f32 %v432, %v496
  %v553 = vmul.f32 %v432, %v500
  %v554 = vmul.f32 %v432, %v504
  %v555 = vmul.f32 %v432, %v508
  %v556 = vmul.f32 %v432, %v512
  %v557 = vmul.f32 %v432, %v516
  %v558 = vmul.f32 %v432, %v520
  %v559 = vmul.f32 %v432, %v524
  %v560 = vmul.f32 %v432, %v528
  %v561 = vmul.f32 %v436, %v468
  %v562 = vmul.f32 %v436, %v472
  %v563 = vmul.f32 %v436, %v476
  %v564 = vmul.f32 %v436, %v480
  %v565 = vmul.f32 %v436, %v484
  %v566 = vmul.f32 %v436, %v488
  %v567 = vmul.f32 %v436, %v492
  %v568 = vmul.f32 %v436, %v496
  %v569 = vmul.f32 %v436, %v500
  %v570 = vmul.f32 %v436, %v504
  %v571 = vmul.f32 %v436, %v508
  %v572 = vmul.f32 %v436, %v512
  %v573 = vmul.f32 %v436, %v516
  %v574 = vmul.f32 %v436, %v520
  %v575 = vmul.f32 %v436, %v524
  %v576 = vmul.f32 %v436, %v528
  %v577 = vmul.f32 %v440, %v468
  %v578 = vmul.f32 %v440, %v472
  %v579 = vmul.f32 %v440, %v476
  %v580 = vmul.f32 %v440, %v480
  %v581 = vmul.f32 %v440, %v484
  %v582 = vmul.f32 %v440, %v488
  %v583 = vmul.f32 %v440, %v492
  %v584 = vmul.f32 %v440, %v496
  %v585 = vmul.f32 %v440, %v500
  %v586 = vmul.f32 %v440, %v504
  %v587 = vmul.f32 %v440, %v508
  %v588 = vmul.f32 %v440, %v512
  %v589 = vmul.f32 %v440, %v516
  %v590 = vmul.f32 %v440, %v520
  %v591 = vmul.f32 %v440, %v524
  %v592 = vmul.f32 %v440, %v528
  %v593 = vmul.f32 %v444, %v468
  %v594 = vmul.f32 %v444, %v472
  %v595 = vmul.f32 %v444, %v476
  %v596 = vmul.f32 %v444, %v480
  %v597 = vmul.f32 %v444, %v484
  %v598 = vmul.f32 %v444, %v488
  %v599 = vmul.f32 %v444, %v492
  %v600 = vmul.f32 %v444, %v496
  %v601 = vmul.f32 %v444, %v500
  %v602 = vmul.f32 %v444, %v504
  %v603 = vmul.f32 %v444, %v508
  %v604 = vmul.f32 %v444, %v512
  %v605 = vmul.f32 %v444, %v516
  %v606 = vmul.f32 %v444, %v520
  %v607 = vmul.f32 %v444, %v524
  %v608 = vmul.f32 %v444, %v528
  %v609 = vmul.f32 %v448, %v468
  %v610 = vmul.f32 %v448, %v472
  %v611 = vmul.f32 %v448, %v476
  %v612 = vmul.f32 %v448, %v480
  %v613 = vmul.f32 %v448, %v484
  %v614 = vmul.f32 %v448, %v488
  %v615 = vmul.f32 %v448, %v492
  %v616 = vmul.f32 %v448, %v496
  %v617 = vmul.f32 %v448, %v500
  %v618 = vmul.f32 %v448, %v504
  %v619 = vmul.f32 %v448, %v508
  %v620 = vmul.f32 %v448, %v512
  %v621 = vmul.f32 %v448, %v516
  %v622 = vmul.f32 %v448, %v520
  %v623 = vmul.f32 %v448, %v524
  %v624 = vmul.f32 %v448, %v528
  %v625 = vmul.f32 %v452, %v468
  %v626 = vmul.f32 %v452, %v472
  %v627 = vmul.f32 %v452, %v476
  %v628 = vmul.f32 %v452, %v480
  %v629 = vmul.f32 %v452, %v484
  %v630 = vmul.f32 %v452, %v488
  %v631 = vmul.f32 %v452, %v492
  %v632 = vmul.f32 %v452, %v496
  %v633 = vmul.f32 %v452, %v500
  %v634 = vmul.f32 %v452, %v504
  %v635 = vmul.f32 %v452, %v508
  %v636 = vmul.f32 %v452, %v512
  %v637 = vmul.f32 %v452, %v516
  %v638 = vmul.f32 %v452, %v520
  %v639 = vmul.f32 %v452, %v524
  %v640 = vmul.f32 %v452, %v528
  %v641 = vmul.f32 %v456, %v468
  %v642 = vmul.f32 %v456, %v472
  %v643 = vmul.f32 %v456, %v476
  %v644 = vmul.f32 %v456, %v480
  %v645 = vmul.f32 %v456, %v484
  %v646 = vmul.f32 %v456, %v488
  %v647 = vmul.f32 %v456, %v492
  %v648 = vmul.f32 %v456, %v496
  %v649 = vmul.f32 %v456, %v500
  %v650 = vmul.f32 %v456, %v504
  %v651 = vmul.f32 %v456, %v508
  %v652 = vmul.f32 %v456, %v512
  %v653 = vmul.f32 %v456, %v516
  %v654 = vmul.f32 %v456, %v520
  %v655 = vmul.f32 %v456, %v524
  %v656 = vmul.f32 %v456, %v528
  %v657 = vmul.f32 %v460, %v468
  %v658 = vmul.f32 %v460, %v472
  %v659 = vmul.f32 %v460, %v476
  %v660 = vmul.f32 %v460, %v480
  %v661 = vmul.f32 %v460, %v484
  %v662 = vmul.f32 %v460, %v488
  %v663 = vmul.f32 %v460, %v492
  %v664 = vmul.f32 %v460, %v496
  %v665 = vmul.f32 %v460, %v500
  %v666 = vmul.f32 %v460, %v504
  %v667 = vmul.f32 %v460, %v508
  %v668 = vmul.f32 %v460, %v512
  %v669 = vmul.f32 %v460, %v516
  %v670 = vmul.f32 %v460, %v520
  %v671 = vmul.f32 %v460, %v524
  %v672 = vmul.f32 %v460, %v528
  %801 = vset.pattern.permute.xlu0 0
  %802 = vperm.xlu0 %801, %v545
  %v803 = vpop.permute.xlu0 %802
  %804 = vset.pattern.permute.xlu0 0
  %805 = vperm.xlu0 %804, %v546
  %v806 = vpop.permute.xlu0 %805
  %807 = vset.pattern.permute.xlu0 0
  %808 = vperm.xlu0 %807, %v547
  %v809 = vpop.permute.xlu0 %808
  %810 = vset.pattern.permute.xlu0 0
  %811 = vperm.xlu0 %810, %v548
  %v812 = vpop.permute.xlu0 %811
  %813 = vset.pattern.permute.xlu0 0
  %814 = vperm.xlu0 %813, %v549
  %v815 = vpop.permute.xlu0 %814
  %816 = vset.pattern.permute.xlu0 0
  %817 = vperm.xlu0 %816, %v550
  %v818 = vpop.permute.xlu0 %817
  %819 = vset.pattern.permute.xlu0 0
  %820 = vperm.xlu0 %819, %v551
  %v821 = vpop.permute.xlu0 %820
  %822 = vset.pattern.permute.xlu0 0
  %823 = vperm.xlu0 %822, %v552
  %v824 = vpop.permute.xlu0 %823
  %825 = vset.pattern.permute.xlu0 0
  %826 = vperm.xlu0 %825, %v553
  %v827 = vpop.permute.xlu0 %826
  %828 = vset.pattern.permute.xlu0 0
  %829 = vperm.xlu0 %828, %v554
  %v830 = vpop.permute.xlu0 %829
  %831 = vset.pattern.permute.xlu0 0
  %832 = vperm.xlu0 %831, %v555
  %v833 = vpop.permute.xlu0 %832
  %834 = vset.pattern.permute.xlu0 0
  %835 = vperm.xlu0 %834, %v556
  %v836 = vpop.permute.xlu0 %835
  %837 = vset.pattern.permute.xlu0 0
  %838 = vperm.xlu0 %837, %v557
  %v839 = vpop.permute.xlu0 %838
  %840 = vset.pattern.permute.xlu0 0
  %841 = vperm.xlu0 %840, %v558
  %v842 = vpop.permute.xlu0 %841
  %843 = vset.pattern.permute.xlu0 0
  %844 = vperm.xlu0 %843, %v559
  %v845 = vpop.permute.xlu0 %844
  %846 = vset.pattern.permute.xlu0 0
  %847 = vperm.xlu0 %846, %v560
  %v848 = vpop.permute.xlu0 %847
  %849 = vset.pattern.permute.xlu0 0
  %850 = vperm.xlu0 %849, %v561
  %v851 = vpop.permute.xlu0 %850
  %852 = vset.pattern.permute.xlu0 0
  %853 = vperm.xlu0 %852, %v562
  %v854 = vpop.permute.xlu0 %853
  %855 = vset.pattern.permute.xlu0 0
  %856 = vperm.xlu0 %855, %v563
  %v857 = vpop.permute.xlu0 %856
  %858 = vset.pattern.permute.xlu0 0
  %859 = vperm.xlu0 %858, %v564
  %v860 = vpop.permute.xlu0 %859
  %861 = vset.pattern.permute.xlu0 0
  %862 = vperm.xlu0 %861, %v565
  %v863 = vpop.permute.xlu0 %862
  %864 = vset.pattern.permute.xlu0 0
  %865 = vperm.xlu0 %864, %v566
  %v866 = vpop.permute.xlu0 %865
  %867 = vset.pattern.permute.xlu0 0
  %868 = vperm.xlu0 %867, %v567
  %v869 = vpop.permute.xlu0 %868
  %870 = vset.pattern.permute.xlu0 0
  %871 = vperm.xlu0 %870, %v568
  %v872 = vpop.permute.xlu0 %871
  %873 = vset.pattern.permute.xlu0 0
  %874 = vperm.xlu0 %873, %v569
  %v875 = vpop.permute.xlu0 %874
  %876 = vset.pattern.permute.xlu0 0
  %877 = vperm.xlu0 %876, %v570
  %v878 = vpop.permute.xlu0 %877
  %879 = vset.pattern.permute.xlu0 0
  %880 = vperm.xlu0 %879, %v571
  %v881 = vpop.permute.xlu0 %880
  %882 = vset.pattern.permute.xlu0 0
  %883 = vperm.xlu0 %882, %v572
  %v884 = vpop.permute.xlu0 %883
  %885 = vset.pattern.permute.xlu0 0
  %886 = vperm.xlu0 %885, %v573
  %v887 = vpop.permute.xlu0 %886
  %888 = vset.pattern.permute.xlu0 0
  %889 = vperm.xlu0 %888, %v574
  %v890 = vpop.permute.xlu0 %889
  %891 = vset.pattern.permute.xlu0 0
  %892 = vperm.xlu0 %891, %v575
  %v893 = vpop.permute.xlu0 %892
  %894 = vset.pattern.permute.xlu0 0
  %895 = vperm.xlu0 %894, %v576
  %v896 = vpop.permute.xlu0 %895
  %897 = vset.pattern.permute.xlu0 0
  %898 = vperm.xlu0 %897, %v577
  %v899 = vpop.permute.xlu0 %898
  %900 = vset.pattern.permute.xlu0 0
  %901 = vperm.xlu0 %900, %v578
  %v902 = vpop.permute.xlu0 %901
  %903 = vset.pattern.permute.xlu0 0
  %904 = vperm.xlu0 %903, %v579
  %v905 = vpop.permute.xlu0 %904
  %906 = vset.pattern.permute.xlu0 0
  %907 = vperm.xlu0 %906, %v580
  %v908 = vpop.permute.xlu0 %907
  %909 = vset.pattern.permute.xlu0 0
  %910 = vperm.xlu0 %909, %v581
  %v911 = vpop.permute.xlu0 %910
  %912 = vset.pattern.permute.xlu0 0
  %913 = vperm.xlu0 %912, %v582
  %v914 = vpop.permute.xlu0 %913
  %915 = vset.pattern.permute.xlu0 0
  %916 = vperm.xlu0 %915, %v583
  %v917 = vpop.permute.xlu0 %916
  %918 = vset.pattern.permute.xlu0 0
  %919 = vperm.xlu0 %918, %v584
  %v920 = vpop.permute.xlu0 %919
  %921 = vset.pattern.permute.xlu0 0
  %922 = vperm.xlu0 %921, %v585
  %v923 = vpop.permute.xlu0 %922
  %924 = vset.pattern.permute.xlu0 0
  %925 = vperm.xlu0 %924, %v586
  %v926 = vpop.permute.xlu0 %925
  %927 = vset.pattern.permute.xlu0 0
  %928 = vperm.xlu0 %927, %v587
  %v929 = vpop.permute.xlu0 %928
  %930 = vset.pattern.permute.xlu0 0
  %931 = vperm.xlu0 %930, %v588
  %v932 = vpop.permute.xlu0 %931
  %933 = vset.pattern.permute.xlu0 0
  %934 = vperm.xlu0 %933, %v589
  %v935 = vpop.permute.xlu0 %934
  %936 = vset.pattern.permute.xlu0 0
  %937 = vperm.xlu0 %936, %v590
  %v938 = vpop.permute.xlu0 %937
  %939 = vset.pattern.permute.xlu0 0
  %940 = vperm.xlu0 %939, %v591
  %v941 = vpop.permute.xlu0 %940
  %942 = vset.pattern.permute.xlu0 0
  %943 = vperm.xlu0 %942, %v592
  %v944 = vpop.permute.xlu0 %943
  %945 = vset.pattern.permute.xlu0 0
  %946 = vperm.xlu0 %945, %v593
  %v947 = vpop.permute.xlu0 %946
  %948 = vset.pattern.permute.xlu0 0
  %949 = vperm.xlu0 %948, %v594
  %v950 = vpop.permute.xlu0 %949
  %951 = vset.pattern.permute.xlu0 0
  %952 = vperm.xlu0 %951, %v595
  %v953 = vpop.permute.xlu0 %952
  %954 = vset.pattern.permute.xlu0 0
  %955 = vperm.xlu0 %954, %v596
  %v956 = vpop.permute.xlu0 %955
  %957 = vset.pattern.permute.xlu0 0
  %958 = vperm.xlu0 %957, %v597
  %v959 = vpop.permute.xlu0 %958
  %960 = vset.pattern.permute.xlu0 0
  %961 = vperm.xlu0 %960, %v598
  %v962 = vpop.permute.xlu0 %961
  %963 = vset.pattern.permute.xlu0 0
  %964 = vperm.xlu0 %963, %v599
  %v965 = vpop.permute.xlu0 %964
  %966 = vset.pattern.permute.xlu0 0
  %967 = vperm.xlu0 %966, %v600
  %v968 = vpop.permute.xlu0 %967
  %969 = vset.pattern.permute.xlu0 0
  %970 = vperm.xlu0 %969, %v601
  %v971 = vpop.permute.xlu0 %970
  %972 = vset.pattern.permute.xlu0 0
  %973 = vperm.xlu0 %972, %v602
  %v974 = vpop.permute.xlu0 %973
  %975 = vset.pattern.permute.xlu0 0
  %976 = vperm.xlu0 %975, %v603
  %v977 = vpop.permute.xlu0 %976
  %978 = vset.pattern.permute.xlu0 0
  %979 = vperm.xlu0 %978, %v604
  %v980 = vpop.permute.xlu0 %979
  %981 = vset.pattern.permute.xlu0 0
  %982 = vperm.xlu0 %981, %v605
  %v983 = vpop.permute.xlu0 %982
  %984 = vset.pattern.permute.xlu0 0
  %985 = vperm.xlu0 %984, %v606
  %v986 = vpop.permute.xlu0 %985
  %987 = vset.pattern.permute.xlu0 0
  %988 = vperm.xlu0 %987, %v607
  %v989 = vpop.permute.xlu0 %988
  %990 = vset.pattern.permute.xlu0 0
  %991 = vperm.xlu0 %990, %v608
  %v992 = vpop.permute.xlu0 %991
  %993 = vset.pattern.permute.xlu0 0
  %994 = vperm.xlu0 %993, %v609
  %v995 = vpop.permute.xlu0 %994
  %996 = vset.pattern.permute.xlu0 0
  %997 = vperm.xlu0 %996, %v610
  %v998 = vpop.permute.xlu0 %997
  %999 = vset.pattern.permute.xlu0 0
  %1000 = vperm.xlu0 %999, %v611
  %v1001 = vpop.permute.xlu0 %1000
  %1002 = vset.pattern.permute.xlu0 0
  %1003 = vperm.xlu0 %1002, %v612
  %v1004 = vpop.permute.xlu0 %1003
  %1005 = vset.pattern.permute.xlu0 0
  %1006 = vperm.xlu0 %1005, %v613
  %v1007 = vpop.permute.xlu0 %1006
  %1008 = vset.pattern.permute.xlu0 0
  %1009 = vperm.xlu0 %1008, %v614
  %v1010 = vpop.permute.xlu0 %1009
  %1011 = vset.pattern.permute.xlu0 0
  %1012 = vperm.xlu0 %1011, %v615
  %v1013 = vpop.permute.xlu0 %1012
  %1014 = vset.pattern.permute.xlu0 0
  %1015 = vperm.xlu0 %1014, %v616
  %v1016 = vpop.permute.xlu0 %1015
  %1017 = vset.pattern.permute.xlu0 0
  %1018 = vperm.xlu0 %1017, %v617
  %v1019 = vpop.permute.xlu0 %1018
  %1020 = vset.pattern.permute.xlu0 0
  %1021 = vperm.xlu0 %1020, %v618
  %v1022 = vpop.permute.xlu0 %1021
  %1023 = vset.pattern.permute.xlu0 0
  %1024 = vperm.xlu0 %1023, %v619
  %v1025 = vpop.permute.xlu0 %1024
  %1026 = vset.pattern.permute.xlu0 0
  %1027 = vperm.xlu0 %1026, %v620
  %v1028 = vpop.permute.xlu0 %1027
  %1029 = vset.pattern.permute.xlu0 0
  %1030 = vperm.xlu0 %1029, %v621
  %v1031 = vpop.permute.xlu0 %1030
  %1032 = vset.pattern.permute.xlu0 0
  %1033 = vperm.xlu0 %1032, %v622
  %v1034 = vpop.permute.xlu0 %1033
  %1035 = vset.pattern.permute.xlu0 0
  %1036 = vperm.xlu0 %1035, %v623
  %v1037 = vpop.permute.xlu0 %1036
  %1038 = vset.pattern.permute.xlu0 0
  %1039 = vperm.xlu0 %1038, %v624
  %v1040 = vpop.permute.xlu0 %1039
  %1041 = vset.pattern.permute.xlu0 0
  %1042 = vperm.xlu0 %1041, %v625
  %v1043 = vpop.permute.xlu0 %1042
  %1044 = vset.pattern.permute.xlu0 0
  %1045 = vperm.xlu0 %1044, %v626
  %v1046 = vpop.permute.xlu0 %1045
  %1047 = vset.pattern.permute.xlu0 0
  %1048 = vperm.xlu0 %1047, %v627
  %v1049 = vpop.permute.xlu0 %1048
  %1050 = vset.pattern.permute.xlu0 0
  %1051 = vperm.xlu0 %1050, %v628
  %v1052 = vpop.permute.xlu0 %1051
  %1053 = vset.pattern.permute.xlu0 0
  %1054 = vperm.xlu0 %1053, %v629
  %v1055 = vpop.permute.xlu0 %1054
  %1056 = vset.pattern.permute.xlu0 0
  %1057 = vperm.xlu0 %1056, %v630
  %v1058 = vpop.permute.xlu0 %1057
  %1059 = vset.pattern.permute.xlu0 0
  %1060 = vperm.xlu0 %1059, %v631
  %v1061 = vpop.permute.xlu0 %1060
  %1062 = vset.pattern.permute.xlu0 0
  %1063 = vperm.xlu0 %1062, %v632
  %v1064 = vpop.permute.xlu0 %1063
  %1065 = vset.pattern.permute.xlu0 0
  %1066 = vperm.xlu0 %1065, %v633
  %v1067 = vpop.permute.xlu0 %1066
  %1068 = vset.pattern.permute.xlu0 0
  %1069 = vperm.xlu0 %1068, %v634
  %v1070 = vpop.permute.xlu0 %1069
  %1071 = vset.pattern.permute.xlu0 0
  %1072 = vperm.xlu0 %1071, %v635
  %v1073 = vpop.permute.xlu0 %1072
  %1074 = vset.pattern.permute.xlu0 0
  %1075 = vperm.xlu0 %1074, %v636
  %v1076 = vpop.permute.xlu0 %1075
  %1077 = vset.pattern.permute.xlu0 0
  %1078 = vperm.xlu0 %1077, %v637
  %v1079 = vpop.permute.xlu0 %1078
  %1080 = vset.pattern.permute.xlu0 0
  %1081 = vperm.xlu0 %1080, %v638
  %v1082 = vpop.permute.xlu0 %1081
  %1083 = vset.pattern.permute.xlu0 0
  %1084 = vperm.xlu0 %1083, %v639
  %v1085 = vpop.permute.xlu0 %1084
  %1086 = vset.pattern.permute.xlu0 0
  %1087 = vperm.xlu0 %1086, %v640
  %v1088 = vpop.permute.xlu0 %1087
  %1089 = vset.pattern.permute.xlu0 0
  %1090 = vperm.xlu0 %1089, %v641
  %v1091 = vpop.permute.xlu0 %1090
  %1092 = vset.pattern.permute.xlu0 0
  %1093 = vperm.xlu0 %1092, %v642
  %v1094 = vpop.permute.xlu0 %1093
  %1095 = vset.pattern.permute.xlu0 0
  %1096 = vperm.xlu0 %1095, %v643
  %v1097 = vpop.permute.xlu0 %1096
  %1098 = vset.pattern.permute.xlu0 0
  %1099 = vperm.xlu0 %1098, %v644
  %v1100 = vpop.permute.xlu0 %1099
  %1101 = vset.pattern.permute.xlu0 0
  %1102 = vperm.xlu0 %1101, %v645
  %v1103 = vpop.permute.xlu0 %1102
  %1104 = vset.pattern.permute.xlu0 0
  %1105 = vperm.xlu0 %1104, %v646
  %v1106 = vpop.permute.xlu0 %1105
  %1107 = vset.pattern.permute.xlu0 0
  %1108 = vperm.xlu0 %1107, %v647
  %v1109 = vpop.permute.xlu0 %1108
  %1110 = vset.pattern.permute.xlu0 0
  %1111 = vperm.xlu0 %1110, %v648
  %v1112 = vpop.permute.xlu0 %1111
  %1113 = vset.pattern.permute.xlu0 0
  %1114 = vperm.xlu0 %1113, %v649
  %v1115 = vpop.permute.xlu0 %1114
  %1116 = vset.pattern.permute.xlu0 0
  %1117 = vperm.xlu0 %1116, %v650
  %v1118 = vpop.permute.xlu0 %1117
  %1119 = vset.pattern.permute.xlu0 0
  %1120 = vperm.xlu0 %1119, %v651
  %v1121 = vpop.permute.xlu0 %1120
  %1122 = vset.pattern.permute.xlu0 0
  %1123 = vperm.xlu0 %1122, %v652
  %v1124 = vpop.permute.xlu0 %1123
  %1125 = vset.pattern.permute.xlu0 0
  %1126 = vperm.xlu0 %1125, %v653
  %v1127 = vpop.permute.xlu0 %1126
  %1128 = vset.pattern.permute.xlu0 0
  %1129 = vperm.xlu0 %1128, %v654
  %v1130 = vpop.permute.xlu0 %1129
  %1131 = vset.pattern.permute.xlu0 0
  %1132 = vperm.xlu0 %1131, %v655
  %v1133 = vpop.permute.xlu0 %1132
  %1134 = vset.pattern.permute.xlu0 0
  %1135 = vperm.xlu0 %1134, %v656
  %v1136 = vpop.permute.xlu0 %1135
  %1137 = vset.pattern.permute.xlu0 0
  %1138 = vperm.xlu0 %1137, %v657
  %v1139 = vpop.permute.xlu0 %1138
  %1140 = vset.pattern.permute.xlu0 0
  %1141 = vperm.xlu0 %1140, %v658
  %v1142 = vpop.permute.xlu0 %1141
  %1143 = vset.pattern.permute.xlu0 0
  %1144 = vperm.xlu0 %1143, %v659
  %v1145 = vpop.permute.xlu0 %1144
  %1146 = vset.pattern.permute.xlu0 0
  %1147 = vperm.xlu0 %1146, %v660
  %v1148 = vpop.permute.xlu0 %1147
  %1149 = vset.pattern.permute.xlu0 0
  %1150 = vperm.xlu0 %1149, %v661
  %v1151 = vpop.permute.xlu0 %1150
  %1152 = vset.pattern.permute.xlu0 0
  %1153 = vperm.xlu0 %1152, %v662
  %v1154 = vpop.permute.xlu0 %1153
  %1155 = vset.pattern.permute.xlu0 0
  %1156 = vperm.xlu0 %1155, %v663
  %v1157 = vpop.permute.xlu0 %1156
  %1158 = vset.pattern.permute.xlu0 0
  %1159 = vperm.xlu0 %1158, %v664
  %v1160 = vpop.permute.xlu0 %1159
  %1161 = vset.pattern.permute.xlu0 0
  %1162 = vperm.xlu0 %1161, %v665
  %v1163 = vpop.permute.xlu0 %1162
  %1164 = vset.pattern.permute.xlu0 0
  %1165 = vperm.xlu0 %1164, %v666
  %v1166 = vpop.permute.xlu0 %1165
  %1167 = vset.pattern.permute.xlu0 0
  %1168 = vperm.xlu0 %1167, %v667
  %v1169 = vpop.permute.xlu0 %1168
  %1170 = vset.pattern.permute.xlu0 0
  %1171 = vperm.xlu0 %1170, %v668
  %v1172 = vpop.permute.xlu0 %1171
  %1173 = vset.pattern.permute.xlu0 0
  %1174 = vperm.xlu0 %1173, %v669
  %v1175 = vpop.permute.xlu0 %1174
  %1176 = vset.pattern.permute.xlu0 0
  %1177 = vperm.xlu0 %1176, %v670
  %v1178 = vpop.permute.xlu0 %1177
  %1179 = vset.pattern.permute.xlu0 0
  %1180 = vperm.xlu0 %1179, %v671
  %v1181 = vpop.permute.xlu0 %1180
  %1182 = vset.pattern.permute.xlu0 0
  %1183 = vperm.xlu0 %1182, %v672
  %v1184 = vpop.permute.xlu0 %1183
  %v1185 = vlaneseq
  %v1186 = vshrl.u32 %v1185, 7
  %v1187 = vsub.s32 %v36, %v1186
  %v1188 = vrot.slane %v803, %v1187
  %v1189 = vadd.s32 %v36, 4294967288
  %v1190 = vlaneseq
  %v1191 = vshrl.u32 %v1190, 7
  %v1192 = vsub.s32 %v1189, %v1191
  %v1193 = vrot.slane %v806, %v1192
  %vm1194 = vcmask 130112
  %v1195 = vsel %vm1194, %v1193, %v1188
  %v1196 = vadd.s32 %v36, 4294967280
  %v1197 = vlaneseq
  %v1198 = vshrl.u32 %v1197, 7
  %v1199 = vsub.s32 %v1196, %v1198
  %v1200 = vrot.slane %v809, %v1199
  %vm1201 = vcmask 195712
  %v1202 = vsel %vm1201, %v1200, %v1195
  %v1203 = vadd.s32 %v36, 4294967272
  %v1204 = vlaneseq
  %v1205 = vshrl.u32 %v1204, 7
  %v1206 = vsub.s32 %v1203, %v1205
  %v1207 = vrot.slane %v812, %v1206
  %vm1208 = vcmask 261312
  %v1209 = vsel %vm1208, %v1207, %v1202
  %v1210 = vadd.s32 %v36, 4294967264
  %v1211 = vlaneseq
  %v1212 = vshrl.u32 %v1211, 7
  %v1213 = vsub.s32 %v1210, %v1212
  %v1214 = vrot.slane %v815, %v1213
  %vm1215 = vcmask 326912
  %v1216 = vsel %vm1215, %v1214, %v1209
  %v1217 = vadd.s32 %v36, 4294967256
  %v1218 = vlaneseq
  %v1219 = vshrl.u32 %v1218, 7
  %v1220 = vsub.s32 %v1217, %v1219
  %v1221 = vrot.slane %v818, %v1220
  %vm1222 = vcmask 392512
  %v1223 = vsel %vm1222, %v1221, %v1216
  %v1224 = vadd.s32 %v36, 4294967248
  %v1225 = vlaneseq
  %v1226 = vshrl.u32 %v1225, 7
  %v1227 = vsub.s32 %v1224, %v1226
  %v1228 = vrot.slane %v821, %v1227
  %vm1229 = vcmask 458112
  %v1230 = vsel %vm1229, %v1228, %v1223
  %v1231 = vadd.s32 %v36, 4294967240
  %v1232 = vlaneseq
  %v1233 = vshrl.u32 %v1232, 7
  %v1234 = vsub.s32 %v1231, %v1233
  %v1235 = vrot.slane %v824, %v1234
  %vm1236 = vcmask 523712
  %v1237 = vsel %vm1236, %v1235, %v1230
  %v1238 = vadd.s32 %v36, 4294967232
  %v1239 = vlaneseq
  %v1240 = vshrl.u32 %v1239, 7
  %v1241 = vsub.s32 %v1238, %v1240
  %v1242 = vrot.slane %v827, %v1241
  %vm1243 = vcmask 589312
  %v1244 = vsel %vm1243, %v1242, %v1237
  %v1245 = vadd.s32 %v36, 4294967224
  %v1246 = vlaneseq
  %v1247 = vshrl.u32 %v1246, 7
  %v1248 = vsub.s32 %v1245, %v1247
  %v1249 = vrot.slane %v830, %v1248
  %vm1250 = vcmask 654912
  %v1251 = vsel %vm1250, %v1249, %v1244
  %v1252 = vadd.s32 %v36, 4294967216
  %v1253 = vlaneseq
  %v1254 = vshrl.u32 %v1253, 7
  %v1255 = vsub.s32 %v1252, %v1254
  %v1256 = vrot.slane %v833, %v1255
  %vm1257 = vcmask 720512
  %v1258 = vsel %vm1257, %v1256, %v1251
  %v1259 = vadd.s32 %v36, 4294967208
  %v1260 = vlaneseq
  %v1261 = vshrl.u32 %v1260, 7
  %v1262 = vsub.s32 %v1259, %v1261
  %v1263 = vrot.slane %v836, %v1262
  %vm1264 = vcmask 786112
  %v1265 = vsel %vm1264, %v1263, %v1258
  %v1266 = vadd.s32 %v36, 4294967200
  %v1267 = vlaneseq
  %v1268 = vshrl.u32 %v1267, 7
  %v1269 = vsub.s32 %v1266, %v1268
  %v1270 = vrot.slane %v839, %v1269
  %vm1271 = vcmask 851712
  %v1272 = vsel %vm1271, %v1270, %v1265
  %v1273 = vadd.s32 %v36, 4294967192
  %v1274 = vlaneseq
  %v1275 = vshrl.u32 %v1274, 7
  %v1276 = vsub.s32 %v1273, %v1275
  %v1277 = vrot.slane %v842, %v1276
  %vm1278 = vcmask 917312
  %v1279 = vsel %vm1278, %v1277, %v1272
  %v1280 = vadd.s32 %v36, 4294967184
  %v1281 = vlaneseq
  %v1282 = vshrl.u32 %v1281, 7
  %v1283 = vsub.s32 %v1280, %v1282
  %v1284 = vrot.slane %v845, %v1283
  %vm1285 = vcmask 982912
  %v1286 = vsel %vm1285, %v1284, %v1279
  %v1287 = vadd.s32 %v36, 4294967176
  %v1288 = vlaneseq
  %v1289 = vshrl.u32 %v1288, 7
  %v1290 = vsub.s32 %v1287, %v1289
  %v1291 = vrot.slane %v848, %v1290
  %vm1292 = vcmask 1048512
  %v1293 = vsel %vm1292, %v1291, %v1286
  %v1294 = vlaneseq
  %v1295 = vshrl.u32 %v1294, 7
  %v1296 = vsub.s32 %v36, %v1295
  %v1297 = vrot.slane %v851, %v1296
  %v1298 = vlaneseq
  %v1299 = vshrl.u32 %v1298, 7
  %v1300 = vsub.s32 %v1189, %v1299
  %v1301 = vrot.slane %v854, %v1300
  %v1302 = vsel %vm1194, %v1301, %v1297
  %v1303 = vlaneseq
  %v1304 = vshrl.u32 %v1303, 7
  %v1305 = vsub.s32 %v1196, %v1304
  %v1306 = vrot.slane %v857, %v1305
  %v1307 = vsel %vm1201, %v1306, %v1302
  %v1308 = vlaneseq
  %v1309 = vshrl.u32 %v1308, 7
  %v1310 = vsub.s32 %v1203, %v1309
  %v1311 = vrot.slane %v860, %v1310
  %v1312 = vsel %vm1208, %v1311, %v1307
  %v1313 = vlaneseq
  %v1314 = vshrl.u32 %v1313, 7
  %v1315 = vsub.s32 %v1210, %v1314
  %v1316 = vrot.slane %v863, %v1315
  %v1317 = vsel %vm1215, %v1316, %v1312
  %v1318 = vlaneseq
  %v1319 = vshrl.u32 %v1318, 7
  %v1320 = vsub.s32 %v1217, %v1319
  %v1321 = vrot.slane %v866, %v1320
  %v1322 = vsel %vm1222, %v1321, %v1317
  %v1323 = vlaneseq
  %v1324 = vshrl.u32 %v1323, 7
  %v1325 = vsub.s32 %v1224, %v1324
  %v1326 = vrot.slane %v869, %v1325
  %v1327 = vsel %vm1229, %v1326, %v1322
  %v1328 = vlaneseq
  %v1329 = vshrl.u32 %v1328, 7
  %v1330 = vsub.s32 %v1231, %v1329
  %v1331 = vrot.slane %v872, %v1330
  %v1332 = vsel %vm1236, %v1331, %v1327
  %v1333 = vlaneseq
  %v1334 = vshrl.u32 %v1333, 7
  %v1335 = vsub.s32 %v1238, %v1334
  %v1336 = vrot.slane %v875, %v1335
  %v1337 = vsel %vm1243, %v1336, %v1332
  %v1338 = vlaneseq
  %v1339 = vshrl.u32 %v1338, 7
  %v1340 = vsub.s32 %v1245, %v1339
  %v1341 = vrot.slane %v878, %v1340
  %v1342 = vsel %vm1250, %v1341, %v1337
  %v1343 = vlaneseq
  %v1344 = vshrl.u32 %v1343, 7
  %v1345 = vsub.s32 %v1252, %v1344
  %v1346 = vrot.slane %v881, %v1345
  %v1347 = vsel %vm1257, %v1346, %v1342
  %v1348 = vlaneseq
  %v1349 = vshrl.u32 %v1348, 7
  %v1350 = vsub.s32 %v1259, %v1349
  %v1351 = vrot.slane %v884, %v1350
  %v1352 = vsel %vm1264, %v1351, %v1347
  %v1353 = vlaneseq
  %v1354 = vshrl.u32 %v1353, 7
  %v1355 = vsub.s32 %v1266, %v1354
  %v1356 = vrot.slane %v887, %v1355
  %v1357 = vsel %vm1271, %v1356, %v1352
  %v1358 = vlaneseq
  %v1359 = vshrl.u32 %v1358, 7
  %v1360 = vsub.s32 %v1273, %v1359
  %v1361 = vrot.slane %v890, %v1360
  %v1362 = vsel %vm1278, %v1361, %v1357
  %v1363 = vlaneseq
  %v1364 = vshrl.u32 %v1363, 7
  %v1365 = vsub.s32 %v1280, %v1364
  %v1366 = vrot.slane %v893, %v1365
  %v1367 = vsel %vm1285, %v1366, %v1362
  %v1368 = vlaneseq
  %v1369 = vshrl.u32 %v1368, 7
  %v1370 = vsub.s32 %v1287, %v1369
  %v1371 = vrot.slane %v896, %v1370
  %v1372 = vsel %vm1292, %v1371, %v1367
  %v1373 = vlaneseq
  %v1374 = vshrl.u32 %v1373, 7
  %v1375 = vsub.s32 %v36, %v1374
  %v1376 = vrot.slane %v899, %v1375
  %v1377 = vlaneseq
  %v1378 = vshrl.u32 %v1377, 7
  %v1379 = vsub.s32 %v1189, %v1378
  %v1380 = vrot.slane %v902, %v1379
  %v1381 = vsel %vm1194, %v1380, %v1376
  %v1382 = vlaneseq
  %v1383 = vshrl.u32 %v1382, 7
  %v1384 = vsub.s32 %v1196, %v1383
  %v1385 = vrot.slane %v905, %v1384
  %v1386 = vsel %vm1201, %v1385, %v1381
  %v1387 = vlaneseq
  %v1388 = vshrl.u32 %v1387, 7
  %v1389 = vsub.s32 %v1203, %v1388
  %v1390 = vrot.slane %v908, %v1389
  %v1391 = vsel %vm1208, %v1390, %v1386
  %v1392 = vlaneseq
  %v1393 = vshrl.u32 %v1392, 7
  %v1394 = vsub.s32 %v1210, %v1393
  %v1395 = vrot.slane %v911, %v1394
  %v1396 = vsel %vm1215, %v1395, %v1391
  %v1397 = vlaneseq
  %v1398 = vshrl.u32 %v1397, 7
  %v1399 = vsub.s32 %v1217, %v1398
  %v1400 = vrot.slane %v914, %v1399
  %v1401 = vsel %vm1222, %v1400, %v1396
  %v1402 = vlaneseq
  %v1403 = vshrl.u32 %v1402, 7
  %v1404 = vsub.s32 %v1224, %v1403
  %v1405 = vrot.slane %v917, %v1404
  %v1406 = vsel %vm1229, %v1405, %v1401
  %v1407 = vlaneseq
  %v1408 = vshrl.u32 %v1407, 7
  %v1409 = vsub.s32 %v1231, %v1408
  %v1410 = vrot.slane %v920, %v1409
  %v1411 = vsel %vm1236, %v1410, %v1406
  %v1412 = vlaneseq
  %v1413 = vshrl.u32 %v1412, 7
  %v1414 = vsub.s32 %v1238, %v1413
  %v1415 = vrot.slane %v923, %v1414
  %v1416 = vsel %vm1243, %v1415, %v1411
  %v1417 = vlaneseq
  %v1418 = vshrl.u32 %v1417, 7
  %v1419 = vsub.s32 %v1245, %v1418
  %v1420 = vrot.slane %v926, %v1419
  %v1421 = vsel %vm1250, %v1420, %v1416
  %v1422 = vlaneseq
  %v1423 = vshrl.u32 %v1422, 7
  %v1424 = vsub.s32 %v1252, %v1423
  %v1425 = vrot.slane %v929, %v1424
  %v1426 = vsel %vm1257, %v1425, %v1421
  %v1427 = vlaneseq
  %v1428 = vshrl.u32 %v1427, 7
  %v1429 = vsub.s32 %v1259, %v1428
  %v1430 = vrot.slane %v932, %v1429
  %v1431 = vsel %vm1264, %v1430, %v1426
  %v1432 = vlaneseq
  %v1433 = vshrl.u32 %v1432, 7
  %v1434 = vsub.s32 %v1266, %v1433
  %v1435 = vrot.slane %v935, %v1434
  %v1436 = vsel %vm1271, %v1435, %v1431
  %v1437 = vlaneseq
  %v1438 = vshrl.u32 %v1437, 7
  %v1439 = vsub.s32 %v1273, %v1438
  %v1440 = vrot.slane %v938, %v1439
  %v1441 = vsel %vm1278, %v1440, %v1436
  %v1442 = vlaneseq
  %v1443 = vshrl.u32 %v1442, 7
  %v1444 = vsub.s32 %v1280, %v1443
  %v1445 = vrot.slane %v941, %v1444
  %v1446 = vsel %vm1285, %v1445, %v1441
  %v1447 = vlaneseq
  %v1448 = vshrl.u32 %v1447, 7
  %v1449 = vsub.s32 %v1287, %v1448
  %v1450 = vrot.slane %v944, %v1449
  %v1451 = vsel %vm1292, %v1450, %v1446
  %v1452 = vlaneseq
  %v1453 = vshrl.u32 %v1452, 7
  %v1454 = vsub.s32 %v36, %v1453
  %v1455 = vrot.slane %v947, %v1454
  %v1456 = vlaneseq
  %v1457 = vshrl.u32 %v1456, 7
  %v1458 = vsub.s32 %v1189, %v1457
  %v1459 = vrot.slane %v950, %v1458
  %v1460 = vsel %vm1194, %v1459, %v1455
  %v1461 = vlaneseq
  %v1462 = vshrl.u32 %v1461, 7
  %v1463 = vsub.s32 %v1196, %v1462
  %v1464 = vrot.slane %v953, %v1463
  %v1465 = vsel %vm1201, %v1464, %v1460
  %v1466 = vlaneseq
  %v1467 = vshrl.u32 %v1466, 7
  %v1468 = vsub.s32 %v1203, %v1467
  %v1469 = vrot.slane %v956, %v1468
  %v1470 = vsel %vm1208, %v1469, %v1465
  %v1471 = vlaneseq
  %v1472 = vshrl.u32 %v1471, 7
  %v1473 = vsub.s32 %v1210, %v1472
  %v1474 = vrot.slane %v959, %v1473
  %v1475 = vsel %vm1215, %v1474, %v1470
  %v1476 = vlaneseq
  %v1477 = vshrl.u32 %v1476, 7
  %v1478 = vsub.s32 %v1217, %v1477
  %v1479 = vrot.slane %v962, %v1478
  %v1480 = vsel %vm1222, %v1479, %v1475
  %v1481 = vlaneseq
  %v1482 = vshrl.u32 %v1481, 7
  %v1483 = vsub.s32 %v1224, %v1482
  %v1484 = vrot.slane %v965, %v1483
  %v1485 = vsel %vm1229, %v1484, %v1480
  %v1486 = vlaneseq
  %v1487 = vshrl.u32 %v1486, 7
  %v1488 = vsub.s32 %v1231, %v1487
  %v1489 = vrot.slane %v968, %v1488
  %v1490 = vsel %vm1236, %v1489, %v1485
  %v1491 = vlaneseq
  %v1492 = vshrl.u32 %v1491, 7
  %v1493 = vsub.s32 %v1238, %v1492
  %v1494 = vrot.slane %v971, %v1493
  %v1495 = vsel %vm1243, %v1494, %v1490
  %v1496 = vlaneseq
  %v1497 = vshrl.u32 %v1496, 7
  %v1498 = vsub.s32 %v1245, %v1497
  %v1499 = vrot.slane %v974, %v1498
  %v1500 = vsel %vm1250, %v1499, %v1495
  %v1501 = vlaneseq
  %v1502 = vshrl.u32 %v1501, 7
  %v1503 = vsub.s32 %v1252, %v1502
  %v1504 = vrot.slane %v977, %v1503
  %v1505 = vsel %vm1257, %v1504, %v1500
  %v1506 = vlaneseq
  %v1507 = vshrl.u32 %v1506, 7
  %v1508 = vsub.s32 %v1259, %v1507
  %v1509 = vrot.slane %v980, %v1508
  %v1510 = vsel %vm1264, %v1509, %v1505
  %v1511 = vlaneseq
  %v1512 = vshrl.u32 %v1511, 7
  %v1513 = vsub.s32 %v1266, %v1512
  %v1514 = vrot.slane %v983, %v1513
  %v1515 = vsel %vm1271, %v1514, %v1510
  %v1516 = vlaneseq
  %v1517 = vshrl.u32 %v1516, 7
  %v1518 = vsub.s32 %v1273, %v1517
  %v1519 = vrot.slane %v986, %v1518
  %v1520 = vsel %vm1278, %v1519, %v1515
  %v1521 = vlaneseq
  %v1522 = vshrl.u32 %v1521, 7
  %v1523 = vsub.s32 %v1280, %v1522
  %v1524 = vrot.slane %v989, %v1523
  %v1525 = vsel %vm1285, %v1524, %v1520
  %v1526 = vlaneseq
  %v1527 = vshrl.u32 %v1526, 7
  %v1528 = vsub.s32 %v1287, %v1527
  %v1529 = vrot.slane %v992, %v1528
  %v1530 = vsel %vm1292, %v1529, %v1525
  %v1531 = vlaneseq
  %v1532 = vshrl.u32 %v1531, 7
  %v1533 = vsub.s32 %v36, %v1532
  %v1534 = vrot.slane %v995, %v1533
  %v1535 = vlaneseq
  %v1536 = vshrl.u32 %v1535, 7
  %v1537 = vsub.s32 %v1189, %v1536
  %v1538 = vrot.slane %v998, %v1537
  %v1539 = vsel %vm1194, %v1538, %v1534
  %v1540 = vlaneseq
  %v1541 = vshrl.u32 %v1540, 7
  %v1542 = vsub.s32 %v1196, %v1541
  %v1543 = vrot.slane %v1001, %v1542
  %v1544 = vsel %vm1201, %v1543, %v1539
  %v1545 = vlaneseq
  %v1546 = vshrl.u32 %v1545, 7
  %v1547 = vsub.s32 %v1203, %v1546
  %v1548 = vrot.slane %v1004, %v1547
  %v1549 = vsel %vm1208, %v1548, %v1544
  %v1550 = vlaneseq
  %v1551 = vshrl.u32 %v1550, 7
  %v1552 = vsub.s32 %v1210, %v1551
  %v1553 = vrot.slane %v1007, %v1552
  %v1554 = vsel %vm1215, %v1553, %v1549
  %v1555 = vlaneseq
  %v1556 = vshrl.u32 %v1555, 7
  %v1557 = vsub.s32 %v1217, %v1556
  %v1558 = vrot.slane %v1010, %v1557
  %v1559 = vsel %vm1222, %v1558, %v1554
  %v1560 = vlaneseq
  %v1561 = vshrl.u32 %v1560, 7
  %v1562 = vsub.s32 %v1224, %v1561
  %v1563 = vrot.slane %v1013, %v1562
  %v1564 = vsel %vm1229, %v1563, %v1559
  %v1565 = vlaneseq
  %v1566 = vshrl.u32 %v1565, 7
  %v1567 = vsub.s32 %v1231, %v1566
  %v1568 = vrot.slane %v1016, %v1567
  %v1569 = vsel %vm1236, %v1568, %v1564
  %v1570 = vlaneseq
  %v1571 = vshrl.u32 %v1570, 7
  %v1572 = vsub.s32 %v1238, %v1571
  %v1573 = vrot.slane %v1019, %v1572
  %v1574 = vsel %vm1243, %v1573, %v1569
  %v1575 = vlaneseq
  %v1576 = vshrl.u32 %v1575, 7
  %v1577 = vsub.s32 %v1245, %v1576
  %v1578 = vrot.slane %v1022, %v1577
  %v1579 = vsel %vm1250, %v1578, %v1574
  %v1580 = vlaneseq
  %v1581 = vshrl.u32 %v1580, 7
  %v1582 = vsub.s32 %v1252, %v1581
  %v1583 = vrot.slane %v1025, %v1582
  %v1584 = vsel %vm1257, %v1583, %v1579
  %v1585 = vlaneseq
  %v1586 = vshrl.u32 %v1585, 7
  %v1587 = vsub.s32 %v1259, %v1586
  %v1588 = vrot.slane %v1028, %v1587
  %v1589 = vsel %vm1264, %v1588, %v1584
  %v1590 = vlaneseq
  %v1591 = vshrl.u32 %v1590, 7
  %v1592 = vsub.s32 %v1266, %v1591
  %v1593 = vrot.slane %v1031, %v1592
  %v1594 = vsel %vm1271, %v1593, %v1589
  %v1595 = vlaneseq
  %v1596 = vshrl.u32 %v1595, 7
  %v1597 = vsub.s32 %v1273, %v1596
  %v1598 = vrot.slane %v1034, %v1597
  %v1599 = vsel %vm1278, %v1598, %v1594
  %v1600 = vlaneseq
  %v1601 = vshrl.u32 %v1600, 7
  %v1602 = vsub.s32 %v1280, %v1601
  %v1603 = vrot.slane %v1037, %v1602
  %v1604 = vsel %vm1285, %v1603, %v1599
  %v1605 = vlaneseq
  %v1606 = vshrl.u32 %v1605, 7
  %v1607 = vsub.s32 %v1287, %v1606
  %v1608 = vrot.slane %v1040, %v1607
  %v1609 = vsel %vm1292, %v1608, %v1604
  %v1610 = vlaneseq
  %v1611 = vshrl.u32 %v1610, 7
  %v1612 = vsub.s32 %v36, %v1611
  %v1613 = vrot.slane %v1043, %v1612
  %v1614 = vlaneseq
  %v1615 = vshrl.u32 %v1614, 7
  %v1616 = vsub.s32 %v1189, %v1615
  %v1617 = vrot.slane %v1046, %v1616
  %v1618 = vsel %vm1194, %v1617, %v1613
  %v1619 = vlaneseq
  %v1620 = vshrl.u32 %v1619, 7
  %v1621 = vsub.s32 %v1196, %v1620
  %v1622 = vrot.slane %v1049, %v1621
  %v1623 = vsel %vm1201, %v1622, %v1618
  %v1624 = vlaneseq
  %v1625 = vshrl.u32 %v1624, 7
  %v1626 = vsub.s32 %v1203, %v1625
  %v1627 = vrot.slane %v1052, %v1626
  %v1628 = vsel %vm1208, %v1627, %v1623
  %v1629 = vlaneseq
  %v1630 = vshrl.u32 %v1629, 7
  %v1631 = vsub.s32 %v1210, %v1630
  %v1632 = vrot.slane %v1055, %v1631
  %v1633 = vsel %vm1215, %v1632, %v1628
  %v1634 = vlaneseq
  %v1635 = vshrl.u32 %v1634, 7
  %v1636 = vsub.s32 %v1217, %v1635
  %v1637 = vrot.slane %v1058, %v1636
  %v1638 = vsel %vm1222, %v1637, %v1633
  %v1639 = vlaneseq
  %v1640 = vshrl.u32 %v1639, 7
  %v1641 = vsub.s32 %v1224, %v1640
  %v1642 = vrot.slane %v1061, %v1641
  %v1643 = vsel %vm1229, %v1642, %v1638
  %v1644 = vlaneseq
  %v1645 = vshrl.u32 %v1644, 7
  %v1646 = vsub.s32 %v1231, %v1645
  %v1647 = vrot.slane %v1064, %v1646
  %v1648 = vsel %vm1236, %v1647, %v1643
  %v1649 = vlaneseq
  %v1650 = vshrl.u32 %v1649, 7
  %v1651 = vsub.s32 %v1238, %v1650
  %v1652 = vrot.slane %v1067, %v1651
  %v1653 = vsel %vm1243, %v1652, %v1648
  %v1654 = vlaneseq
  %v1655 = vshrl.u32 %v1654, 7
  %v1656 = vsub.s32 %v1245, %v1655
  %v1657 = vrot.slane %v1070, %v1656
  %v1658 = vsel %vm1250, %v1657, %v1653
  %v1659 = vlaneseq
  %v1660 = vshrl.u32 %v1659, 7
  %v1661 = vsub.s32 %v1252, %v1660
  %v1662 = vrot.slane %v1073, %v1661
  %v1663 = vsel %vm1257, %v1662, %v1658
  %v1664 = vlaneseq
  %v1665 = vshrl.u32 %v1664, 7
  %v1666 = vsub.s32 %v1259, %v1665
  %v1667 = vrot.slane %v1076, %v1666
  %v1668 = vsel %vm1264, %v1667, %v1663
  %v1669 = vlaneseq
  %v1670 = vshrl.u32 %v1669, 7
  %v1671 = vsub.s32 %v1266, %v1670
  %v1672 = vrot.slane %v1079, %v1671
  %v1673 = vsel %vm1271, %v1672, %v1668
  %v1674 = vlaneseq
  %v1675 = vshrl.u32 %v1674, 7
  %v1676 = vsub.s32 %v1273, %v1675
  %v1677 = vrot.slane %v1082, %v1676
  %v1678 = vsel %vm1278, %v1677, %v1673
  %v1679 = vlaneseq
  %v1680 = vshrl.u32 %v1679, 7
  %v1681 = vsub.s32 %v1280, %v1680
  %v1682 = vrot.slane %v1085, %v1681
  %v1683 = vsel %vm1285, %v1682, %v1678
  %v1684 = vlaneseq
  %v1685 = vshrl.u32 %v1684, 7
  %v1686 = vsub.s32 %v1287, %v1685
  %v1687 = vrot.slane %v1088, %v1686
  %v1688 = vsel %vm1292, %v1687, %v1683
  %v1689 = vlaneseq
  %v1690 = vshrl.u32 %v1689, 7
  %v1691 = vsub.s32 %v36, %v1690
  %v1692 = vrot.slane %v1091, %v1691
  %v1693 = vlaneseq
  %v1694 = vshrl.u32 %v1693, 7
  %v1695 = vsub.s32 %v1189, %v1694
  %v1696 = vrot.slane %v1094, %v1695
  %v1697 = vsel %vm1194, %v1696, %v1692
  %v1698 = vlaneseq
  %v1699 = vshrl.u32 %v1698, 7
  %v1700 = vsub.s32 %v1196, %v1699
  %v1701 = vrot.slane %v1097, %v1700
  %v1702 = vsel %vm1201, %v1701, %v1697
  %v1703 = vlaneseq
  %v1704 = vshrl.u32 %v1703, 7
  %v1705 = vsub.s32 %v1203, %v1704
  %v1706 = vrot.slane %v1100, %v1705
  %v1707 = vsel %vm1208, %v1706, %v1702
  %v1708 = vlaneseq
  %v1709 = vshrl.u32 %v1708, 7
  %v1710 = vsub.s32 %v1210, %v1709
  %v1711 = vrot.slane %v1103, %v1710
  %v1712 = vsel %vm1215, %v1711, %v1707
  %v1713 = vlaneseq
  %v1714 = vshrl.u32 %v1713, 7
  %v1715 = vsub.s32 %v1217, %v1714
  %v1716 = vrot.slane %v1106, %v1715
  %v1717 = vsel %vm1222, %v1716, %v1712
  %v1718 = vlaneseq
  %v1719 = vshrl.u32 %v1718, 7
  %v1720 = vsub.s32 %v1224, %v1719
  %v1721 = vrot.slane %v1109, %v1720
  %v1722 = vsel %vm1229, %v1721, %v1717
  %v1723 = vlaneseq
  %v1724 = vshrl.u32 %v1723, 7
  %v1725 = vsub.s32 %v1231, %v1724
  %v1726 = vrot.slane %v1112, %v1725
  %v1727 = vsel %vm1236, %v1726, %v1722
  %v1728 = vlaneseq
  %v1729 = vshrl.u32 %v1728, 7
  %v1730 = vsub.s32 %v1238, %v1729
  %v1731 = vrot.slane %v1115, %v1730
  %v1732 = vsel %vm1243, %v1731, %v1727
  %v1733 = vlaneseq
  %v1734 = vshrl.u32 %v1733, 7
  %v1735 = vsub.s32 %v1245, %v1734
  %v1736 = vrot.slane %v1118, %v1735
  %v1737 = vsel %vm1250, %v1736, %v1732
  %v1738 = vlaneseq
  %v1739 = vshrl.u32 %v1738, 7
  %v1740 = vsub.s32 %v1252, %v1739
  %v1741 = vrot.slane %v1121, %v1740
  %v1742 = vsel %vm1257, %v1741, %v1737
  %v1743 = vlaneseq
  %v1744 = vshrl.u32 %v1743, 7
  %v1745 = vsub.s32 %v1259, %v1744
  %v1746 = vrot.slane %v1124, %v1745
  %v1747 = vsel %vm1264, %v1746, %v1742
  %v1748 = vlaneseq
  %v1749 = vshrl.u32 %v1748, 7
  %v1750 = vsub.s32 %v1266, %v1749
  %v1751 = vrot.slane %v1127, %v1750
  %v1752 = vsel %vm1271, %v1751, %v1747
  %v1753 = vlaneseq
  %v1754 = vshrl.u32 %v1753, 7
  %v1755 = vsub.s32 %v1273, %v1754
  %v1756 = vrot.slane %v1130, %v1755
  %v1757 = vsel %vm1278, %v1756, %v1752
  %v1758 = vlaneseq
  %v1759 = vshrl.u32 %v1758, 7
  %v1760 = vsub.s32 %v1280, %v1759
  %v1761 = vrot.slane %v1133, %v1760
  %v1762 = vsel %vm1285, %v1761, %v1757
  %v1763 = vlaneseq
  %v1764 = vshrl.u32 %v1763, 7
  %v1765 = vsub.s32 %v1287, %v1764
  %v1766 = vrot.slane %v1136, %v1765
  %v1767 = vsel %vm1292, %v1766, %v1762
  %v1768 = vlaneseq
  %v1769 = vshrl.u32 %v1768, 7
  %v1770 = vsub.s32 %v36, %v1769
  %v1771 = vrot.slane %v1139, %v1770
  %v1772 = vlaneseq
  %v1773 = vshrl.u32 %v1772, 7
  %v1774 = vsub.s32 %v1189, %v1773
  %v1775 = vrot.slane %v1142, %v1774
  %v1776 = vsel %vm1194, %v1775, %v1771
  %v1777 = vlaneseq
  %v1778 = vshrl.u32 %v1777, 7
  %v1779 = vsub.s32 %v1196, %v1778
  %v1780 = vrot.slane %v1145, %v1779
  %v1781 = vsel %vm1201, %v1780, %v1776
  %v1782 = vlaneseq
  %v1783 = vshrl.u32 %v1782, 7
  %v1784 = vsub.s32 %v1203, %v1783
  %v1785 = vrot.slane %v1148, %v1784
  %v1786 = vsel %vm1208, %v1785, %v1781
  %v1787 = vlaneseq
  %v1788 = vshrl.u32 %v1787, 7
  %v1789 = vsub.s32 %v1210, %v1788
  %v1790 = vrot.slane %v1151, %v1789
  %v1791 = vsel %vm1215, %v1790, %v1786
  %v1792 = vlaneseq
  %v1793 = vshrl.u32 %v1792, 7
  %v1794 = vsub.s32 %v1217, %v1793
  %v1795 = vrot.slane %v1154, %v1794
  %v1796 = vsel %vm1222, %v1795, %v1791
  %v1797 = vlaneseq
  %v1798 = vshrl.u32 %v1797, 7
  %v1799 = vsub.s32 %v1224, %v1798
  %v1800 = vrot.slane %v1157, %v1799
  %v1801 = vsel %vm1229, %v1800, %v1796
  %v1802 = vlaneseq
  %v1803 = vshrl.u32 %v1802, 7
  %v1804 = vsub.s32 %v1231, %v1803
  %v1805 = vrot.slane %v1160, %v1804
  %v1806 = vsel %vm1236, %v1805, %v1801
  %v1807 = vlaneseq
  %v1808 = vshrl.u32 %v1807, 7
  %v1809 = vsub.s32 %v1238, %v1808
  %v1810 = vrot.slane %v1163, %v1809
  %v1811 = vsel %vm1243, %v1810, %v1806
  %v1812 = vlaneseq
  %v1813 = vshrl.u32 %v1812, 7
  %v1814 = vsub.s32 %v1245, %v1813
  %v1815 = vrot.slane %v1166, %v1814
  %v1816 = vsel %vm1250, %v1815, %v1811
  %v1817 = vlaneseq
  %v1818 = vshrl.u32 %v1817, 7
  %v1819 = vsub.s32 %v1252, %v1818
  %v1820 = vrot.slane %v1169, %v1819
  %v1821 = vsel %vm1257, %v1820, %v1816
  %v1822 = vlaneseq
  %v1823 = vshrl.u32 %v1822, 7
  %v1824 = vsub.s32 %v1259, %v1823
  %v1825 = vrot.slane %v1172, %v1824
  %v1826 = vsel %vm1264, %v1825, %v1821
  %v1827 = vlaneseq
  %v1828 = vshrl.u32 %v1827, 7
  %v1829 = vsub.s32 %v1266, %v1828
  %v1830 = vrot.slane %v1175, %v1829
  %v1831 = vsel %vm1271, %v1830, %v1826
  %v1832 = vlaneseq
  %v1833 = vshrl.u32 %v1832, 7
  %v1834 = vsub.s32 %v1273, %v1833
  %v1835 = vrot.slane %v1178, %v1834
  %v1836 = vsel %vm1278, %v1835, %v1831
  %v1837 = vlaneseq
  %v1838 = vshrl.u32 %v1837, 7
  %v1839 = vsub.s32 %v1280, %v1838
  %v1840 = vrot.slane %v1181, %v1839
  %v1841 = vsel %vm1285, %v1840, %v1836
  %v1842 = vlaneseq
  %v1843 = vshrl.u32 %v1842, 7
  %v1844 = vsub.s32 %v1287, %v1843
  %v1845 = vrot.slane %v1184, %v1844
  %v1846 = vsel %vm1292, %v1845, %v1841
  %v1847 = vsel %vm237, %v1372, %v1293
  %v1848 = vsel %vm239, %v1451, %v1847
  %v1849 = vsel %vm241, %v1530, %v1848
  %v1850 = vsel %vm243, %v1609, %v1849
  %v1851 = vsel %vm245, %v1688, %v1850
  %v1852 = vsel %vm247, %v1767, %v1851
  %v1853 = vsel %vm249, %v1846, %v1852
  %1855 = vmatprep.subr.mxu0 0.0
  %1856 = vmatpush1.msra.mxu0 %v322
  %1857 = vmatprep.subr.mxu0 0.0
  %1858 = vmatpush1.msra.mxu0 %v323
  %1859 = vmatprep.subr.mxu0 0.0
  %1860 = vmatpush1.msra.mxu0 %v324
  %1861 = vmatprep.subr.mxu0 0.0
  %1862 = vmatpush1.msra.mxu0 %v325
  %1863 = vmatprep.subr.mxu0 0.0
  %1864 = vmatpush1.msra.mxu0 %v326
  %1865 = vmatprep.subr.mxu0 0.0
  %1866 = vmatpush1.msra.mxu0 %v327
  %1867 = vmatprep.subr.mxu0 0.0
  %1868 = vmatpush1.msra.mxu0 %v328
  %1869 = vmatprep.subr.mxu0 0.0
  %1870 = vmatpush1.msra.mxu0 %v329
  %1871 = vmatprep.subr.mxu0 0.0
  %1872 = vmatpush1.msra.mxu0 %v330
  %1873 = vmatprep.subr.mxu0 0.0
  %1874 = vmatpush1.msra.mxu0 %v331
  %1875 = vmatprep.subr.mxu0 0.0
  %1876 = vmatpush1.msra.mxu0 %v332
  %1877 = vmatprep.subr.mxu0 0.0
  %1878 = vmatpush1.msra.mxu0 %v333
  %1879 = vmatprep.subr.mxu0 0.0
  %1880 = vmatpush1.msra.mxu0 %v334
  %1881 = vmatprep.subr.mxu0 0.0
  %1882 = vmatpush1.msra.mxu0 %v335
  %1883 = vmatprep.subr.mxu0 0.0
  %1884 = vmatpush1.msra.mxu0 %v336
  %1885 = vmatprep.subr.mxu0 0.0
  %1886 = vmatpush1.msra.mxu0 %v337
  %1887 = vmatprep.subr.mxu0 0.0
  %1888 = vmatpush1.msra.mxu0 0.0
  %1889 = vmatprep.subr.mxu0 0.0
  %1890 = vmatpush1.msra.mxu0 0.0
  %1891 = vmatprep.subr.mxu0 0.0
  %1892 = vmatpush1.msra.mxu0 0.0
  %1893 = vmatprep.subr.mxu0 0.0
  %1894 = vmatpush1.msra.mxu0 0.0
  %1895 = vmatprep.subr.mxu0 0.0
  %1896 = vmatpush1.msra.mxu0 0.0
  %1897 = vmatprep.subr.mxu0 0.0
  %1898 = vmatpush1.msra.mxu0 0.0
  %1899 = vmatprep.subr.mxu0 0.0
  %1900 = vmatpush1.msra.mxu0 0.0
  %1901 = vmatprep.subr.mxu0 0.0
  %1902 = vmatpush1.msra.mxu0 0.0
  %1903 = vmatprep.subr.mxu0 0.0
  %1904 = vmatpush1.msra.mxu0 0.0
  %1905 = vmatprep.subr.mxu0 0.0
  %1906 = vmatpush1.msra.mxu0 0.0
  %1907 = vmatprep.subr.mxu0 0.0
  %1908 = vmatpush1.msra.mxu0 0.0
  %1909 = vmatprep.subr.mxu0 0.0
  %1910 = vmatpush1.msra.mxu0 0.0
  %1911 = vmatprep.subr.mxu0 0.0
  %1912 = vmatpush1.msra.mxu0 0.0
  %1913 = vmatprep.subr.mxu0 0.0
  %1914 = vmatpush1.msra.mxu0 0.0
  %1915 = vmatprep.subr.mxu0 0.0
  %1916 = vmatpush1.msra.mxu0 0.0
  %1917 = vmatprep.subr.mxu0 0.0
  %1918 = vmatpush1.msra.mxu0 0.0
  %1919 = vmatprep.mubr.f32.mxu0 0.0
  %1920 = vmatmul.mubr.f32.gmra.mrb[0].mxu0 %v319
  %v1921 = vpop.f32.mrb[0].mxu0
  %v1922 = vadd.f32 %v1853, %v1921
  %v1923 = vpop.f32.mrb[0].mxu0
  %1924 = vdwg.mxu0
  %v1925 = vlaneseq
  %v1926 = vshrl.u32 %v1925, 7
  %v1927 = vsub.s32 1, %v1926
  %v1928 = vrot.slane %v420, %v1927
  %v1929 = vlaneseq
  %v1930 = vshrl.u32 %v1929, 7
  %v1931 = vsub.s32 1, %v1930
  %v1932 = vrot.slane %v421, %v1931
  %v1933 = vlaneseq
  %v1934 = vshrl.u32 %v1933, 7
  %v1935 = vsub.s32 1, %v1934
  %v1936 = vrot.slane %v422, %v1935
  %v1937 = vlaneseq
  %v1938 = vshrl.u32 %v1937, 7
  %v1939 = vsub.s32 1, %v1938
  %v1940 = vrot.slane %v423, %v1939
  %v1941 = vlaneseq
  %v1942 = vshrl.u32 %v1941, 7
  %v1943 = vsub.s32 1, %v1942
  %v1944 = vrot.slane %v424, %v1943
  %v1945 = vlaneseq
  %v1946 = vshrl.u32 %v1945, 7
  %v1947 = vsub.s32 1, %v1946
  %v1948 = vrot.slane %v425, %v1947
  %v1949 = vlaneseq
  %v1950 = vshrl.u32 %v1949, 7
  %v1951 = vsub.s32 1, %v1950
  %v1952 = vrot.slane %v426, %v1951
  %v1953 = vlaneseq
  %v1954 = vshrl.u32 %v1953, 7
  %v1955 = vsub.s32 1, %v1954
  %v1956 = vrot.slane %v427, %v1955
  %v1957 = vlaneseq
  %v1958 = vshrl.u32 %v1957, 7
  %v1959 = vsub.s32 1, %v1958
  %v1960 = vrot.slane %v428, %v1959
  %1963 = vbcast.lane.b32.xlu0 %v1960, 256
  %v1964 = vpop.permute.xlu0 %1963
  %s1966 = sor.u32 256, 8
  %1967 = vbcast.lane.b32.xlu0 %v1960, %s1966
  %v1968 = vpop.permute.xlu0 %1967
  %s1970 = sor.u32 256, 16
  %1971 = vbcast.lane.b32.xlu0 %v1960, %s1970
  %v1972 = vpop.permute.xlu0 %1971
  %s1974 = sor.u32 256, 24
  %1975 = vbcast.lane.b32.xlu0 %v1960, %s1974
  %v1976 = vpop.permute.xlu0 %1975
  %s1978 = sor.u32 256, 32
  %1979 = vbcast.lane.b32.xlu0 %v1960, %s1978
  %v1980 = vpop.permute.xlu0 %1979
  %s1982 = sor.u32 256, 40
  %1983 = vbcast.lane.b32.xlu0 %v1960, %s1982
  %v1984 = vpop.permute.xlu0 %1983
  %s1986 = sor.u32 256, 48
  %1987 = vbcast.lane.b32.xlu0 %v1960, %s1986
  %v1988 = vpop.permute.xlu0 %1987
  %s1990 = sor.u32 256, 56
  %1991 = vbcast.lane.b32.xlu0 %v1960, %s1990
  %v1992 = vpop.permute.xlu0 %1991
  %s1994 = sor.u32 256, 64
  %1995 = vbcast.lane.b32.xlu0 %v1960, %s1994
  %v1996 = vpop.permute.xlu0 %1995
  %s1998 = sor.u32 256, 72
  %1999 = vbcast.lane.b32.xlu0 %v1960, %s1998
  %v2000 = vpop.permute.xlu0 %1999
  %s2002 = sor.u32 256, 80
  %2003 = vbcast.lane.b32.xlu0 %v1960, %s2002
  %v2004 = vpop.permute.xlu0 %2003
  %s2006 = sor.u32 256, 88
  %2007 = vbcast.lane.b32.xlu0 %v1960, %s2006
  %v2008 = vpop.permute.xlu0 %2007
  %s2010 = sor.u32 256, 96
  %2011 = vbcast.lane.b32.xlu0 %v1960, %s2010
  %v2012 = vpop.permute.xlu0 %2011
  %s2014 = sor.u32 256, 104
  %2015 = vbcast.lane.b32.xlu0 %v1960, %s2014
  %v2016 = vpop.permute.xlu0 %2015
  %s2018 = sor.u32 256, 112
  %2019 = vbcast.lane.b32.xlu0 %v1960, %s2018
  %v2020 = vpop.permute.xlu0 %2019
  %s2022 = sor.u32 256, 120
  %2023 = vbcast.lane.b32.xlu0 %v1960, %s2022
  %v2024 = vpop.permute.xlu0 %2023
  %v2041 = vmul.f32 %v1928, %v1964
  %v2042 = vmul.f32 %v1928, %v1968
  %v2043 = vmul.f32 %v1928, %v1972
  %v2044 = vmul.f32 %v1928, %v1976
  %v2045 = vmul.f32 %v1928, %v1980
  %v2046 = vmul.f32 %v1928, %v1984
  %v2047 = vmul.f32 %v1928, %v1988
  %v2048 = vmul.f32 %v1928, %v1992
  %v2049 = vmul.f32 %v1928, %v1996
  %v2050 = vmul.f32 %v1928, %v2000
  %v2051 = vmul.f32 %v1928, %v2004
  %v2052 = vmul.f32 %v1928, %v2008
  %v2053 = vmul.f32 %v1928, %v2012
  %v2054 = vmul.f32 %v1928, %v2016
  %v2055 = vmul.f32 %v1928, %v2020
  %v2056 = vmul.f32 %v1928, %v2024
  %v2057 = vmul.f32 %v1932, %v1964
  %v2058 = vmul.f32 %v1932, %v1968
  %v2059 = vmul.f32 %v1932, %v1972
  %v2060 = vmul.f32 %v1932, %v1976
  %v2061 = vmul.f32 %v1932, %v1980
  %v2062 = vmul.f32 %v1932, %v1984
  %v2063 = vmul.f32 %v1932, %v1988
  %v2064 = vmul.f32 %v1932, %v1992
  %v2065 = vmul.f32 %v1932, %v1996
  %v2066 = vmul.f32 %v1932, %v2000
  %v2067 = vmul.f32 %v1932, %v2004
  %v2068 = vmul.f32 %v1932, %v2008
  %v2069 = vmul.f32 %v1932, %v2012
  %v2070 = vmul.f32 %v1932, %v2016
  %v2071 = vmul.f32 %v1932, %v2020
  %v2072 = vmul.f32 %v1932, %v2024
  %v2073 = vmul.f32 %v1936, %v1964
  %v2074 = vmul.f32 %v1936, %v1968
  %v2075 = vmul.f32 %v1936, %v1972
  %v2076 = vmul.f32 %v1936, %v1976
  %v2077 = vmul.f32 %v1936, %v1980
  %v2078 = vmul.f32 %v1936, %v1984
  %v2079 = vmul.f32 %v1936, %v1988
  %v2080 = vmul.f32 %v1936, %v1992
  %v2081 = vmul.f32 %v1936, %v1996
  %v2082 = vmul.f32 %v1936, %v2000
  %v2083 = vmul.f32 %v1936, %v2004
  %v2084 = vmul.f32 %v1936, %v2008
  %v2085 = vmul.f32 %v1936, %v2012
  %v2086 = vmul.f32 %v1936, %v2016
  %v2087 = vmul.f32 %v1936, %v2020
  %v2088 = vmul.f32 %v1936, %v2024
  %v2089 = vmul.f32 %v1940, %v1964
  %v2090 = vmul.f32 %v1940, %v1968
  %v2091 = vmul.f32 %v1940, %v1972
  %v2092 = vmul.f32 %v1940, %v1976
  %v2093 = vmul.f32 %v1940, %v1980
  %v2094 = vmul.f32 %v1940, %v1984
  %v2095 = vmul.f32 %v1940, %v1988
  %v2096 = vmul.f32 %v1940, %v1992
  %v2097 = vmul.f32 %v1940, %v1996
  %v2098 = vmul.f32 %v1940, %v2000
  %v2099 = vmul.f32 %v1940, %v2004
  %v2100 = vmul.f32 %v1940, %v2008
  %v2101 = vmul.f32 %v1940, %v2012
  %v2102 = vmul.f32 %v1940, %v2016
  %v2103 = vmul.f32 %v1940, %v2020
  %v2104 = vmul.f32 %v1940, %v2024
  %v2105 = vmul.f32 %v1944, %v1964
  %v2106 = vmul.f32 %v1944, %v1968
  %v2107 = vmul.f32 %v1944, %v1972
  %v2108 = vmul.f32 %v1944, %v1976
  %v2109 = vmul.f32 %v1944, %v1980
  %v2110 = vmul.f32 %v1944, %v1984
  %v2111 = vmul.f32 %v1944, %v1988
  %v2112 = vmul.f32 %v1944, %v1992
  %v2113 = vmul.f32 %v1944, %v1996
  %v2114 = vmul.f32 %v1944, %v2000
  %v2115 = vmul.f32 %v1944, %v2004
  %v2116 = vmul.f32 %v1944, %v2008
  %v2117 = vmul.f32 %v1944, %v2012
  %v2118 = vmul.f32 %v1944, %v2016
  %v2119 = vmul.f32 %v1944, %v2020
  %v2120 = vmul.f32 %v1944, %v2024
  %v2121 = vmul.f32 %v1948, %v1964
  %v2122 = vmul.f32 %v1948, %v1968
  %v2123 = vmul.f32 %v1948, %v1972
  %v2124 = vmul.f32 %v1948, %v1976
  %v2125 = vmul.f32 %v1948, %v1980
  %v2126 = vmul.f32 %v1948, %v1984
  %v2127 = vmul.f32 %v1948, %v1988
  %v2128 = vmul.f32 %v1948, %v1992
  %v2129 = vmul.f32 %v1948, %v1996
  %v2130 = vmul.f32 %v1948, %v2000
  %v2131 = vmul.f32 %v1948, %v2004
  %v2132 = vmul.f32 %v1948, %v2008
  %v2133 = vmul.f32 %v1948, %v2012
  %v2134 = vmul.f32 %v1948, %v2016
  %v2135 = vmul.f32 %v1948, %v2020
  %v2136 = vmul.f32 %v1948, %v2024
  %v2137 = vmul.f32 %v1952, %v1964
  %v2138 = vmul.f32 %v1952, %v1968
  %v2139 = vmul.f32 %v1952, %v1972
  %v2140 = vmul.f32 %v1952, %v1976
  %v2141 = vmul.f32 %v1952, %v1980
  %v2142 = vmul.f32 %v1952, %v1984
  %v2143 = vmul.f32 %v1952, %v1988
  %v2144 = vmul.f32 %v1952, %v1992
  %v2145 = vmul.f32 %v1952, %v1996
  %v2146 = vmul.f32 %v1952, %v2000
  %v2147 = vmul.f32 %v1952, %v2004
  %v2148 = vmul.f32 %v1952, %v2008
  %v2149 = vmul.f32 %v1952, %v2012
  %v2150 = vmul.f32 %v1952, %v2016
  %v2151 = vmul.f32 %v1952, %v2020
  %v2152 = vmul.f32 %v1952, %v2024
  %v2153 = vmul.f32 %v1956, %v1964
  %v2154 = vmul.f32 %v1956, %v1968
  %v2155 = vmul.f32 %v1956, %v1972
  %v2156 = vmul.f32 %v1956, %v1976
  %v2157 = vmul.f32 %v1956, %v1980
  %v2158 = vmul.f32 %v1956, %v1984
  %v2159 = vmul.f32 %v1956, %v1988
  %v2160 = vmul.f32 %v1956, %v1992
  %v2161 = vmul.f32 %v1956, %v1996
  %v2162 = vmul.f32 %v1956, %v2000
  %v2163 = vmul.f32 %v1956, %v2004
  %v2164 = vmul.f32 %v1956, %v2008
  %v2165 = vmul.f32 %v1956, %v2012
  %v2166 = vmul.f32 %v1956, %v2016
  %v2167 = vmul.f32 %v1956, %v2020
  %v2168 = vmul.f32 %v1956, %v2024
  %2297 = vset.pattern.permute.xlu0 0
  %2298 = vperm.xlu0 %2297, %v2041
  %v2299 = vpop.permute.xlu0 %2298
  %2300 = vset.pattern.permute.xlu0 0
  %2301 = vperm.xlu0 %2300, %v2042
  %v2302 = vpop.permute.xlu0 %2301
  %2303 = vset.pattern.permute.xlu0 0
  %2304 = vperm.xlu0 %2303, %v2043
  %v2305 = vpop.permute.xlu0 %2304
  %2306 = vset.pattern.permute.xlu0 0
  %2307 = vperm.xlu0 %2306, %v2044
  %v2308 = vpop.permute.xlu0 %2307
  %2309 = vset.pattern.permute.xlu0 0
  %2310 = vperm.xlu0 %2309, %v2045
  %v2311 = vpop.permute.xlu0 %2310
  %2312 = vset.pattern.permute.xlu0 0
  %2313 = vperm.xlu0 %2312, %v2046
  %v2314 = vpop.permute.xlu0 %2313
  %2315 = vset.pattern.permute.xlu0 0
  %2316 = vperm.xlu0 %2315, %v2047
  %v2317 = vpop.permute.xlu0 %2316
  %2318 = vset.pattern.permute.xlu0 0
  %2319 = vperm.xlu0 %2318, %v2048
  %v2320 = vpop.permute.xlu0 %2319
  %2321 = vset.pattern.permute.xlu0 0
  %2322 = vperm.xlu0 %2321, %v2049
  %v2323 = vpop.permute.xlu0 %2322
  %2324 = vset.pattern.permute.xlu0 0
  %2325 = vperm.xlu0 %2324, %v2050
  %v2326 = vpop.permute.xlu0 %2325
  %2327 = vset.pattern.permute.xlu0 0
  %2328 = vperm.xlu0 %2327, %v2051
  %v2329 = vpop.permute.xlu0 %2328
  %2330 = vset.pattern.permute.xlu0 0
  %2331 = vperm.xlu0 %2330, %v2052
  %v2332 = vpop.permute.xlu0 %2331
  %2333 = vset.pattern.permute.xlu0 0
  %2334 = vperm.xlu0 %2333, %v2053
  %v2335 = vpop.permute.xlu0 %2334
  %2336 = vset.pattern.permute.xlu0 0
  %2337 = vperm.xlu0 %2336, %v2054
  %v2338 = vpop.permute.xlu0 %2337
  %2339 = vset.pattern.permute.xlu0 0
  %2340 = vperm.xlu0 %2339, %v2055
  %v2341 = vpop.permute.xlu0 %2340
  %2342 = vset.pattern.permute.xlu0 0
  %2343 = vperm.xlu0 %2342, %v2056
  %v2344 = vpop.permute.xlu0 %2343
  %2345 = vset.pattern.permute.xlu0 0
  %2346 = vperm.xlu0 %2345, %v2057
  %v2347 = vpop.permute.xlu0 %2346
  %2348 = vset.pattern.permute.xlu0 0
  %2349 = vperm.xlu0 %2348, %v2058
  %v2350 = vpop.permute.xlu0 %2349
  %2351 = vset.pattern.permute.xlu0 0
  %2352 = vperm.xlu0 %2351, %v2059
  %v2353 = vpop.permute.xlu0 %2352
  %2354 = vset.pattern.permute.xlu0 0
  %2355 = vperm.xlu0 %2354, %v2060
  %v2356 = vpop.permute.xlu0 %2355
  %2357 = vset.pattern.permute.xlu0 0
  %2358 = vperm.xlu0 %2357, %v2061
  %v2359 = vpop.permute.xlu0 %2358
  %2360 = vset.pattern.permute.xlu0 0
  %2361 = vperm.xlu0 %2360, %v2062
  %v2362 = vpop.permute.xlu0 %2361
  %2363 = vset.pattern.permute.xlu0 0
  %2364 = vperm.xlu0 %2363, %v2063
  %v2365 = vpop.permute.xlu0 %2364
  %2366 = vset.pattern.permute.xlu0 0
  %2367 = vperm.xlu0 %2366, %v2064
  %v2368 = vpop.permute.xlu0 %2367
  %2369 = vset.pattern.permute.xlu0 0
  %2370 = vperm.xlu0 %2369, %v2065
  %v2371 = vpop.permute.xlu0 %2370
  %2372 = vset.pattern.permute.xlu0 0
  %2373 = vperm.xlu0 %2372, %v2066
  %v2374 = vpop.permute.xlu0 %2373
  %2375 = vset.pattern.permute.xlu0 0
  %2376 = vperm.xlu0 %2375, %v2067
  %v2377 = vpop.permute.xlu0 %2376
  %2378 = vset.pattern.permute.xlu0 0
  %2379 = vperm.xlu0 %2378, %v2068
  %v2380 = vpop.permute.xlu0 %2379
  %2381 = vset.pattern.permute.xlu0 0
  %2382 = vperm.xlu0 %2381, %v2069
  %v2383 = vpop.permute.xlu0 %2382
  %2384 = vset.pattern.permute.xlu0 0
  %2385 = vperm.xlu0 %2384, %v2070
  %v2386 = vpop.permute.xlu0 %2385
  %2387 = vset.pattern.permute.xlu0 0
  %2388 = vperm.xlu0 %2387, %v2071
  %v2389 = vpop.permute.xlu0 %2388
  %2390 = vset.pattern.permute.xlu0 0
  %2391 = vperm.xlu0 %2390, %v2072
  %v2392 = vpop.permute.xlu0 %2391
  %2393 = vset.pattern.permute.xlu0 0
  %2394 = vperm.xlu0 %2393, %v2073
  %v2395 = vpop.permute.xlu0 %2394
  %2396 = vset.pattern.permute.xlu0 0
  %2397 = vperm.xlu0 %2396, %v2074
  %v2398 = vpop.permute.xlu0 %2397
  %2399 = vset.pattern.permute.xlu0 0
  %2400 = vperm.xlu0 %2399, %v2075
  %v2401 = vpop.permute.xlu0 %2400
  %2402 = vset.pattern.permute.xlu0 0
  %2403 = vperm.xlu0 %2402, %v2076
  %v2404 = vpop.permute.xlu0 %2403
  %2405 = vset.pattern.permute.xlu0 0
  %2406 = vperm.xlu0 %2405, %v2077
  %v2407 = vpop.permute.xlu0 %2406
  %2408 = vset.pattern.permute.xlu0 0
  %2409 = vperm.xlu0 %2408, %v2078
  %v2410 = vpop.permute.xlu0 %2409
  %2411 = vset.pattern.permute.xlu0 0
  %2412 = vperm.xlu0 %2411, %v2079
  %v2413 = vpop.permute.xlu0 %2412
  %2414 = vset.pattern.permute.xlu0 0
  %2415 = vperm.xlu0 %2414, %v2080
  %v2416 = vpop.permute.xlu0 %2415
  %2417 = vset.pattern.permute.xlu0 0
  %2418 = vperm.xlu0 %2417, %v2081
  %v2419 = vpop.permute.xlu0 %2418
  %2420 = vset.pattern.permute.xlu0 0
  %2421 = vperm.xlu0 %2420, %v2082
  %v2422 = vpop.permute.xlu0 %2421
  %2423 = vset.pattern.permute.xlu0 0
  %2424 = vperm.xlu0 %2423, %v2083
  %v2425 = vpop.permute.xlu0 %2424
  %2426 = vset.pattern.permute.xlu0 0
  %2427 = vperm.xlu0 %2426, %v2084
  %v2428 = vpop.permute.xlu0 %2427
  %2429 = vset.pattern.permute.xlu0 0
  %2430 = vperm.xlu0 %2429, %v2085
  %v2431 = vpop.permute.xlu0 %2430
  %2432 = vset.pattern.permute.xlu0 0
  %2433 = vperm.xlu0 %2432, %v2086
  %v2434 = vpop.permute.xlu0 %2433
  %2435 = vset.pattern.permute.xlu0 0
  %2436 = vperm.xlu0 %2435, %v2087
  %v2437 = vpop.permute.xlu0 %2436
  %2438 = vset.pattern.permute.xlu0 0
  %2439 = vperm.xlu0 %2438, %v2088
  %v2440 = vpop.permute.xlu0 %2439
  %2441 = vset.pattern.permute.xlu0 0
  %2442 = vperm.xlu0 %2441, %v2089
  %v2443 = vpop.permute.xlu0 %2442
  %2444 = vset.pattern.permute.xlu0 0
  %2445 = vperm.xlu0 %2444, %v2090
  %v2446 = vpop.permute.xlu0 %2445
  %2447 = vset.pattern.permute.xlu0 0
  %2448 = vperm.xlu0 %2447, %v2091
  %v2449 = vpop.permute.xlu0 %2448
  %2450 = vset.pattern.permute.xlu0 0
  %2451 = vperm.xlu0 %2450, %v2092
  %v2452 = vpop.permute.xlu0 %2451
  %2453 = vset.pattern.permute.xlu0 0
  %2454 = vperm.xlu0 %2453, %v2093
  %v2455 = vpop.permute.xlu0 %2454
  %2456 = vset.pattern.permute.xlu0 0
  %2457 = vperm.xlu0 %2456, %v2094
  %v2458 = vpop.permute.xlu0 %2457
  %2459 = vset.pattern.permute.xlu0 0
  %2460 = vperm.xlu0 %2459, %v2095
  %v2461 = vpop.permute.xlu0 %2460
  %2462 = vset.pattern.permute.xlu0 0
  %2463 = vperm.xlu0 %2462, %v2096
  %v2464 = vpop.permute.xlu0 %2463
  %2465 = vset.pattern.permute.xlu0 0
  %2466 = vperm.xlu0 %2465, %v2097
  %v2467 = vpop.permute.xlu0 %2466
  %2468 = vset.pattern.permute.xlu0 0
  %2469 = vperm.xlu0 %2468, %v2098
  %v2470 = vpop.permute.xlu0 %2469
  %2471 = vset.pattern.permute.xlu0 0
  %2472 = vperm.xlu0 %2471, %v2099
  %v2473 = vpop.permute.xlu0 %2472
  %2474 = vset.pattern.permute.xlu0 0
  %2475 = vperm.xlu0 %2474, %v2100
  %v2476 = vpop.permute.xlu0 %2475
  %2477 = vset.pattern.permute.xlu0 0
  %2478 = vperm.xlu0 %2477, %v2101
  %v2479 = vpop.permute.xlu0 %2478
  %2480 = vset.pattern.permute.xlu0 0
  %2481 = vperm.xlu0 %2480, %v2102
  %v2482 = vpop.permute.xlu0 %2481
  %2483 = vset.pattern.permute.xlu0 0
  %2484 = vperm.xlu0 %2483, %v2103
  %v2485 = vpop.permute.xlu0 %2484
  %2486 = vset.pattern.permute.xlu0 0
  %2487 = vperm.xlu0 %2486, %v2104
  %v2488 = vpop.permute.xlu0 %2487
  %2489 = vset.pattern.permute.xlu0 0
  %2490 = vperm.xlu0 %2489, %v2105
  %v2491 = vpop.permute.xlu0 %2490
  %2492 = vset.pattern.permute.xlu0 0
  %2493 = vperm.xlu0 %2492, %v2106
  %v2494 = vpop.permute.xlu0 %2493
  %2495 = vset.pattern.permute.xlu0 0
  %2496 = vperm.xlu0 %2495, %v2107
  %v2497 = vpop.permute.xlu0 %2496
  %2498 = vset.pattern.permute.xlu0 0
  %2499 = vperm.xlu0 %2498, %v2108
  %v2500 = vpop.permute.xlu0 %2499
  %2501 = vset.pattern.permute.xlu0 0
  %2502 = vperm.xlu0 %2501, %v2109
  %v2503 = vpop.permute.xlu0 %2502
  %2504 = vset.pattern.permute.xlu0 0
  %2505 = vperm.xlu0 %2504, %v2110
  %v2506 = vpop.permute.xlu0 %2505
  %2507 = vset.pattern.permute.xlu0 0
  %2508 = vperm.xlu0 %2507, %v2111
  %v2509 = vpop.permute.xlu0 %2508
  %2510 = vset.pattern.permute.xlu0 0
  %2511 = vperm.xlu0 %2510, %v2112
  %v2512 = vpop.permute.xlu0 %2511
  %2513 = vset.pattern.permute.xlu0 0
  %2514 = vperm.xlu0 %2513, %v2113
  %v2515 = vpop.permute.xlu0 %2514
  %2516 = vset.pattern.permute.xlu0 0
  %2517 = vperm.xlu0 %2516, %v2114
  %v2518 = vpop.permute.xlu0 %2517
  %2519 = vset.pattern.permute.xlu0 0
  %2520 = vperm.xlu0 %2519, %v2115
  %v2521 = vpop.permute.xlu0 %2520
  %2522 = vset.pattern.permute.xlu0 0
  %2523 = vperm.xlu0 %2522, %v2116
  %v2524 = vpop.permute.xlu0 %2523
  %2525 = vset.pattern.permute.xlu0 0
  %2526 = vperm.xlu0 %2525, %v2117
  %v2527 = vpop.permute.xlu0 %2526
  %2528 = vset.pattern.permute.xlu0 0
  %2529 = vperm.xlu0 %2528, %v2118
  %v2530 = vpop.permute.xlu0 %2529
  %2531 = vset.pattern.permute.xlu0 0
  %2532 = vperm.xlu0 %2531, %v2119
  %v2533 = vpop.permute.xlu0 %2532
  %2534 = vset.pattern.permute.xlu0 0
  %2535 = vperm.xlu0 %2534, %v2120
  %v2536 = vpop.permute.xlu0 %2535
  %2537 = vset.pattern.permute.xlu0 0
  %2538 = vperm.xlu0 %2537, %v2121
  %v2539 = vpop.permute.xlu0 %2538
  %2540 = vset.pattern.permute.xlu0 0
  %2541 = vperm.xlu0 %2540, %v2122
  %v2542 = vpop.permute.xlu0 %2541
  %2543 = vset.pattern.permute.xlu0 0
  %2544 = vperm.xlu0 %2543, %v2123
  %v2545 = vpop.permute.xlu0 %2544
  %2546 = vset.pattern.permute.xlu0 0
  %2547 = vperm.xlu0 %2546, %v2124
  %v2548 = vpop.permute.xlu0 %2547
  %2549 = vset.pattern.permute.xlu0 0
  %2550 = vperm.xlu0 %2549, %v2125
  %v2551 = vpop.permute.xlu0 %2550
  %2552 = vset.pattern.permute.xlu0 0
  %2553 = vperm.xlu0 %2552, %v2126
  %v2554 = vpop.permute.xlu0 %2553
  %2555 = vset.pattern.permute.xlu0 0
  %2556 = vperm.xlu0 %2555, %v2127
  %v2557 = vpop.permute.xlu0 %2556
  %2558 = vset.pattern.permute.xlu0 0
  %2559 = vperm.xlu0 %2558, %v2128
  %v2560 = vpop.permute.xlu0 %2559
  %2561 = vset.pattern.permute.xlu0 0
  %2562 = vperm.xlu0 %2561, %v2129
  %v2563 = vpop.permute.xlu0 %2562
  %2564 = vset.pattern.permute.xlu0 0
  %2565 = vperm.xlu0 %2564, %v2130
  %v2566 = vpop.permute.xlu0 %2565
  %2567 = vset.pattern.permute.xlu0 0
  %2568 = vperm.xlu0 %2567, %v2131
  %v2569 = vpop.permute.xlu0 %2568
  %2570 = vset.pattern.permute.xlu0 0
  %2571 = vperm.xlu0 %2570, %v2132
  %v2572 = vpop.permute.xlu0 %2571
  %2573 = vset.pattern.permute.xlu0 0
  %2574 = vperm.xlu0 %2573, %v2133
  %v2575 = vpop.permute.xlu0 %2574
  %2576 = vset.pattern.permute.xlu0 0
  %2577 = vperm.xlu0 %2576, %v2134
  %v2578 = vpop.permute.xlu0 %2577
  %2579 = vset.pattern.permute.xlu0 0
  %2580 = vperm.xlu0 %2579, %v2135
  %v2581 = vpop.permute.xlu0 %2580
  %2582 = vset.pattern.permute.xlu0 0
  %2583 = vperm.xlu0 %2582, %v2136
  %v2584 = vpop.permute.xlu0 %2583
  %2585 = vset.pattern.permute.xlu0 0
  %2586 = vperm.xlu0 %2585, %v2137
  %v2587 = vpop.permute.xlu0 %2586
  %2588 = vset.pattern.permute.xlu0 0
  %2589 = vperm.xlu0 %2588, %v2138
  %v2590 = vpop.permute.xlu0 %2589
  %2591 = vset.pattern.permute.xlu0 0
  %2592 = vperm.xlu0 %2591, %v2139
  %v2593 = vpop.permute.xlu0 %2592
  %2594 = vset.pattern.permute.xlu0 0
  %2595 = vperm.xlu0 %2594, %v2140
  %v2596 = vpop.permute.xlu0 %2595
  %2597 = vset.pattern.permute.xlu0 0
  %2598 = vperm.xlu0 %2597, %v2141
  %v2599 = vpop.permute.xlu0 %2598
  %2600 = vset.pattern.permute.xlu0 0
  %2601 = vperm.xlu0 %2600, %v2142
  %v2602 = vpop.permute.xlu0 %2601
  %2603 = vset.pattern.permute.xlu0 0
  %2604 = vperm.xlu0 %2603, %v2143
  %v2605 = vpop.permute.xlu0 %2604
  %2606 = vset.pattern.permute.xlu0 0
  %2607 = vperm.xlu0 %2606, %v2144
  %v2608 = vpop.permute.xlu0 %2607
  %2609 = vset.pattern.permute.xlu0 0
  %2610 = vperm.xlu0 %2609, %v2145
  %v2611 = vpop.permute.xlu0 %2610
  %2612 = vset.pattern.permute.xlu0 0
  %2613 = vperm.xlu0 %2612, %v2146
  %v2614 = vpop.permute.xlu0 %2613
  %2615 = vset.pattern.permute.xlu0 0
  %2616 = vperm.xlu0 %2615, %v2147
  %v2617 = vpop.permute.xlu0 %2616
  %2618 = vset.pattern.permute.xlu0 0
  %2619 = vperm.xlu0 %2618, %v2148
  %v2620 = vpop.permute.xlu0 %2619
  %2621 = vset.pattern.permute.xlu0 0
  %2622 = vperm.xlu0 %2621, %v2149
  %v2623 = vpop.permute.xlu0 %2622
  %2624 = vset.pattern.permute.xlu0 0
  %2625 = vperm.xlu0 %2624, %v2150
  %v2626 = vpop.permute.xlu0 %2625
  %2627 = vset.pattern.permute.xlu0 0
  %2628 = vperm.xlu0 %2627, %v2151
  %v2629 = vpop.permute.xlu0 %2628
  %2630 = vset.pattern.permute.xlu0 0
  %2631 = vperm.xlu0 %2630, %v2152
  %v2632 = vpop.permute.xlu0 %2631
  %2633 = vset.pattern.permute.xlu0 0
  %2634 = vperm.xlu0 %2633, %v2153
  %v2635 = vpop.permute.xlu0 %2634
  %2636 = vset.pattern.permute.xlu0 0
  %2637 = vperm.xlu0 %2636, %v2154
  %v2638 = vpop.permute.xlu0 %2637
  %2639 = vset.pattern.permute.xlu0 0
  %2640 = vperm.xlu0 %2639, %v2155
  %v2641 = vpop.permute.xlu0 %2640
  %2642 = vset.pattern.permute.xlu0 0
  %2643 = vperm.xlu0 %2642, %v2156
  %v2644 = vpop.permute.xlu0 %2643
  %2645 = vset.pattern.permute.xlu0 0
  %2646 = vperm.xlu0 %2645, %v2157
  %v2647 = vpop.permute.xlu0 %2646
  %2648 = vset.pattern.permute.xlu0 0
  %2649 = vperm.xlu0 %2648, %v2158
  %v2650 = vpop.permute.xlu0 %2649
  %2651 = vset.pattern.permute.xlu0 0
  %2652 = vperm.xlu0 %2651, %v2159
  %v2653 = vpop.permute.xlu0 %2652
  %2654 = vset.pattern.permute.xlu0 0
  %2655 = vperm.xlu0 %2654, %v2160
  %v2656 = vpop.permute.xlu0 %2655
  %2657 = vset.pattern.permute.xlu0 0
  %2658 = vperm.xlu0 %2657, %v2161
  %v2659 = vpop.permute.xlu0 %2658
  %2660 = vset.pattern.permute.xlu0 0
  %2661 = vperm.xlu0 %2660, %v2162
  %v2662 = vpop.permute.xlu0 %2661
  %2663 = vset.pattern.permute.xlu0 0
  %2664 = vperm.xlu0 %2663, %v2163
  %v2665 = vpop.permute.xlu0 %2664
  %2666 = vset.pattern.permute.xlu0 0
  %2667 = vperm.xlu0 %2666, %v2164
  %v2668 = vpop.permute.xlu0 %2667
  %2669 = vset.pattern.permute.xlu0 0
  %2670 = vperm.xlu0 %2669, %v2165
  %v2671 = vpop.permute.xlu0 %2670
  %2672 = vset.pattern.permute.xlu0 0
  %2673 = vperm.xlu0 %2672, %v2166
  %v2674 = vpop.permute.xlu0 %2673
  %2675 = vset.pattern.permute.xlu0 0
  %2676 = vperm.xlu0 %2675, %v2167
  %v2677 = vpop.permute.xlu0 %2676
  %2678 = vset.pattern.permute.xlu0 0
  %2679 = vperm.xlu0 %2678, %v2168
  %v2680 = vpop.permute.xlu0 %2679
  %v2681 = vlaneseq
  %v2682 = vshrl.u32 %v2681, 7
  %v2683 = vsub.s32 %v36, %v2682
  %v2684 = vrot.slane %v2299, %v2683
  %v2685 = vlaneseq
  %v2686 = vshrl.u32 %v2685, 7
  %v2687 = vsub.s32 %v1189, %v2686
  %v2688 = vrot.slane %v2302, %v2687
  %v2689 = vsel %vm1194, %v2688, %v2684
  %v2690 = vlaneseq
  %v2691 = vshrl.u32 %v2690, 7
  %v2692 = vsub.s32 %v1196, %v2691
  %v2693 = vrot.slane %v2305, %v2692
  %v2694 = vsel %vm1201, %v2693, %v2689
  %v2695 = vlaneseq
  %v2696 = vshrl.u32 %v2695, 7
  %v2697 = vsub.s32 %v1203, %v2696
  %v2698 = vrot.slane %v2308, %v2697
  %v2699 = vsel %vm1208, %v2698, %v2694
  %v2700 = vlaneseq
  %v2701 = vshrl.u32 %v2700, 7
  %v2702 = vsub.s32 %v1210, %v2701
  %v2703 = vrot.slane %v2311, %v2702
  %v2704 = vsel %vm1215, %v2703, %v2699
  %v2705 = vlaneseq
  %v2706 = vshrl.u32 %v2705, 7
  %v2707 = vsub.s32 %v1217, %v2706
  %v2708 = vrot.slane %v2314, %v2707
  %v2709 = vsel %vm1222, %v2708, %v2704
  %v2710 = vlaneseq
  %v2711 = vshrl.u32 %v2710, 7
  %v2712 = vsub.s32 %v1224, %v2711
  %v2713 = vrot.slane %v2317, %v2712
  %v2714 = vsel %vm1229, %v2713, %v2709
  %v2715 = vlaneseq
  %v2716 = vshrl.u32 %v2715, 7
  %v2717 = vsub.s32 %v1231, %v2716
  %v2718 = vrot.slane %v2320, %v2717
  %v2719 = vsel %vm1236, %v2718, %v2714
  %v2720 = vlaneseq
  %v2721 = vshrl.u32 %v2720, 7
  %v2722 = vsub.s32 %v1238, %v2721
  %v2723 = vrot.slane %v2323, %v2722
  %v2724 = vsel %vm1243, %v2723, %v2719
  %v2725 = vlaneseq
  %v2726 = vshrl.u32 %v2725, 7
  %v2727 = vsub.s32 %v1245, %v2726
  %v2728 = vrot.slane %v2326, %v2727
  %v2729 = vsel %vm1250, %v2728, %v2724
  %v2730 = vlaneseq
  %v2731 = vshrl.u32 %v2730, 7
  %v2732 = vsub.s32 %v1252, %v2731
  %v2733 = vrot.slane %v2329, %v2732
  %v2734 = vsel %vm1257, %v2733, %v2729
  %v2735 = vlaneseq
  %v2736 = vshrl.u32 %v2735, 7
  %v2737 = vsub.s32 %v1259, %v2736
  %v2738 = vrot.slane %v2332, %v2737
  %v2739 = vsel %vm1264, %v2738, %v2734
  %v2740 = vlaneseq
  %v2741 = vshrl.u32 %v2740, 7
  %v2742 = vsub.s32 %v1266, %v2741
  %v2743 = vrot.slane %v2335, %v2742
  %v2744 = vsel %vm1271, %v2743, %v2739
  %v2745 = vlaneseq
  %v2746 = vshrl.u32 %v2745, 7
  %v2747 = vsub.s32 %v1273, %v2746
  %v2748 = vrot.slane %v2338, %v2747
  %v2749 = vsel %vm1278, %v2748, %v2744
  %v2750 = vlaneseq
  %v2751 = vshrl.u32 %v2750, 7
  %v2752 = vsub.s32 %v1280, %v2751
  %v2753 = vrot.slane %v2341, %v2752
  %v2754 = vsel %vm1285, %v2753, %v2749
  %v2755 = vlaneseq
  %v2756 = vshrl.u32 %v2755, 7
  %v2757 = vsub.s32 %v1287, %v2756
  %v2758 = vrot.slane %v2344, %v2757
  %v2759 = vsel %vm1292, %v2758, %v2754
  %v2760 = vlaneseq
  %v2761 = vshrl.u32 %v2760, 7
  %v2762 = vsub.s32 %v36, %v2761
  %v2763 = vrot.slane %v2347, %v2762
  %v2764 = vlaneseq
  %v2765 = vshrl.u32 %v2764, 7
  %v2766 = vsub.s32 %v1189, %v2765
  %v2767 = vrot.slane %v2350, %v2766
  %v2768 = vsel %vm1194, %v2767, %v2763
  %v2769 = vlaneseq
  %v2770 = vshrl.u32 %v2769, 7
  %v2771 = vsub.s32 %v1196, %v2770
  %v2772 = vrot.slane %v2353, %v2771
  %v2773 = vsel %vm1201, %v2772, %v2768
  %v2774 = vlaneseq
  %v2775 = vshrl.u32 %v2774, 7
  %v2776 = vsub.s32 %v1203, %v2775
  %v2777 = vrot.slane %v2356, %v2776
  %v2778 = vsel %vm1208, %v2777, %v2773
  %v2779 = vlaneseq
  %v2780 = vshrl.u32 %v2779, 7
  %v2781 = vsub.s32 %v1210, %v2780
  %v2782 = vrot.slane %v2359, %v2781
  %v2783 = vsel %vm1215, %v2782, %v2778
  %v2784 = vlaneseq
  %v2785 = vshrl.u32 %v2784, 7
  %v2786 = vsub.s32 %v1217, %v2785
  %v2787 = vrot.slane %v2362, %v2786
  %v2788 = vsel %vm1222, %v2787, %v2783
  %v2789 = vlaneseq
  %v2790 = vshrl.u32 %v2789, 7
  %v2791 = vsub.s32 %v1224, %v2790
  %v2792 = vrot.slane %v2365, %v2791
  %v2793 = vsel %vm1229, %v2792, %v2788
  %v2794 = vlaneseq
  %v2795 = vshrl.u32 %v2794, 7
  %v2796 = vsub.s32 %v1231, %v2795
  %v2797 = vrot.slane %v2368, %v2796
  %v2798 = vsel %vm1236, %v2797, %v2793
  %v2799 = vlaneseq
  %v2800 = vshrl.u32 %v2799, 7
  %v2801 = vsub.s32 %v1238, %v2800
  %v2802 = vrot.slane %v2371, %v2801
  %v2803 = vsel %vm1243, %v2802, %v2798
  %v2804 = vlaneseq
  %v2805 = vshrl.u32 %v2804, 7
  %v2806 = vsub.s32 %v1245, %v2805
  %v2807 = vrot.slane %v2374, %v2806
  %v2808 = vsel %vm1250, %v2807, %v2803
  %v2809 = vlaneseq
  %v2810 = vshrl.u32 %v2809, 7
  %v2811 = vsub.s32 %v1252, %v2810
  %v2812 = vrot.slane %v2377, %v2811
  %v2813 = vsel %vm1257, %v2812, %v2808
  %v2814 = vlaneseq
  %v2815 = vshrl.u32 %v2814, 7
  %v2816 = vsub.s32 %v1259, %v2815
  %v2817 = vrot.slane %v2380, %v2816
  %v2818 = vsel %vm1264, %v2817, %v2813
  %v2819 = vlaneseq
  %v2820 = vshrl.u32 %v2819, 7
  %v2821 = vsub.s32 %v1266, %v2820
  %v2822 = vrot.slane %v2383, %v2821
  %v2823 = vsel %vm1271, %v2822, %v2818
  %v2824 = vlaneseq
  %v2825 = vshrl.u32 %v2824, 7
  %v2826 = vsub.s32 %v1273, %v2825
  %v2827 = vrot.slane %v2386, %v2826
  %v2828 = vsel %vm1278, %v2827, %v2823
  %v2829 = vlaneseq
  %v2830 = vshrl.u32 %v2829, 7
  %v2831 = vsub.s32 %v1280, %v2830
  %v2832 = vrot.slane %v2389, %v2831
  %v2833 = vsel %vm1285, %v2832, %v2828
  %v2834 = vlaneseq
  %v2835 = vshrl.u32 %v2834, 7
  %v2836 = vsub.s32 %v1287, %v2835
  %v2837 = vrot.slane %v2392, %v2836
  %v2838 = vsel %vm1292, %v2837, %v2833
  %v2839 = vlaneseq
  %v2840 = vshrl.u32 %v2839, 7
  %v2841 = vsub.s32 %v36, %v2840
  %v2842 = vrot.slane %v2395, %v2841
  %v2843 = vlaneseq
  %v2844 = vshrl.u32 %v2843, 7
  %v2845 = vsub.s32 %v1189, %v2844
  %v2846 = vrot.slane %v2398, %v2845
  %v2847 = vsel %vm1194, %v2846, %v2842
  %v2848 = vlaneseq
  %v2849 = vshrl.u32 %v2848, 7
  %v2850 = vsub.s32 %v1196, %v2849
  %v2851 = vrot.slane %v2401, %v2850
  %v2852 = vsel %vm1201, %v2851, %v2847
  %v2853 = vlaneseq
  %v2854 = vshrl.u32 %v2853, 7
  %v2855 = vsub.s32 %v1203, %v2854
  %v2856 = vrot.slane %v2404, %v2855
  %v2857 = vsel %vm1208, %v2856, %v2852
  %v2858 = vlaneseq
  %v2859 = vshrl.u32 %v2858, 7
  %v2860 = vsub.s32 %v1210, %v2859
  %v2861 = vrot.slane %v2407, %v2860
  %v2862 = vsel %vm1215, %v2861, %v2857
  %v2863 = vlaneseq
  %v2864 = vshrl.u32 %v2863, 7
  %v2865 = vsub.s32 %v1217, %v2864
  %v2866 = vrot.slane %v2410, %v2865
  %v2867 = vsel %vm1222, %v2866, %v2862
  %v2868 = vlaneseq
  %v2869 = vshrl.u32 %v2868, 7
  %v2870 = vsub.s32 %v1224, %v2869
  %v2871 = vrot.slane %v2413, %v2870
  %v2872 = vsel %vm1229, %v2871, %v2867
  %v2873 = vlaneseq
  %v2874 = vshrl.u32 %v2873, 7
  %v2875 = vsub.s32 %v1231, %v2874
  %v2876 = vrot.slane %v2416, %v2875
  %v2877 = vsel %vm1236, %v2876, %v2872
  %v2878 = vlaneseq
  %v2879 = vshrl.u32 %v2878, 7
  %v2880 = vsub.s32 %v1238, %v2879
  %v2881 = vrot.slane %v2419, %v2880
  %v2882 = vsel %vm1243, %v2881, %v2877
  %v2883 = vlaneseq
  %v2884 = vshrl.u32 %v2883, 7
  %v2885 = vsub.s32 %v1245, %v2884
  %v2886 = vrot.slane %v2422, %v2885
  %v2887 = vsel %vm1250, %v2886, %v2882
  %v2888 = vlaneseq
  %v2889 = vshrl.u32 %v2888, 7
  %v2890 = vsub.s32 %v1252, %v2889
  %v2891 = vrot.slane %v2425, %v2890
  %v2892 = vsel %vm1257, %v2891, %v2887
  %v2893 = vlaneseq
  %v2894 = vshrl.u32 %v2893, 7
  %v2895 = vsub.s32 %v1259, %v2894
  %v2896 = vrot.slane %v2428, %v2895
  %v2897 = vsel %vm1264, %v2896, %v2892
  %v2898 = vlaneseq
  %v2899 = vshrl.u32 %v2898, 7
  %v2900 = vsub.s32 %v1266, %v2899
  %v2901 = vrot.slane %v2431, %v2900
  %v2902 = vsel %vm1271, %v2901, %v2897
  %v2903 = vlaneseq
  %v2904 = vshrl.u32 %v2903, 7
  %v2905 = vsub.s32 %v1273, %v2904
  %v2906 = vrot.slane %v2434, %v2905
  %v2907 = vsel %vm1278, %v2906, %v2902
  %v2908 = vlaneseq
  %v2909 = vshrl.u32 %v2908, 7
  %v2910 = vsub.s32 %v1280, %v2909
  %v2911 = vrot.slane %v2437, %v2910
  %v2912 = vsel %vm1285, %v2911, %v2907
  %v2913 = vlaneseq
  %v2914 = vshrl.u32 %v2913, 7
  %v2915 = vsub.s32 %v1287, %v2914
  %v2916 = vrot.slane %v2440, %v2915
  %v2917 = vsel %vm1292, %v2916, %v2912
  %v2918 = vlaneseq
  %v2919 = vshrl.u32 %v2918, 7
  %v2920 = vsub.s32 %v36, %v2919
  %v2921 = vrot.slane %v2443, %v2920
  %v2922 = vlaneseq
  %v2923 = vshrl.u32 %v2922, 7
  %v2924 = vsub.s32 %v1189, %v2923
  %v2925 = vrot.slane %v2446, %v2924
  %v2926 = vsel %vm1194, %v2925, %v2921
  %v2927 = vlaneseq
  %v2928 = vshrl.u32 %v2927, 7
  %v2929 = vsub.s32 %v1196, %v2928
  %v2930 = vrot.slane %v2449, %v2929
  %v2931 = vsel %vm1201, %v2930, %v2926
  %v2932 = vlaneseq
  %v2933 = vshrl.u32 %v2932, 7
  %v2934 = vsub.s32 %v1203, %v2933
  %v2935 = vrot.slane %v2452, %v2934
  %v2936 = vsel %vm1208, %v2935, %v2931
  %v2937 = vlaneseq
  %v2938 = vshrl.u32 %v2937, 7
  %v2939 = vsub.s32 %v1210, %v2938
  %v2940 = vrot.slane %v2455, %v2939
  %v2941 = vsel %vm1215, %v2940, %v2936
  %v2942 = vlaneseq
  %v2943 = vshrl.u32 %v2942, 7
  %v2944 = vsub.s32 %v1217, %v2943
  %v2945 = vrot.slane %v2458, %v2944
  %v2946 = vsel %vm1222, %v2945, %v2941
  %v2947 = vlaneseq
  %v2948 = vshrl.u32 %v2947, 7
  %v2949 = vsub.s32 %v1224, %v2948
  %v2950 = vrot.slane %v2461, %v2949
  %v2951 = vsel %vm1229, %v2950, %v2946
  %v2952 = vlaneseq
  %v2953 = vshrl.u32 %v2952, 7
  %v2954 = vsub.s32 %v1231, %v2953
  %v2955 = vrot.slane %v2464, %v2954
  %v2956 = vsel %vm1236, %v2955, %v2951
  %v2957 = vlaneseq
  %v2958 = vshrl.u32 %v2957, 7
  %v2959 = vsub.s32 %v1238, %v2958
  %v2960 = vrot.slane %v2467, %v2959
  %v2961 = vsel %vm1243, %v2960, %v2956
  %v2962 = vlaneseq
  %v2963 = vshrl.u32 %v2962, 7
  %v2964 = vsub.s32 %v1245, %v2963
  %v2965 = vrot.slane %v2470, %v2964
  %v2966 = vsel %vm1250, %v2965, %v2961
  %v2967 = vlaneseq
  %v2968 = vshrl.u32 %v2967, 7
  %v2969 = vsub.s32 %v1252, %v2968
  %v2970 = vrot.slane %v2473, %v2969
  %v2971 = vsel %vm1257, %v2970, %v2966
  %v2972 = vlaneseq
  %v2973 = vshrl.u32 %v2972, 7
  %v2974 = vsub.s32 %v1259, %v2973
  %v2975 = vrot.slane %v2476, %v2974
  %v2976 = vsel %vm1264, %v2975, %v2971
  %v2977 = vlaneseq
  %v2978 = vshrl.u32 %v2977, 7
  %v2979 = vsub.s32 %v1266, %v2978
  %v2980 = vrot.slane %v2479, %v2979
  %v2981 = vsel %vm1271, %v2980, %v2976
  %v2982 = vlaneseq
  %v2983 = vshrl.u32 %v2982, 7
  %v2984 = vsub.s32 %v1273, %v2983
  %v2985 = vrot.slane %v2482, %v2984
  %v2986 = vsel %vm1278, %v2985, %v2981
  %v2987 = vlaneseq
  %v2988 = vshrl.u32 %v2987, 7
  %v2989 = vsub.s32 %v1280, %v2988
  %v2990 = vrot.slane %v2485, %v2989
  %v2991 = vsel %vm1285, %v2990, %v2986
  %v2992 = vlaneseq
  %v2993 = vshrl.u32 %v2992, 7
  %v2994 = vsub.s32 %v1287, %v2993
  %v2995 = vrot.slane %v2488, %v2994
  %v2996 = vsel %vm1292, %v2995, %v2991
  %v2997 = vlaneseq
  %v2998 = vshrl.u32 %v2997, 7
  %v2999 = vsub.s32 %v36, %v2998
  %v3000 = vrot.slane %v2491, %v2999
  %v3001 = vlaneseq
  %v3002 = vshrl.u32 %v3001, 7
  %v3003 = vsub.s32 %v1189, %v3002
  %v3004 = vrot.slane %v2494, %v3003
  %v3005 = vsel %vm1194, %v3004, %v3000
  %v3006 = vlaneseq
  %v3007 = vshrl.u32 %v3006, 7
  %v3008 = vsub.s32 %v1196, %v3007
  %v3009 = vrot.slane %v2497, %v3008
  %v3010 = vsel %vm1201, %v3009, %v3005
  %v3011 = vlaneseq
  %v3012 = vshrl.u32 %v3011, 7
  %v3013 = vsub.s32 %v1203, %v3012
  %v3014 = vrot.slane %v2500, %v3013
  %v3015 = vsel %vm1208, %v3014, %v3010
  %v3016 = vlaneseq
  %v3017 = vshrl.u32 %v3016, 7
  %v3018 = vsub.s32 %v1210, %v3017
  %v3019 = vrot.slane %v2503, %v3018
  %v3020 = vsel %vm1215, %v3019, %v3015
  %v3021 = vlaneseq
  %v3022 = vshrl.u32 %v3021, 7
  %v3023 = vsub.s32 %v1217, %v3022
  %v3024 = vrot.slane %v2506, %v3023
  %v3025 = vsel %vm1222, %v3024, %v3020
  %v3026 = vlaneseq
  %v3027 = vshrl.u32 %v3026, 7
  %v3028 = vsub.s32 %v1224, %v3027
  %v3029 = vrot.slane %v2509, %v3028
  %v3030 = vsel %vm1229, %v3029, %v3025
  %v3031 = vlaneseq
  %v3032 = vshrl.u32 %v3031, 7
  %v3033 = vsub.s32 %v1231, %v3032
  %v3034 = vrot.slane %v2512, %v3033
  %v3035 = vsel %vm1236, %v3034, %v3030
  %v3036 = vlaneseq
  %v3037 = vshrl.u32 %v3036, 7
  %v3038 = vsub.s32 %v1238, %v3037
  %v3039 = vrot.slane %v2515, %v3038
  %v3040 = vsel %vm1243, %v3039, %v3035
  %v3041 = vlaneseq
  %v3042 = vshrl.u32 %v3041, 7
  %v3043 = vsub.s32 %v1245, %v3042
  %v3044 = vrot.slane %v2518, %v3043
  %v3045 = vsel %vm1250, %v3044, %v3040
  %v3046 = vlaneseq
  %v3047 = vshrl.u32 %v3046, 7
  %v3048 = vsub.s32 %v1252, %v3047
  %v3049 = vrot.slane %v2521, %v3048
  %v3050 = vsel %vm1257, %v3049, %v3045
  %v3051 = vlaneseq
  %v3052 = vshrl.u32 %v3051, 7
  %v3053 = vsub.s32 %v1259, %v3052
  %v3054 = vrot.slane %v2524, %v3053
  %v3055 = vsel %vm1264, %v3054, %v3050
  %v3056 = vlaneseq
  %v3057 = vshrl.u32 %v3056, 7
  %v3058 = vsub.s32 %v1266, %v3057
  %v3059 = vrot.slane %v2527, %v3058
  %v3060 = vsel %vm1271, %v3059, %v3055
  %v3061 = vlaneseq
  %v3062 = vshrl.u32 %v3061, 7
  %v3063 = vsub.s32 %v1273, %v3062
  %v3064 = vrot.slane %v2530, %v3063
  %v3065 = vsel %vm1278, %v3064, %v3060
  %v3066 = vlaneseq
  %v3067 = vshrl.u32 %v3066, 7
  %v3068 = vsub.s32 %v1280, %v3067
  %v3069 = vrot.slane %v2533, %v3068
  %v3070 = vsel %vm1285, %v3069, %v3065
  %v3071 = vlaneseq
  %v3072 = vshrl.u32 %v3071, 7
  %v3073 = vsub.s32 %v1287, %v3072
  %v3074 = vrot.slane %v2536, %v3073
  %v3075 = vsel %vm1292, %v3074, %v3070
  %v3076 = vlaneseq
  %v3077 = vshrl.u32 %v3076, 7
  %v3078 = vsub.s32 %v36, %v3077
  %v3079 = vrot.slane %v2539, %v3078
  %v3080 = vlaneseq
  %v3081 = vshrl.u32 %v3080, 7
  %v3082 = vsub.s32 %v1189, %v3081
  %v3083 = vrot.slane %v2542, %v3082
  %v3084 = vsel %vm1194, %v3083, %v3079
  %v3085 = vlaneseq
  %v3086 = vshrl.u32 %v3085, 7
  %v3087 = vsub.s32 %v1196, %v3086
  %v3088 = vrot.slane %v2545, %v3087
  %v3089 = vsel %vm1201, %v3088, %v3084
  %v3090 = vlaneseq
  %v3091 = vshrl.u32 %v3090, 7
  %v3092 = vsub.s32 %v1203, %v3091
  %v3093 = vrot.slane %v2548, %v3092
  %v3094 = vsel %vm1208, %v3093, %v3089
  %v3095 = vlaneseq
  %v3096 = vshrl.u32 %v3095, 7
  %v3097 = vsub.s32 %v1210, %v3096
  %v3098 = vrot.slane %v2551, %v3097
  %v3099 = vsel %vm1215, %v3098, %v3094
  %v3100 = vlaneseq
  %v3101 = vshrl.u32 %v3100, 7
  %v3102 = vsub.s32 %v1217, %v3101
  %v3103 = vrot.slane %v2554, %v3102
  %v3104 = vsel %vm1222, %v3103, %v3099
  %v3105 = vlaneseq
  %v3106 = vshrl.u32 %v3105, 7
  %v3107 = vsub.s32 %v1224, %v3106
  %v3108 = vrot.slane %v2557, %v3107
  %v3109 = vsel %vm1229, %v3108, %v3104
  %v3110 = vlaneseq
  %v3111 = vshrl.u32 %v3110, 7
  %v3112 = vsub.s32 %v1231, %v3111
  %v3113 = vrot.slane %v2560, %v3112
  %v3114 = vsel %vm1236, %v3113, %v3109
  %v3115 = vlaneseq
  %v3116 = vshrl.u32 %v3115, 7
  %v3117 = vsub.s32 %v1238, %v3116
  %v3118 = vrot.slane %v2563, %v3117
  %v3119 = vsel %vm1243, %v3118, %v3114
  %v3120 = vlaneseq
  %v3121 = vshrl.u32 %v3120, 7
  %v3122 = vsub.s32 %v1245, %v3121
  %v3123 = vrot.slane %v2566, %v3122
  %v3124 = vsel %vm1250, %v3123, %v3119
  %v3125 = vlaneseq
  %v3126 = vshrl.u32 %v3125, 7
  %v3127 = vsub.s32 %v1252, %v3126
  %v3128 = vrot.slane %v2569, %v3127
  %v3129 = vsel %vm1257, %v3128, %v3124
  %v3130 = vlaneseq
  %v3131 = vshrl.u32 %v3130, 7
  %v3132 = vsub.s32 %v1259, %v3131
  %v3133 = vrot.slane %v2572, %v3132
  %v3134 = vsel %vm1264, %v3133, %v3129
  %v3135 = vlaneseq
  %v3136 = vshrl.u32 %v3135, 7
  %v3137 = vsub.s32 %v1266, %v3136
  %v3138 = vrot.slane %v2575, %v3137
  %v3139 = vsel %vm1271, %v3138, %v3134
  %v3140 = vlaneseq
  %v3141 = vshrl.u32 %v3140, 7
  %v3142 = vsub.s32 %v1273, %v3141
  %v3143 = vrot.slane %v2578, %v3142
  %v3144 = vsel %vm1278, %v3143, %v3139
  %v3145 = vlaneseq
  %v3146 = vshrl.u32 %v3145, 7
  %v3147 = vsub.s32 %v1280, %v3146
  %v3148 = vrot.slane %v2581, %v3147
  %v3149 = vsel %vm1285, %v3148, %v3144
  %v3150 = vlaneseq
  %v3151 = vshrl.u32 %v3150, 7
  %v3152 = vsub.s32 %v1287, %v3151
  %v3153 = vrot.slane %v2584, %v3152
  %v3154 = vsel %vm1292, %v3153, %v3149
  %v3155 = vlaneseq
  %v3156 = vshrl.u32 %v3155, 7
  %v3157 = vsub.s32 %v36, %v3156
  %v3158 = vrot.slane %v2587, %v3157
  %v3159 = vlaneseq
  %v3160 = vshrl.u32 %v3159, 7
  %v3161 = vsub.s32 %v1189, %v3160
  %v3162 = vrot.slane %v2590, %v3161
  %v3163 = vsel %vm1194, %v3162, %v3158
  %v3164 = vlaneseq
  %v3165 = vshrl.u32 %v3164, 7
  %v3166 = vsub.s32 %v1196, %v3165
  %v3167 = vrot.slane %v2593, %v3166
  %v3168 = vsel %vm1201, %v3167, %v3163
  %v3169 = vlaneseq
  %v3170 = vshrl.u32 %v3169, 7
  %v3171 = vsub.s32 %v1203, %v3170
  %v3172 = vrot.slane %v2596, %v3171
  %v3173 = vsel %vm1208, %v3172, %v3168
  %v3174 = vlaneseq
  %v3175 = vshrl.u32 %v3174, 7
  %v3176 = vsub.s32 %v1210, %v3175
  %v3177 = vrot.slane %v2599, %v3176
  %v3178 = vsel %vm1215, %v3177, %v3173
  %v3179 = vlaneseq
  %v3180 = vshrl.u32 %v3179, 7
  %v3181 = vsub.s32 %v1217, %v3180
  %v3182 = vrot.slane %v2602, %v3181
  %v3183 = vsel %vm1222, %v3182, %v3178
  %v3184 = vlaneseq
  %v3185 = vshrl.u32 %v3184, 7
  %v3186 = vsub.s32 %v1224, %v3185
  %v3187 = vrot.slane %v2605, %v3186
  %v3188 = vsel %vm1229, %v3187, %v3183
  %v3189 = vlaneseq
  %v3190 = vshrl.u32 %v3189, 7
  %v3191 = vsub.s32 %v1231, %v3190
  %v3192 = vrot.slane %v2608, %v3191
  %v3193 = vsel %vm1236, %v3192, %v3188
  %v3194 = vlaneseq
  %v3195 = vshrl.u32 %v3194, 7
  %v3196 = vsub.s32 %v1238, %v3195
  %v3197 = vrot.slane %v2611, %v3196
  %v3198 = vsel %vm1243, %v3197, %v3193
  %v3199 = vlaneseq
  %v3200 = vshrl.u32 %v3199, 7
  %v3201 = vsub.s32 %v1245, %v3200
  %v3202 = vrot.slane %v2614, %v3201
  %v3203 = vsel %vm1250, %v3202, %v3198
  %v3204 = vlaneseq
  %v3205 = vshrl.u32 %v3204, 7
  %v3206 = vsub.s32 %v1252, %v3205
  %v3207 = vrot.slane %v2617, %v3206
  %v3208 = vsel %vm1257, %v3207, %v3203
  %v3209 = vlaneseq
  %v3210 = vshrl.u32 %v3209, 7
  %v3211 = vsub.s32 %v1259, %v3210
  %v3212 = vrot.slane %v2620, %v3211
  %v3213 = vsel %vm1264, %v3212, %v3208
  %v3214 = vlaneseq
  %v3215 = vshrl.u32 %v3214, 7
  %v3216 = vsub.s32 %v1266, %v3215
  %v3217 = vrot.slane %v2623, %v3216
  %v3218 = vsel %vm1271, %v3217, %v3213
  %v3219 = vlaneseq
  %v3220 = vshrl.u32 %v3219, 7
  %v3221 = vsub.s32 %v1273, %v3220
  %v3222 = vrot.slane %v2626, %v3221
  %v3223 = vsel %vm1278, %v3222, %v3218
  %v3224 = vlaneseq
  %v3225 = vshrl.u32 %v3224, 7
  %v3226 = vsub.s32 %v1280, %v3225
  %v3227 = vrot.slane %v2629, %v3226
  %v3228 = vsel %vm1285, %v3227, %v3223
  %v3229 = vlaneseq
  %v3230 = vshrl.u32 %v3229, 7
  %v3231 = vsub.s32 %v1287, %v3230
  %v3232 = vrot.slane %v2632, %v3231
  %v3233 = vsel %vm1292, %v3232, %v3228
  %v3234 = vlaneseq
  %v3235 = vshrl.u32 %v3234, 7
  %v3236 = vsub.s32 %v36, %v3235
  %v3237 = vrot.slane %v2635, %v3236
  %v3238 = vlaneseq
  %v3239 = vshrl.u32 %v3238, 7
  %v3240 = vsub.s32 %v1189, %v3239
  %v3241 = vrot.slane %v2638, %v3240
  %v3242 = vsel %vm1194, %v3241, %v3237
  %v3243 = vlaneseq
  %v3244 = vshrl.u32 %v3243, 7
  %v3245 = vsub.s32 %v1196, %v3244
  %v3246 = vrot.slane %v2641, %v3245
  %v3247 = vsel %vm1201, %v3246, %v3242
  %v3248 = vlaneseq
  %v3249 = vshrl.u32 %v3248, 7
  %v3250 = vsub.s32 %v1203, %v3249
  %v3251 = vrot.slane %v2644, %v3250
  %v3252 = vsel %vm1208, %v3251, %v3247
  %v3253 = vlaneseq
  %v3254 = vshrl.u32 %v3253, 7
  %v3255 = vsub.s32 %v1210, %v3254
  %v3256 = vrot.slane %v2647, %v3255
  %v3257 = vsel %vm1215, %v3256, %v3252
  %v3258 = vlaneseq
  %v3259 = vshrl.u32 %v3258, 7
  %v3260 = vsub.s32 %v1217, %v3259
  %v3261 = vrot.slane %v2650, %v3260
  %v3262 = vsel %vm1222, %v3261, %v3257
  %v3263 = vlaneseq
  %v3264 = vshrl.u32 %v3263, 7
  %v3265 = vsub.s32 %v1224, %v3264
  %v3266 = vrot.slane %v2653, %v3265
  %v3267 = vsel %vm1229, %v3266, %v3262
  %v3268 = vlaneseq
  %v3269 = vshrl.u32 %v3268, 7
  %v3270 = vsub.s32 %v1231, %v3269
  %v3271 = vrot.slane %v2656, %v3270
  %v3272 = vsel %vm1236, %v3271, %v3267
  %v3273 = vlaneseq
  %v3274 = vshrl.u32 %v3273, 7
  %v3275 = vsub.s32 %v1238, %v3274
  %v3276 = vrot.slane %v2659, %v3275
  %v3277 = vsel %vm1243, %v3276, %v3272
  %v3278 = vlaneseq
  %v3279 = vshrl.u32 %v3278, 7
  %v3280 = vsub.s32 %v1245, %v3279
  %v3281 = vrot.slane %v2662, %v3280
  %v3282 = vsel %vm1250, %v3281, %v3277
  %v3283 = vlaneseq
  %v3284 = vshrl.u32 %v3283, 7
  %v3285 = vsub.s32 %v1252, %v3284
  %v3286 = vrot.slane %v2665, %v3285
  %v3287 = vsel %vm1257, %v3286, %v3282
  %v3288 = vlaneseq
  %v3289 = vshrl.u32 %v3288, 7
  %v3290 = vsub.s32 %v1259, %v3289
  %v3291 = vrot.slane %v2668, %v3290
  %v3292 = vsel %vm1264, %v3291, %v3287
  %v3293 = vlaneseq
  %v3294 = vshrl.u32 %v3293, 7
  %v3295 = vsub.s32 %v1266, %v3294
  %v3296 = vrot.slane %v2671, %v3295
  %v3297 = vsel %vm1271, %v3296, %v3292
  %v3298 = vlaneseq
  %v3299 = vshrl.u32 %v3298, 7
  %v3300 = vsub.s32 %v1273, %v3299
  %v3301 = vrot.slane %v2674, %v3300
  %v3302 = vsel %vm1278, %v3301, %v3297
  %v3303 = vlaneseq
  %v3304 = vshrl.u32 %v3303, 7
  %v3305 = vsub.s32 %v1280, %v3304
  %v3306 = vrot.slane %v2677, %v3305
  %v3307 = vsel %vm1285, %v3306, %v3302
  %v3308 = vlaneseq
  %v3309 = vshrl.u32 %v3308, 7
  %v3310 = vsub.s32 %v1287, %v3309
  %v3311 = vrot.slane %v2680, %v3310
  %v3312 = vsel %vm1292, %v3311, %v3307
  %v3313 = vsel %vm237, %v2838, %v2759
  %v3314 = vsel %vm239, %v2917, %v3313
  %v3315 = vsel %vm241, %v2996, %v3314
  %v3316 = vsel %vm243, %v3075, %v3315
  %v3317 = vsel %vm245, %v3154, %v3316
  %v3318 = vsel %vm247, %v3233, %v3317
  %v3319 = vsel %vm249, %v3312, %v3318
  %v3321 = vadd.f32 %v1922, %v3319
  %v3322 = vlaneseq
  %v3323 = vshrl.u32 %v3322, 7
  %v3324 = vsub.s32 2, %v3323
  %v3325 = vrot.slane %v420, %v3324
  %v3326 = vlaneseq
  %v3327 = vshrl.u32 %v3326, 7
  %v3328 = vsub.s32 2, %v3327
  %v3329 = vrot.slane %v421, %v3328
  %v3330 = vlaneseq
  %v3331 = vshrl.u32 %v3330, 7
  %v3332 = vsub.s32 2, %v3331
  %v3333 = vrot.slane %v422, %v3332
  %v3334 = vlaneseq
  %v3335 = vshrl.u32 %v3334, 7
  %v3336 = vsub.s32 2, %v3335
  %v3337 = vrot.slane %v423, %v3336
  %v3338 = vlaneseq
  %v3339 = vshrl.u32 %v3338, 7
  %v3340 = vsub.s32 2, %v3339
  %v3341 = vrot.slane %v424, %v3340
  %v3342 = vlaneseq
  %v3343 = vshrl.u32 %v3342, 7
  %v3344 = vsub.s32 2, %v3343
  %v3345 = vrot.slane %v425, %v3344
  %v3346 = vlaneseq
  %v3347 = vshrl.u32 %v3346, 7
  %v3348 = vsub.s32 2, %v3347
  %v3349 = vrot.slane %v426, %v3348
  %v3350 = vlaneseq
  %v3351 = vshrl.u32 %v3350, 7
  %v3352 = vsub.s32 2, %v3351
  %v3353 = vrot.slane %v427, %v3352
  %v3354 = vlaneseq
  %v3355 = vshrl.u32 %v3354, 7
  %v3356 = vsub.s32 2, %v3355
  %v3357 = vrot.slane %v428, %v3356
  %3360 = vbcast.lane.b32.xlu0 %v3357, 256
  %v3361 = vpop.permute.xlu0 %3360
  %s3363 = sor.u32 256, 8
  %3364 = vbcast.lane.b32.xlu0 %v3357, %s3363
  %v3365 = vpop.permute.xlu0 %3364
  %s3367 = sor.u32 256, 16
  %3368 = vbcast.lane.b32.xlu0 %v3357, %s3367
  %v3369 = vpop.permute.xlu0 %3368
  %s3371 = sor.u32 256, 24
  %3372 = vbcast.lane.b32.xlu0 %v3357, %s3371
  %v3373 = vpop.permute.xlu0 %3372
  %s3375 = sor.u32 256, 32
  %3376 = vbcast.lane.b32.xlu0 %v3357, %s3375
  %v3377 = vpop.permute.xlu0 %3376
  %s3379 = sor.u32 256, 40
  %3380 = vbcast.lane.b32.xlu0 %v3357, %s3379
  %v3381 = vpop.permute.xlu0 %3380
  %s3383 = sor.u32 256, 48
  %3384 = vbcast.lane.b32.xlu0 %v3357, %s3383
  %v3385 = vpop.permute.xlu0 %3384
  %s3387 = sor.u32 256, 56
  %3388 = vbcast.lane.b32.xlu0 %v3357, %s3387
  %v3389 = vpop.permute.xlu0 %3388
  %s3391 = sor.u32 256, 64
  %3392 = vbcast.lane.b32.xlu0 %v3357, %s3391
  %v3393 = vpop.permute.xlu0 %3392
  %s3395 = sor.u32 256, 72
  %3396 = vbcast.lane.b32.xlu0 %v3357, %s3395
  %v3397 = vpop.permute.xlu0 %3396
  %s3399 = sor.u32 256, 80
  %3400 = vbcast.lane.b32.xlu0 %v3357, %s3399
  %v3401 = vpop.permute.xlu0 %3400
  %s3403 = sor.u32 256, 88
  %3404 = vbcast.lane.b32.xlu0 %v3357, %s3403
  %v3405 = vpop.permute.xlu0 %3404
  %s3407 = sor.u32 256, 96
  %3408 = vbcast.lane.b32.xlu0 %v3357, %s3407
  %v3409 = vpop.permute.xlu0 %3408
  %s3411 = sor.u32 256, 104
  %3412 = vbcast.lane.b32.xlu0 %v3357, %s3411
  %v3413 = vpop.permute.xlu0 %3412
  %s3415 = sor.u32 256, 112
  %3416 = vbcast.lane.b32.xlu0 %v3357, %s3415
  %v3417 = vpop.permute.xlu0 %3416
  %s3419 = sor.u32 256, 120
  %3420 = vbcast.lane.b32.xlu0 %v3357, %s3419
  %v3421 = vpop.permute.xlu0 %3420
  %v3438 = vmul.f32 %v3325, %v3361
  %v3439 = vmul.f32 %v3325, %v3365
  %v3440 = vmul.f32 %v3325, %v3369
  %v3441 = vmul.f32 %v3325, %v3373
  %v3442 = vmul.f32 %v3325, %v3377
  %v3443 = vmul.f32 %v3325, %v3381
  %v3444 = vmul.f32 %v3325, %v3385
  %v3445 = vmul.f32 %v3325, %v3389
  %v3446 = vmul.f32 %v3325, %v3393
  %v3447 = vmul.f32 %v3325, %v3397
  %v3448 = vmul.f32 %v3325, %v3401
  %v3449 = vmul.f32 %v3325, %v3405
  %v3450 = vmul.f32 %v3325, %v3409
  %v3451 = vmul.f32 %v3325, %v3413
  %v3452 = vmul.f32 %v3325, %v3417
  %v3453 = vmul.f32 %v3325, %v3421
  %v3454 = vmul.f32 %v3329, %v3361
  %v3455 = vmul.f32 %v3329, %v3365
  %v3456 = vmul.f32 %v3329, %v3369
  %v3457 = vmul.f32 %v3329, %v3373
  %v3458 = vmul.f32 %v3329, %v3377
  %v3459 = vmul.f32 %v3329, %v3381
  %v3460 = vmul.f32 %v3329, %v3385
  %v3461 = vmul.f32 %v3329, %v3389
  %v3462 = vmul.f32 %v3329, %v3393
  %v3463 = vmul.f32 %v3329, %v3397
  %v3464 = vmul.f32 %v3329, %v3401
  %v3465 = vmul.f32 %v3329, %v3405
  %v3466 = vmul.f32 %v3329, %v3409
  %v3467 = vmul.f32 %v3329, %v3413
  %v3468 = vmul.f32 %v3329, %v3417
  %v3469 = vmul.f32 %v3329, %v3421
  %v3470 = vmul.f32 %v3333, %v3361
  %v3471 = vmul.f32 %v3333, %v3365
  %v3472 = vmul.f32 %v3333, %v3369
  %v3473 = vmul.f32 %v3333, %v3373
  %v3474 = vmul.f32 %v3333, %v3377
  %v3475 = vmul.f32 %v3333, %v3381
  %v3476 = vmul.f32 %v3333, %v3385
  %v3477 = vmul.f32 %v3333, %v3389
  %v3478 = vmul.f32 %v3333, %v3393
  %v3479 = vmul.f32 %v3333, %v3397
  %v3480 = vmul.f32 %v3333, %v3401
  %v3481 = vmul.f32 %v3333, %v3405
  %v3482 = vmul.f32 %v3333, %v3409
  %v3483 = vmul.f32 %v3333, %v3413
  %v3484 = vmul.f32 %v3333, %v3417
  %v3485 = vmul.f32 %v3333, %v3421
  %v3486 = vmul.f32 %v3337, %v3361
  %v3487 = vmul.f32 %v3337, %v3365
  %v3488 = vmul.f32 %v3337, %v3369
  %v3489 = vmul.f32 %v3337, %v3373
  %v3490 = vmul.f32 %v3337, %v3377
  %v3491 = vmul.f32 %v3337, %v3381
  %v3492 = vmul.f32 %v3337, %v3385
  %v3493 = vmul.f32 %v3337, %v3389
  %v3494 = vmul.f32 %v3337, %v3393
  %v3495 = vmul.f32 %v3337, %v3397
  %v3496 = vmul.f32 %v3337, %v3401
  %v3497 = vmul.f32 %v3337, %v3405
  %v3498 = vmul.f32 %v3337, %v3409
  %v3499 = vmul.f32 %v3337, %v3413
  %v3500 = vmul.f32 %v3337, %v3417
  %v3501 = vmul.f32 %v3337, %v3421
  %v3502 = vmul.f32 %v3341, %v3361
  %v3503 = vmul.f32 %v3341, %v3365
  %v3504 = vmul.f32 %v3341, %v3369
  %v3505 = vmul.f32 %v3341, %v3373
  %v3506 = vmul.f32 %v3341, %v3377
  %v3507 = vmul.f32 %v3341, %v3381
  %v3508 = vmul.f32 %v3341, %v3385
  %v3509 = vmul.f32 %v3341, %v3389
  %v3510 = vmul.f32 %v3341, %v3393
  %v3511 = vmul.f32 %v3341, %v3397
  %v3512 = vmul.f32 %v3341, %v3401
  %v3513 = vmul.f32 %v3341, %v3405
  %v3514 = vmul.f32 %v3341, %v3409
  %v3515 = vmul.f32 %v3341, %v3413
  %v3516 = vmul.f32 %v3341, %v3417
  %v3517 = vmul.f32 %v3341, %v3421
  %v3518 = vmul.f32 %v3345, %v3361
  %v3519 = vmul.f32 %v3345, %v3365
  %v3520 = vmul.f32 %v3345, %v3369
  %v3521 = vmul.f32 %v3345, %v3373
  %v3522 = vmul.f32 %v3345, %v3377
  %v3523 = vmul.f32 %v3345, %v3381
  %v3524 = vmul.f32 %v3345, %v3385
  %v3525 = vmul.f32 %v3345, %v3389
  %v3526 = vmul.f32 %v3345, %v3393
  %v3527 = vmul.f32 %v3345, %v3397
  %v3528 = vmul.f32 %v3345, %v3401
  %v3529 = vmul.f32 %v3345, %v3405
  %v3530 = vmul.f32 %v3345, %v3409
  %v3531 = vmul.f32 %v3345, %v3413
  %v3532 = vmul.f32 %v3345, %v3417
  %v3533 = vmul.f32 %v3345, %v3421
  %v3534 = vmul.f32 %v3349, %v3361
  %v3535 = vmul.f32 %v3349, %v3365
  %v3536 = vmul.f32 %v3349, %v3369
  %v3537 = vmul.f32 %v3349, %v3373
  %v3538 = vmul.f32 %v3349, %v3377
  %v3539 = vmul.f32 %v3349, %v3381
  %v3540 = vmul.f32 %v3349, %v3385
  %v3541 = vmul.f32 %v3349, %v3389
  %v3542 = vmul.f32 %v3349, %v3393
  %v3543 = vmul.f32 %v3349, %v3397
  %v3544 = vmul.f32 %v3349, %v3401
  %v3545 = vmul.f32 %v3349, %v3405
  %v3546 = vmul.f32 %v3349, %v3409
  %v3547 = vmul.f32 %v3349, %v3413
  %v3548 = vmul.f32 %v3349, %v3417
  %v3549 = vmul.f32 %v3349, %v3421
  %v3550 = vmul.f32 %v3353, %v3361
  %v3551 = vmul.f32 %v3353, %v3365
  %v3552 = vmul.f32 %v3353, %v3369
  %v3553 = vmul.f32 %v3353, %v3373
  %v3554 = vmul.f32 %v3353, %v3377
  %v3555 = vmul.f32 %v3353, %v3381
  %v3556 = vmul.f32 %v3353, %v3385
  %v3557 = vmul.f32 %v3353, %v3389
  %v3558 = vmul.f32 %v3353, %v3393
  %v3559 = vmul.f32 %v3353, %v3397
  %v3560 = vmul.f32 %v3353, %v3401
  %v3561 = vmul.f32 %v3353, %v3405
  %v3562 = vmul.f32 %v3353, %v3409
  %v3563 = vmul.f32 %v3353, %v3413
  %v3564 = vmul.f32 %v3353, %v3417
  %v3565 = vmul.f32 %v3353, %v3421
  %3694 = vset.pattern.permute.xlu0 0
  %3695 = vperm.xlu0 %3694, %v3438
  %v3696 = vpop.permute.xlu0 %3695
  %3697 = vset.pattern.permute.xlu0 0
  %3698 = vperm.xlu0 %3697, %v3439
  %v3699 = vpop.permute.xlu0 %3698
  %3700 = vset.pattern.permute.xlu0 0
  %3701 = vperm.xlu0 %3700, %v3440
  %v3702 = vpop.permute.xlu0 %3701
  %3703 = vset.pattern.permute.xlu0 0
  %3704 = vperm.xlu0 %3703, %v3441
  %v3705 = vpop.permute.xlu0 %3704
  %3706 = vset.pattern.permute.xlu0 0
  %3707 = vperm.xlu0 %3706, %v3442
  %v3708 = vpop.permute.xlu0 %3707
  %3709 = vset.pattern.permute.xlu0 0
  %3710 = vperm.xlu0 %3709, %v3443
  %v3711 = vpop.permute.xlu0 %3710
  %3712 = vset.pattern.permute.xlu0 0
  %3713 = vperm.xlu0 %3712, %v3444
  %v3714 = vpop.permute.xlu0 %3713
  %3715 = vset.pattern.permute.xlu0 0
  %3716 = vperm.xlu0 %3715, %v3445
  %v3717 = vpop.permute.xlu0 %3716
  %3718 = vset.pattern.permute.xlu0 0
  %3719 = vperm.xlu0 %3718, %v3446
  %v3720 = vpop.permute.xlu0 %3719
  %3721 = vset.pattern.permute.xlu0 0
  %3722 = vperm.xlu0 %3721, %v3447
  %v3723 = vpop.permute.xlu0 %3722
  %3724 = vset.pattern.permute.xlu0 0
  %3725 = vperm.xlu0 %3724, %v3448
  %v3726 = vpop.permute.xlu0 %3725
  %3727 = vset.pattern.permute.xlu0 0
  %3728 = vperm.xlu0 %3727, %v3449
  %v3729 = vpop.permute.xlu0 %3728
  %3730 = vset.pattern.permute.xlu0 0
  %3731 = vperm.xlu0 %3730, %v3450
  %v3732 = vpop.permute.xlu0 %3731
  %3733 = vset.pattern.permute.xlu0 0
  %3734 = vperm.xlu0 %3733, %v3451
  %v3735 = vpop.permute.xlu0 %3734
  %3736 = vset.pattern.permute.xlu0 0
  %3737 = vperm.xlu0 %3736, %v3452
  %v3738 = vpop.permute.xlu0 %3737
  %3739 = vset.pattern.permute.xlu0 0
  %3740 = vperm.xlu0 %3739, %v3453
  %v3741 = vpop.permute.xlu0 %3740
  %3742 = vset.pattern.permute.xlu0 0
  %3743 = vperm.xlu0 %3742, %v3454
  %v3744 = vpop.permute.xlu0 %3743
  %3745 = vset.pattern.permute.xlu0 0
  %3746 = vperm.xlu0 %3745, %v3455
  %v3747 = vpop.permute.xlu0 %3746
  %3748 = vset.pattern.permute.xlu0 0
  %3749 = vperm.xlu0 %3748, %v3456
  %v3750 = vpop.permute.xlu0 %3749
  %3751 = vset.pattern.permute.xlu0 0
  %3752 = vperm.xlu0 %3751, %v3457
  %v3753 = vpop.permute.xlu0 %3752
  %3754 = vset.pattern.permute.xlu0 0
  %3755 = vperm.xlu0 %3754, %v3458
  %v3756 = vpop.permute.xlu0 %3755
  %3757 = vset.pattern.permute.xlu0 0
  %3758 = vperm.xlu0 %3757, %v3459
  %v3759 = vpop.permute.xlu0 %3758
  %3760 = vset.pattern.permute.xlu0 0
  %3761 = vperm.xlu0 %3760, %v3460
  %v3762 = vpop.permute.xlu0 %3761
  %3763 = vset.pattern.permute.xlu0 0
  %3764 = vperm.xlu0 %3763, %v3461
  %v3765 = vpop.permute.xlu0 %3764
  %3766 = vset.pattern.permute.xlu0 0
  %3767 = vperm.xlu0 %3766, %v3462
  %v3768 = vpop.permute.xlu0 %3767
  %3769 = vset.pattern.permute.xlu0 0
  %3770 = vperm.xlu0 %3769, %v3463
  %v3771 = vpop.permute.xlu0 %3770
  %3772 = vset.pattern.permute.xlu0 0
  %3773 = vperm.xlu0 %3772, %v3464
  %v3774 = vpop.permute.xlu0 %3773
  %3775 = vset.pattern.permute.xlu0 0
  %3776 = vperm.xlu0 %3775, %v3465
  %v3777 = vpop.permute.xlu0 %3776
  %3778 = vset.pattern.permute.xlu0 0
  %3779 = vperm.xlu0 %3778, %v3466
  %v3780 = vpop.permute.xlu0 %3779
  %3781 = vset.pattern.permute.xlu0 0
  %3782 = vperm.xlu0 %3781, %v3467
  %v3783 = vpop.permute.xlu0 %3782
  %3784 = vset.pattern.permute.xlu0 0
  %3785 = vperm.xlu0 %3784, %v3468
  %v3786 = vpop.permute.xlu0 %3785
  %3787 = vset.pattern.permute.xlu0 0
  %3788 = vperm.xlu0 %3787, %v3469
  %v3789 = vpop.permute.xlu0 %3788
  %3790 = vset.pattern.permute.xlu0 0
  %3791 = vperm.xlu0 %3790, %v3470
  %v3792 = vpop.permute.xlu0 %3791
  %3793 = vset.pattern.permute.xlu0 0
  %3794 = vperm.xlu0 %3793, %v3471
  %v3795 = vpop.permute.xlu0 %3794
  %3796 = vset.pattern.permute.xlu0 0
  %3797 = vperm.xlu0 %3796, %v3472
  %v3798 = vpop.permute.xlu0 %3797
  %3799 = vset.pattern.permute.xlu0 0
  %3800 = vperm.xlu0 %3799, %v3473
  %v3801 = vpop.permute.xlu0 %3800
  %3802 = vset.pattern.permute.xlu0 0
  %3803 = vperm.xlu0 %3802, %v3474
  %v3804 = vpop.permute.xlu0 %3803
  %3805 = vset.pattern.permute.xlu0 0
  %3806 = vperm.xlu0 %3805, %v3475
  %v3807 = vpop.permute.xlu0 %3806
  %3808 = vset.pattern.permute.xlu0 0
  %3809 = vperm.xlu0 %3808, %v3476
  %v3810 = vpop.permute.xlu0 %3809
  %3811 = vset.pattern.permute.xlu0 0
  %3812 = vperm.xlu0 %3811, %v3477
  %v3813 = vpop.permute.xlu0 %3812
  %3814 = vset.pattern.permute.xlu0 0
  %3815 = vperm.xlu0 %3814, %v3478
  %v3816 = vpop.permute.xlu0 %3815
  %3817 = vset.pattern.permute.xlu0 0
  %3818 = vperm.xlu0 %3817, %v3479
  %v3819 = vpop.permute.xlu0 %3818
  %3820 = vset.pattern.permute.xlu0 0
  %3821 = vperm.xlu0 %3820, %v3480
  %v3822 = vpop.permute.xlu0 %3821
  %3823 = vset.pattern.permute.xlu0 0
  %3824 = vperm.xlu0 %3823, %v3481
  %v3825 = vpop.permute.xlu0 %3824
  %3826 = vset.pattern.permute.xlu0 0
  %3827 = vperm.xlu0 %3826, %v3482
  %v3828 = vpop.permute.xlu0 %3827
  %3829 = vset.pattern.permute.xlu0 0
  %3830 = vperm.xlu0 %3829, %v3483
  %v3831 = vpop.permute.xlu0 %3830
  %3832 = vset.pattern.permute.xlu0 0
  %3833 = vperm.xlu0 %3832, %v3484
  %v3834 = vpop.permute.xlu0 %3833
  %3835 = vset.pattern.permute.xlu0 0
  %3836 = vperm.xlu0 %3835, %v3485
  %v3837 = vpop.permute.xlu0 %3836
  %3838 = vset.pattern.permute.xlu0 0
  %3839 = vperm.xlu0 %3838, %v3486
  %v3840 = vpop.permute.xlu0 %3839
  %3841 = vset.pattern.permute.xlu0 0
  %3842 = vperm.xlu0 %3841, %v3487
  %v3843 = vpop.permute.xlu0 %3842
  %3844 = vset.pattern.permute.xlu0 0
  %3845 = vperm.xlu0 %3844, %v3488
  %v3846 = vpop.permute.xlu0 %3845
  %3847 = vset.pattern.permute.xlu0 0
  %3848 = vperm.xlu0 %3847, %v3489
  %v3849 = vpop.permute.xlu0 %3848
  %3850 = vset.pattern.permute.xlu0 0
  %3851 = vperm.xlu0 %3850, %v3490
  %v3852 = vpop.permute.xlu0 %3851
  %3853 = vset.pattern.permute.xlu0 0
  %3854 = vperm.xlu0 %3853, %v3491
  %v3855 = vpop.permute.xlu0 %3854
  %3856 = vset.pattern.permute.xlu0 0
  %3857 = vperm.xlu0 %3856, %v3492
  %v3858 = vpop.permute.xlu0 %3857
  %3859 = vset.pattern.permute.xlu0 0
  %3860 = vperm.xlu0 %3859, %v3493
  %v3861 = vpop.permute.xlu0 %3860
  %3862 = vset.pattern.permute.xlu0 0
  %3863 = vperm.xlu0 %3862, %v3494
  %v3864 = vpop.permute.xlu0 %3863
  %3865 = vset.pattern.permute.xlu0 0
  %3866 = vperm.xlu0 %3865, %v3495
  %v3867 = vpop.permute.xlu0 %3866
  %3868 = vset.pattern.permute.xlu0 0
  %3869 = vperm.xlu0 %3868, %v3496
  %v3870 = vpop.permute.xlu0 %3869
  %3871 = vset.pattern.permute.xlu0 0
  %3872 = vperm.xlu0 %3871, %v3497
  %v3873 = vpop.permute.xlu0 %3872
  %3874 = vset.pattern.permute.xlu0 0
  %3875 = vperm.xlu0 %3874, %v3498
  %v3876 = vpop.permute.xlu0 %3875
  %3877 = vset.pattern.permute.xlu0 0
  %3878 = vperm.xlu0 %3877, %v3499
  %v3879 = vpop.permute.xlu0 %3878
  %3880 = vset.pattern.permute.xlu0 0
  %3881 = vperm.xlu0 %3880, %v3500
  %v3882 = vpop.permute.xlu0 %3881
  %3883 = vset.pattern.permute.xlu0 0
  %3884 = vperm.xlu0 %3883, %v3501
  %v3885 = vpop.permute.xlu0 %3884
  %3886 = vset.pattern.permute.xlu0 0
  %3887 = vperm.xlu0 %3886, %v3502
  %v3888 = vpop.permute.xlu0 %3887
  %3889 = vset.pattern.permute.xlu0 0
  %3890 = vperm.xlu0 %3889, %v3503
  %v3891 = vpop.permute.xlu0 %3890
  %3892 = vset.pattern.permute.xlu0 0
  %3893 = vperm.xlu0 %3892, %v3504
  %v3894 = vpop.permute.xlu0 %3893
  %3895 = vset.pattern.permute.xlu0 0
  %3896 = vperm.xlu0 %3895, %v3505
  %v3897 = vpop.permute.xlu0 %3896
  %3898 = vset.pattern.permute.xlu0 0
  %3899 = vperm.xlu0 %3898, %v3506
  %v3900 = vpop.permute.xlu0 %3899
  %3901 = vset.pattern.permute.xlu0 0
  %3902 = vperm.xlu0 %3901, %v3507
  %v3903 = vpop.permute.xlu0 %3902
  %3904 = vset.pattern.permute.xlu0 0
  %3905 = vperm.xlu0 %3904, %v3508
  %v3906 = vpop.permute.xlu0 %3905
  %3907 = vset.pattern.permute.xlu0 0
  %3908 = vperm.xlu0 %3907, %v3509
  %v3909 = vpop.permute.xlu0 %3908
  %3910 = vset.pattern.permute.xlu0 0
  %3911 = vperm.xlu0 %3910, %v3510
  %v3912 = vpop.permute.xlu0 %3911
  %3913 = vset.pattern.permute.xlu0 0
  %3914 = vperm.xlu0 %3913, %v3511
  %v3915 = vpop.permute.xlu0 %3914
  %3916 = vset.pattern.permute.xlu0 0
  %3917 = vperm.xlu0 %3916, %v3512
  %v3918 = vpop.permute.xlu0 %3917
  %3919 = vset.pattern.permute.xlu0 0
  %3920 = vperm.xlu0 %3919, %v3513
  %v3921 = vpop.permute.xlu0 %3920
  %3922 = vset.pattern.permute.xlu0 0
  %3923 = vperm.xlu0 %3922, %v3514
  %v3924 = vpop.permute.xlu0 %3923
  %3925 = vset.pattern.permute.xlu0 0
  %3926 = vperm.xlu0 %3925, %v3515
  %v3927 = vpop.permute.xlu0 %3926
  %3928 = vset.pattern.permute.xlu0 0
  %3929 = vperm.xlu0 %3928, %v3516
  %v3930 = vpop.permute.xlu0 %3929
  %3931 = vset.pattern.permute.xlu0 0
  %3932 = vperm.xlu0 %3931, %v3517
  %v3933 = vpop.permute.xlu0 %3932
  %3934 = vset.pattern.permute.xlu0 0
  %3935 = vperm.xlu0 %3934, %v3518
  %v3936 = vpop.permute.xlu0 %3935
  %3937 = vset.pattern.permute.xlu0 0
  %3938 = vperm.xlu0 %3937, %v3519
  %v3939 = vpop.permute.xlu0 %3938
  %3940 = vset.pattern.permute.xlu0 0
  %3941 = vperm.xlu0 %3940, %v3520
  %v3942 = vpop.permute.xlu0 %3941
  %3943 = vset.pattern.permute.xlu0 0
  %3944 = vperm.xlu0 %3943, %v3521
  %v3945 = vpop.permute.xlu0 %3944
  %3946 = vset.pattern.permute.xlu0 0
  %3947 = vperm.xlu0 %3946, %v3522
  %v3948 = vpop.permute.xlu0 %3947
  %3949 = vset.pattern.permute.xlu0 0
  %3950 = vperm.xlu0 %3949, %v3523
  %v3951 = vpop.permute.xlu0 %3950
  %3952 = vset.pattern.permute.xlu0 0
  %3953 = vperm.xlu0 %3952, %v3524
  %v3954 = vpop.permute.xlu0 %3953
  %3955 = vset.pattern.permute.xlu0 0
  %3956 = vperm.xlu0 %3955, %v3525
  %v3957 = vpop.permute.xlu0 %3956
  %3958 = vset.pattern.permute.xlu0 0
  %3959 = vperm.xlu0 %3958, %v3526
  %v3960 = vpop.permute.xlu0 %3959
  %3961 = vset.pattern.permute.xlu0 0
  %3962 = vperm.xlu0 %3961, %v3527
  %v3963 = vpop.permute.xlu0 %3962
  %3964 = vset.pattern.permute.xlu0 0
  %3965 = vperm.xlu0 %3964, %v3528
  %v3966 = vpop.permute.xlu0 %3965
  %3967 = vset.pattern.permute.xlu0 0
  %3968 = vperm.xlu0 %3967, %v3529
  %v3969 = vpop.permute.xlu0 %3968
  %3970 = vset.pattern.permute.xlu0 0
  %3971 = vperm.xlu0 %3970, %v3530
  %v3972 = vpop.permute.xlu0 %3971
  %3973 = vset.pattern.permute.xlu0 0
  %3974 = vperm.xlu0 %3973, %v3531
  %v3975 = vpop.permute.xlu0 %3974
  %3976 = vset.pattern.permute.xlu0 0
  %3977 = vperm.xlu0 %3976, %v3532
  %v3978 = vpop.permute.xlu0 %3977
  %3979 = vset.pattern.permute.xlu0 0
  %3980 = vperm.xlu0 %3979, %v3533
  %v3981 = vpop.permute.xlu0 %3980
  %3982 = vset.pattern.permute.xlu0 0
  %3983 = vperm.xlu0 %3982, %v3534
  %v3984 = vpop.permute.xlu0 %3983
  %3985 = vset.pattern.permute.xlu0 0
  %3986 = vperm.xlu0 %3985, %v3535
  %v3987 = vpop.permute.xlu0 %3986
  %3988 = vset.pattern.permute.xlu0 0
  %3989 = vperm.xlu0 %3988, %v3536
  %v3990 = vpop.permute.xlu0 %3989
  %3991 = vset.pattern.permute.xlu0 0
  %3992 = vperm.xlu0 %3991, %v3537
  %v3993 = vpop.permute.xlu0 %3992
  %3994 = vset.pattern.permute.xlu0 0
  %3995 = vperm.xlu0 %3994, %v3538
  %v3996 = vpop.permute.xlu0 %3995
  %3997 = vset.pattern.permute.xlu0 0
  %3998 = vperm.xlu0 %3997, %v3539
  %v3999 = vpop.permute.xlu0 %3998
  %4000 = vset.pattern.permute.xlu0 0
  %4001 = vperm.xlu0 %4000, %v3540
  %v4002 = vpop.permute.xlu0 %4001
  %4003 = vset.pattern.permute.xlu0 0
  %4004 = vperm.xlu0 %4003, %v3541
  %v4005 = vpop.permute.xlu0 %4004
  %4006 = vset.pattern.permute.xlu0 0
  %4007 = vperm.xlu0 %4006, %v3542
  %v4008 = vpop.permute.xlu0 %4007
  %4009 = vset.pattern.permute.xlu0 0
  %4010 = vperm.xlu0 %4009, %v3543
  %v4011 = vpop.permute.xlu0 %4010
  %4012 = vset.pattern.permute.xlu0 0
  %4013 = vperm.xlu0 %4012, %v3544
  %v4014 = vpop.permute.xlu0 %4013
  %4015 = vset.pattern.permute.xlu0 0
  %4016 = vperm.xlu0 %4015, %v3545
  %v4017 = vpop.permute.xlu0 %4016
  %4018 = vset.pattern.permute.xlu0 0
  %4019 = vperm.xlu0 %4018, %v3546
  %v4020 = vpop.permute.xlu0 %4019
  %4021 = vset.pattern.permute.xlu0 0
  %4022 = vperm.xlu0 %4021, %v3547
  %v4023 = vpop.permute.xlu0 %4022
  %4024 = vset.pattern.permute.xlu0 0
  %4025 = vperm.xlu0 %4024, %v3548
  %v4026 = vpop.permute.xlu0 %4025
  %4027 = vset.pattern.permute.xlu0 0
  %4028 = vperm.xlu0 %4027, %v3549
  %v4029 = vpop.permute.xlu0 %4028
  %4030 = vset.pattern.permute.xlu0 0
  %4031 = vperm.xlu0 %4030, %v3550
  %v4032 = vpop.permute.xlu0 %4031
  %4033 = vset.pattern.permute.xlu0 0
  %4034 = vperm.xlu0 %4033, %v3551
  %v4035 = vpop.permute.xlu0 %4034
  %4036 = vset.pattern.permute.xlu0 0
  %4037 = vperm.xlu0 %4036, %v3552
  %v4038 = vpop.permute.xlu0 %4037
  %4039 = vset.pattern.permute.xlu0 0
  %4040 = vperm.xlu0 %4039, %v3553
  %v4041 = vpop.permute.xlu0 %4040
  %4042 = vset.pattern.permute.xlu0 0
  %4043 = vperm.xlu0 %4042, %v3554
  %v4044 = vpop.permute.xlu0 %4043
  %4045 = vset.pattern.permute.xlu0 0
  %4046 = vperm.xlu0 %4045, %v3555
  %v4047 = vpop.permute.xlu0 %4046
  %4048 = vset.pattern.permute.xlu0 0
  %4049 = vperm.xlu0 %4048, %v3556
  %v4050 = vpop.permute.xlu0 %4049
  %4051 = vset.pattern.permute.xlu0 0
  %4052 = vperm.xlu0 %4051, %v3557
  %v4053 = vpop.permute.xlu0 %4052
  %4054 = vset.pattern.permute.xlu0 0
  %4055 = vperm.xlu0 %4054, %v3558
  %v4056 = vpop.permute.xlu0 %4055
  %4057 = vset.pattern.permute.xlu0 0
  %4058 = vperm.xlu0 %4057, %v3559
  %v4059 = vpop.permute.xlu0 %4058
  %4060 = vset.pattern.permute.xlu0 0
  %4061 = vperm.xlu0 %4060, %v3560
  %v4062 = vpop.permute.xlu0 %4061
  %4063 = vset.pattern.permute.xlu0 0
  %4064 = vperm.xlu0 %4063, %v3561
  %v4065 = vpop.permute.xlu0 %4064
  %4066 = vset.pattern.permute.xlu0 0
  %4067 = vperm.xlu0 %4066, %v3562
  %v4068 = vpop.permute.xlu0 %4067
  %4069 = vset.pattern.permute.xlu0 0
  %4070 = vperm.xlu0 %4069, %v3563
  %v4071 = vpop.permute.xlu0 %4070
  %4072 = vset.pattern.permute.xlu0 0
  %4073 = vperm.xlu0 %4072, %v3564
  %v4074 = vpop.permute.xlu0 %4073
  %4075 = vset.pattern.permute.xlu0 0
  %4076 = vperm.xlu0 %4075, %v3565
  %v4077 = vpop.permute.xlu0 %4076
  %v4078 = vlaneseq
  %v4079 = vshrl.u32 %v4078, 7
  %v4080 = vsub.s32 %v36, %v4079
  %v4081 = vrot.slane %v3696, %v4080
  %v4082 = vlaneseq
  %v4083 = vshrl.u32 %v4082, 7
  %v4084 = vsub.s32 %v1189, %v4083
  %v4085 = vrot.slane %v3699, %v4084
  %v4086 = vsel %vm1194, %v4085, %v4081
  %v4087 = vlaneseq
  %v4088 = vshrl.u32 %v4087, 7
  %v4089 = vsub.s32 %v1196, %v4088
  %v4090 = vrot.slane %v3702, %v4089
  %v4091 = vsel %vm1201, %v4090, %v4086
  %v4092 = vlaneseq
  %v4093 = vshrl.u32 %v4092, 7
  %v4094 = vsub.s32 %v1203, %v4093
  %v4095 = vrot.slane %v3705, %v4094
  %v4096 = vsel %vm1208, %v4095, %v4091
  %v4097 = vlaneseq
  %v4098 = vshrl.u32 %v4097, 7
  %v4099 = vsub.s32 %v1210, %v4098
  %v4100 = vrot.slane %v3708, %v4099
  %v4101 = vsel %vm1215, %v4100, %v4096
  %v4102 = vlaneseq
  %v4103 = vshrl.u32 %v4102, 7
  %v4104 = vsub.s32 %v1217, %v4103
  %v4105 = vrot.slane %v3711, %v4104
  %v4106 = vsel %vm1222, %v4105, %v4101
  %v4107 = vlaneseq
  %v4108 = vshrl.u32 %v4107, 7
  %v4109 = vsub.s32 %v1224, %v4108
  %v4110 = vrot.slane %v3714, %v4109
  %v4111 = vsel %vm1229, %v4110, %v4106
  %v4112 = vlaneseq
  %v4113 = vshrl.u32 %v4112, 7
  %v4114 = vsub.s32 %v1231, %v4113
  %v4115 = vrot.slane %v3717, %v4114
  %v4116 = vsel %vm1236, %v4115, %v4111
  %v4117 = vlaneseq
  %v4118 = vshrl.u32 %v4117, 7
  %v4119 = vsub.s32 %v1238, %v4118
  %v4120 = vrot.slane %v3720, %v4119
  %v4121 = vsel %vm1243, %v4120, %v4116
  %v4122 = vlaneseq
  %v4123 = vshrl.u32 %v4122, 7
  %v4124 = vsub.s32 %v1245, %v4123
  %v4125 = vrot.slane %v3723, %v4124
  %v4126 = vsel %vm1250, %v4125, %v4121
  %v4127 = vlaneseq
  %v4128 = vshrl.u32 %v4127, 7
  %v4129 = vsub.s32 %v1252, %v4128
  %v4130 = vrot.slane %v3726, %v4129
  %v4131 = vsel %vm1257, %v4130, %v4126
  %v4132 = vlaneseq
  %v4133 = vshrl.u32 %v4132, 7
  %v4134 = vsub.s32 %v1259, %v4133
  %v4135 = vrot.slane %v3729, %v4134
  %v4136 = vsel %vm1264, %v4135, %v4131
  %v4137 = vlaneseq
  %v4138 = vshrl.u32 %v4137, 7
  %v4139 = vsub.s32 %v1266, %v4138
  %v4140 = vrot.slane %v3732, %v4139
  %v4141 = vsel %vm1271, %v4140, %v4136
  %v4142 = vlaneseq
  %v4143 = vshrl.u32 %v4142, 7
  %v4144 = vsub.s32 %v1273, %v4143
  %v4145 = vrot.slane %v3735, %v4144
  %v4146 = vsel %vm1278, %v4145, %v4141
  %v4147 = vlaneseq
  %v4148 = vshrl.u32 %v4147, 7
  %v4149 = vsub.s32 %v1280, %v4148
  %v4150 = vrot.slane %v3738, %v4149
  %v4151 = vsel %vm1285, %v4150, %v4146
  %v4152 = vlaneseq
  %v4153 = vshrl.u32 %v4152, 7
  %v4154 = vsub.s32 %v1287, %v4153
  %v4155 = vrot.slane %v3741, %v4154
  %v4156 = vsel %vm1292, %v4155, %v4151
  %v4157 = vlaneseq
  %v4158 = vshrl.u32 %v4157, 7
  %v4159 = vsub.s32 %v36, %v4158
  %v4160 = vrot.slane %v3744, %v4159
  %v4161 = vlaneseq
  %v4162 = vshrl.u32 %v4161, 7
  %v4163 = vsub.s32 %v1189, %v4162
  %v4164 = vrot.slane %v3747, %v4163
  %v4165 = vsel %vm1194, %v4164, %v4160
  %v4166 = vlaneseq
  %v4167 = vshrl.u32 %v4166, 7
  %v4168 = vsub.s32 %v1196, %v4167
  %v4169 = vrot.slane %v3750, %v4168
  %v4170 = vsel %vm1201, %v4169, %v4165
  %v4171 = vlaneseq
  %v4172 = vshrl.u32 %v4171, 7
  %v4173 = vsub.s32 %v1203, %v4172
  %v4174 = vrot.slane %v3753, %v4173
  %v4175 = vsel %vm1208, %v4174, %v4170
  %v4176 = vlaneseq
  %v4177 = vshrl.u32 %v4176, 7
  %v4178 = vsub.s32 %v1210, %v4177
  %v4179 = vrot.slane %v3756, %v4178
  %v4180 = vsel %vm1215, %v4179, %v4175
  %v4181 = vlaneseq
  %v4182 = vshrl.u32 %v4181, 7
  %v4183 = vsub.s32 %v1217, %v4182
  %v4184 = vrot.slane %v3759, %v4183
  %v4185 = vsel %vm1222, %v4184, %v4180
  %v4186 = vlaneseq
  %v4187 = vshrl.u32 %v4186, 7
  %v4188 = vsub.s32 %v1224, %v4187
  %v4189 = vrot.slane %v3762, %v4188
  %v4190 = vsel %vm1229, %v4189, %v4185
  %v4191 = vlaneseq
  %v4192 = vshrl.u32 %v4191, 7
  %v4193 = vsub.s32 %v1231, %v4192
  %v4194 = vrot.slane %v3765, %v4193
  %v4195 = vsel %vm1236, %v4194, %v4190
  %v4196 = vlaneseq
  %v4197 = vshrl.u32 %v4196, 7
  %v4198 = vsub.s32 %v1238, %v4197
  %v4199 = vrot.slane %v3768, %v4198
  %v4200 = vsel %vm1243, %v4199, %v4195
  %v4201 = vlaneseq
  %v4202 = vshrl.u32 %v4201, 7
  %v4203 = vsub.s32 %v1245, %v4202
  %v4204 = vrot.slane %v3771, %v4203
  %v4205 = vsel %vm1250, %v4204, %v4200
  %v4206 = vlaneseq
  %v4207 = vshrl.u32 %v4206, 7
  %v4208 = vsub.s32 %v1252, %v4207
  %v4209 = vrot.slane %v3774, %v4208
  %v4210 = vsel %vm1257, %v4209, %v4205
  %v4211 = vlaneseq
  %v4212 = vshrl.u32 %v4211, 7
  %v4213 = vsub.s32 %v1259, %v4212
  %v4214 = vrot.slane %v3777, %v4213
  %v4215 = vsel %vm1264, %v4214, %v4210
  %v4216 = vlaneseq
  %v4217 = vshrl.u32 %v4216, 7
  %v4218 = vsub.s32 %v1266, %v4217
  %v4219 = vrot.slane %v3780, %v4218
  %v4220 = vsel %vm1271, %v4219, %v4215
  %v4221 = vlaneseq
  %v4222 = vshrl.u32 %v4221, 7
  %v4223 = vsub.s32 %v1273, %v4222
  %v4224 = vrot.slane %v3783, %v4223
  %v4225 = vsel %vm1278, %v4224, %v4220
  %v4226 = vlaneseq
  %v4227 = vshrl.u32 %v4226, 7
  %v4228 = vsub.s32 %v1280, %v4227
  %v4229 = vrot.slane %v3786, %v4228
  %v4230 = vsel %vm1285, %v4229, %v4225
  %v4231 = vlaneseq
  %v4232 = vshrl.u32 %v4231, 7
  %v4233 = vsub.s32 %v1287, %v4232
  %v4234 = vrot.slane %v3789, %v4233
  %v4235 = vsel %vm1292, %v4234, %v4230
  %v4236 = vlaneseq
  %v4237 = vshrl.u32 %v4236, 7
  %v4238 = vsub.s32 %v36, %v4237
  %v4239 = vrot.slane %v3792, %v4238
  %v4240 = vlaneseq
  %v4241 = vshrl.u32 %v4240, 7
  %v4242 = vsub.s32 %v1189, %v4241
  %v4243 = vrot.slane %v3795, %v4242
  %v4244 = vsel %vm1194, %v4243, %v4239
  %v4245 = vlaneseq
  %v4246 = vshrl.u32 %v4245, 7
  %v4247 = vsub.s32 %v1196, %v4246
  %v4248 = vrot.slane %v3798, %v4247
  %v4249 = vsel %vm1201, %v4248, %v4244
  %v4250 = vlaneseq
  %v4251 = vshrl.u32 %v4250, 7
  %v4252 = vsub.s32 %v1203, %v4251
  %v4253 = vrot.slane %v3801, %v4252
  %v4254 = vsel %vm1208, %v4253, %v4249
  %v4255 = vlaneseq
  %v4256 = vshrl.u32 %v4255, 7
  %v4257 = vsub.s32 %v1210, %v4256
  %v4258 = vrot.slane %v3804, %v4257
  %v4259 = vsel %vm1215, %v4258, %v4254
  %v4260 = vlaneseq
  %v4261 = vshrl.u32 %v4260, 7
  %v4262 = vsub.s32 %v1217, %v4261
  %v4263 = vrot.slane %v3807, %v4262
  %v4264 = vsel %vm1222, %v4263, %v4259
  %v4265 = vlaneseq
  %v4266 = vshrl.u32 %v4265, 7
  %v4267 = vsub.s32 %v1224, %v4266
  %v4268 = vrot.slane %v3810, %v4267
  %v4269 = vsel %vm1229, %v4268, %v4264
  %v4270 = vlaneseq
  %v4271 = vshrl.u32 %v4270, 7
  %v4272 = vsub.s32 %v1231, %v4271
  %v4273 = vrot.slane %v3813, %v4272
  %v4274 = vsel %vm1236, %v4273, %v4269
  %v4275 = vlaneseq
  %v4276 = vshrl.u32 %v4275, 7
  %v4277 = vsub.s32 %v1238, %v4276
  %v4278 = vrot.slane %v3816, %v4277
  %v4279 = vsel %vm1243, %v4278, %v4274
  %v4280 = vlaneseq
  %v4281 = vshrl.u32 %v4280, 7
  %v4282 = vsub.s32 %v1245, %v4281
  %v4283 = vrot.slane %v3819, %v4282
  %v4284 = vsel %vm1250, %v4283, %v4279
  %v4285 = vlaneseq
  %v4286 = vshrl.u32 %v4285, 7
  %v4287 = vsub.s32 %v1252, %v4286
  %v4288 = vrot.slane %v3822, %v4287
  %v4289 = vsel %vm1257, %v4288, %v4284
  %v4290 = vlaneseq
  %v4291 = vshrl.u32 %v4290, 7
  %v4292 = vsub.s32 %v1259, %v4291
  %v4293 = vrot.slane %v3825, %v4292
  %v4294 = vsel %vm1264, %v4293, %v4289
  %v4295 = vlaneseq
  %v4296 = vshrl.u32 %v4295, 7
  %v4297 = vsub.s32 %v1266, %v4296
  %v4298 = vrot.slane %v3828, %v4297
  %v4299 = vsel %vm1271, %v4298, %v4294
  %v4300 = vlaneseq
  %v4301 = vshrl.u32 %v4300, 7
  %v4302 = vsub.s32 %v1273, %v4301
  %v4303 = vrot.slane %v3831, %v4302
  %v4304 = vsel %vm1278, %v4303, %v4299
  %v4305 = vlaneseq
  %v4306 = vshrl.u32 %v4305, 7
  %v4307 = vsub.s32 %v1280, %v4306
  %v4308 = vrot.slane %v3834, %v4307
  %v4309 = vsel %vm1285, %v4308, %v4304
  %v4310 = vlaneseq
  %v4311 = vshrl.u32 %v4310, 7
  %v4312 = vsub.s32 %v1287, %v4311
  %v4313 = vrot.slane %v3837, %v4312
  %v4314 = vsel %vm1292, %v4313, %v4309
  %v4315 = vlaneseq
  %v4316 = vshrl.u32 %v4315, 7
  %v4317 = vsub.s32 %v36, %v4316
  %v4318 = vrot.slane %v3840, %v4317
  %v4319 = vlaneseq
  %v4320 = vshrl.u32 %v4319, 7
  %v4321 = vsub.s32 %v1189, %v4320
  %v4322 = vrot.slane %v3843, %v4321
  %v4323 = vsel %vm1194, %v4322, %v4318
  %v4324 = vlaneseq
  %v4325 = vshrl.u32 %v4324, 7
  %v4326 = vsub.s32 %v1196, %v4325
  %v4327 = vrot.slane %v3846, %v4326
  %v4328 = vsel %vm1201, %v4327, %v4323
  %v4329 = vlaneseq
  %v4330 = vshrl.u32 %v4329, 7
  %v4331 = vsub.s32 %v1203, %v4330
  %v4332 = vrot.slane %v3849, %v4331
  %v4333 = vsel %vm1208, %v4332, %v4328
  %v4334 = vlaneseq
  %v4335 = vshrl.u32 %v4334, 7
  %v4336 = vsub.s32 %v1210, %v4335
  %v4337 = vrot.slane %v3852, %v4336
  %v4338 = vsel %vm1215, %v4337, %v4333
  %v4339 = vlaneseq
  %v4340 = vshrl.u32 %v4339, 7
  %v4341 = vsub.s32 %v1217, %v4340
  %v4342 = vrot.slane %v3855, %v4341
  %v4343 = vsel %vm1222, %v4342, %v4338
  %v4344 = vlaneseq
  %v4345 = vshrl.u32 %v4344, 7
  %v4346 = vsub.s32 %v1224, %v4345
  %v4347 = vrot.slane %v3858, %v4346
  %v4348 = vsel %vm1229, %v4347, %v4343
  %v4349 = vlaneseq
  %v4350 = vshrl.u32 %v4349, 7
  %v4351 = vsub.s32 %v1231, %v4350
  %v4352 = vrot.slane %v3861, %v4351
  %v4353 = vsel %vm1236, %v4352, %v4348
  %v4354 = vlaneseq
  %v4355 = vshrl.u32 %v4354, 7
  %v4356 = vsub.s32 %v1238, %v4355
  %v4357 = vrot.slane %v3864, %v4356
  %v4358 = vsel %vm1243, %v4357, %v4353
  %v4359 = vlaneseq
  %v4360 = vshrl.u32 %v4359, 7
  %v4361 = vsub.s32 %v1245, %v4360
  %v4362 = vrot.slane %v3867, %v4361
  %v4363 = vsel %vm1250, %v4362, %v4358
  %v4364 = vlaneseq
  %v4365 = vshrl.u32 %v4364, 7
  %v4366 = vsub.s32 %v1252, %v4365
  %v4367 = vrot.slane %v3870, %v4366
  %v4368 = vsel %vm1257, %v4367, %v4363
  %v4369 = vlaneseq
  %v4370 = vshrl.u32 %v4369, 7
  %v4371 = vsub.s32 %v1259, %v4370
  %v4372 = vrot.slane %v3873, %v4371
  %v4373 = vsel %vm1264, %v4372, %v4368
  %v4374 = vlaneseq
  %v4375 = vshrl.u32 %v4374, 7
  %v4376 = vsub.s32 %v1266, %v4375
  %v4377 = vrot.slane %v3876, %v4376
  %v4378 = vsel %vm1271, %v4377, %v4373
  %v4379 = vlaneseq
  %v4380 = vshrl.u32 %v4379, 7
  %v4381 = vsub.s32 %v1273, %v4380
  %v4382 = vrot.slane %v3879, %v4381
  %v4383 = vsel %vm1278, %v4382, %v4378
  %v4384 = vlaneseq
  %v4385 = vshrl.u32 %v4384, 7
  %v4386 = vsub.s32 %v1280, %v4385
  %v4387 = vrot.slane %v3882, %v4386
  %v4388 = vsel %vm1285, %v4387, %v4383
  %v4389 = vlaneseq
  %v4390 = vshrl.u32 %v4389, 7
  %v4391 = vsub.s32 %v1287, %v4390
  %v4392 = vrot.slane %v3885, %v4391
  %v4393 = vsel %vm1292, %v4392, %v4388
  %v4394 = vlaneseq
  %v4395 = vshrl.u32 %v4394, 7
  %v4396 = vsub.s32 %v36, %v4395
  %v4397 = vrot.slane %v3888, %v4396
  %v4398 = vlaneseq
  %v4399 = vshrl.u32 %v4398, 7
  %v4400 = vsub.s32 %v1189, %v4399
  %v4401 = vrot.slane %v3891, %v4400
  %v4402 = vsel %vm1194, %v4401, %v4397
  %v4403 = vlaneseq
  %v4404 = vshrl.u32 %v4403, 7
  %v4405 = vsub.s32 %v1196, %v4404
  %v4406 = vrot.slane %v3894, %v4405
  %v4407 = vsel %vm1201, %v4406, %v4402
  %v4408 = vlaneseq
  %v4409 = vshrl.u32 %v4408, 7
  %v4410 = vsub.s32 %v1203, %v4409
  %v4411 = vrot.slane %v3897, %v4410
  %v4412 = vsel %vm1208, %v4411, %v4407
  %v4413 = vlaneseq
  %v4414 = vshrl.u32 %v4413, 7
  %v4415 = vsub.s32 %v1210, %v4414
  %v4416 = vrot.slane %v3900, %v4415
  %v4417 = vsel %vm1215, %v4416, %v4412
  %v4418 = vlaneseq
  %v4419 = vshrl.u32 %v4418, 7
  %v4420 = vsub.s32 %v1217, %v4419
  %v4421 = vrot.slane %v3903, %v4420
  %v4422 = vsel %vm1222, %v4421, %v4417
  %v4423 = vlaneseq
  %v4424 = vshrl.u32 %v4423, 7
  %v4425 = vsub.s32 %v1224, %v4424
  %v4426 = vrot.slane %v3906, %v4425
  %v4427 = vsel %vm1229, %v4426, %v4422
  %v4428 = vlaneseq
  %v4429 = vshrl.u32 %v4428, 7
  %v4430 = vsub.s32 %v1231, %v4429
  %v4431 = vrot.slane %v3909, %v4430
  %v4432 = vsel %vm1236, %v4431, %v4427
  %v4433 = vlaneseq
  %v4434 = vshrl.u32 %v4433, 7
  %v4435 = vsub.s32 %v1238, %v4434
  %v4436 = vrot.slane %v3912, %v4435
  %v4437 = vsel %vm1243, %v4436, %v4432
  %v4438 = vlaneseq
  %v4439 = vshrl.u32 %v4438, 7
  %v4440 = vsub.s32 %v1245, %v4439
  %v4441 = vrot.slane %v3915, %v4440
  %v4442 = vsel %vm1250, %v4441, %v4437
  %v4443 = vlaneseq
  %v4444 = vshrl.u32 %v4443, 7
  %v4445 = vsub.s32 %v1252, %v4444
  %v4446 = vrot.slane %v3918, %v4445
  %v4447 = vsel %vm1257, %v4446, %v4442
  %v4448 = vlaneseq
  %v4449 = vshrl.u32 %v4448, 7
  %v4450 = vsub.s32 %v1259, %v4449
  %v4451 = vrot.slane %v3921, %v4450
  %v4452 = vsel %vm1264, %v4451, %v4447
  %v4453 = vlaneseq
  %v4454 = vshrl.u32 %v4453, 7
  %v4455 = vsub.s32 %v1266, %v4454
  %v4456 = vrot.slane %v3924, %v4455
  %v4457 = vsel %vm1271, %v4456, %v4452
  %v4458 = vlaneseq
  %v4459 = vshrl.u32 %v4458, 7
  %v4460 = vsub.s32 %v1273, %v4459
  %v4461 = vrot.slane %v3927, %v4460
  %v4462 = vsel %vm1278, %v4461, %v4457
  %v4463 = vlaneseq
  %v4464 = vshrl.u32 %v4463, 7
  %v4465 = vsub.s32 %v1280, %v4464
  %v4466 = vrot.slane %v3930, %v4465
  %v4467 = vsel %vm1285, %v4466, %v4462
  %v4468 = vlaneseq
  %v4469 = vshrl.u32 %v4468, 7
  %v4470 = vsub.s32 %v1287, %v4469
  %v4471 = vrot.slane %v3933, %v4470
  %v4472 = vsel %vm1292, %v4471, %v4467
  %v4473 = vlaneseq
  %v4474 = vshrl.u32 %v4473, 7
  %v4475 = vsub.s32 %v36, %v4474
  %v4476 = vrot.slane %v3936, %v4475
  %v4477 = vlaneseq
  %v4478 = vshrl.u32 %v4477, 7
  %v4479 = vsub.s32 %v1189, %v4478
  %v4480 = vrot.slane %v3939, %v4479
  %v4481 = vsel %vm1194, %v4480, %v4476
  %v4482 = vlaneseq
  %v4483 = vshrl.u32 %v4482, 7
  %v4484 = vsub.s32 %v1196, %v4483
  %v4485 = vrot.slane %v3942, %v4484
  %v4486 = vsel %vm1201, %v4485, %v4481
  %v4487 = vlaneseq
  %v4488 = vshrl.u32 %v4487, 7
  %v4489 = vsub.s32 %v1203, %v4488
  %v4490 = vrot.slane %v3945, %v4489
  %v4491 = vsel %vm1208, %v4490, %v4486
  %v4492 = vlaneseq
  %v4493 = vshrl.u32 %v4492, 7
  %v4494 = vsub.s32 %v1210, %v4493
  %v4495 = vrot.slane %v3948, %v4494
  %v4496 = vsel %vm1215, %v4495, %v4491
  %v4497 = vlaneseq
  %v4498 = vshrl.u32 %v4497, 7
  %v4499 = vsub.s32 %v1217, %v4498
  %v4500 = vrot.slane %v3951, %v4499
  %v4501 = vsel %vm1222, %v4500, %v4496
  %v4502 = vlaneseq
  %v4503 = vshrl.u32 %v4502, 7
  %v4504 = vsub.s32 %v1224, %v4503
  %v4505 = vrot.slane %v3954, %v4504
  %v4506 = vsel %vm1229, %v4505, %v4501
  %v4507 = vlaneseq
  %v4508 = vshrl.u32 %v4507, 7
  %v4509 = vsub.s32 %v1231, %v4508
  %v4510 = vrot.slane %v3957, %v4509
  %v4511 = vsel %vm1236, %v4510, %v4506
  %v4512 = vlaneseq
  %v4513 = vshrl.u32 %v4512, 7
  %v4514 = vsub.s32 %v1238, %v4513
  %v4515 = vrot.slane %v3960, %v4514
  %v4516 = vsel %vm1243, %v4515, %v4511
  %v4517 = vlaneseq
  %v4518 = vshrl.u32 %v4517, 7
  %v4519 = vsub.s32 %v1245, %v4518
  %v4520 = vrot.slane %v3963, %v4519
  %v4521 = vsel %vm1250, %v4520, %v4516
  %v4522 = vlaneseq
  %v4523 = vshrl.u32 %v4522, 7
  %v4524 = vsub.s32 %v1252, %v4523
  %v4525 = vrot.slane %v3966, %v4524
  %v4526 = vsel %vm1257, %v4525, %v4521
  %v4527 = vlaneseq
  %v4528 = vshrl.u32 %v4527, 7
  %v4529 = vsub.s32 %v1259, %v4528
  %v4530 = vrot.slane %v3969, %v4529
  %v4531 = vsel %vm1264, %v4530, %v4526
  %v4532 = vlaneseq
  %v4533 = vshrl.u32 %v4532, 7
  %v4534 = vsub.s32 %v1266, %v4533
  %v4535 = vrot.slane %v3972, %v4534
  %v4536 = vsel %vm1271, %v4535, %v4531
  %v4537 = vlaneseq
  %v4538 = vshrl.u32 %v4537, 7
  %v4539 = vsub.s32 %v1273, %v4538
  %v4540 = vrot.slane %v3975, %v4539
  %v4541 = vsel %vm1278, %v4540, %v4536
  %v4542 = vlaneseq
  %v4543 = vshrl.u32 %v4542, 7
  %v4544 = vsub.s32 %v1280, %v4543
  %v4545 = vrot.slane %v3978, %v4544
  %v4546 = vsel %vm1285, %v4545, %v4541
  %v4547 = vlaneseq
  %v4548 = vshrl.u32 %v4547, 7
  %v4549 = vsub.s32 %v1287, %v4548
  %v4550 = vrot.slane %v3981, %v4549
  %v4551 = vsel %vm1292, %v4550, %v4546
  %v4552 = vlaneseq
  %v4553 = vshrl.u32 %v4552, 7
  %v4554 = vsub.s32 %v36, %v4553
  %v4555 = vrot.slane %v3984, %v4554
  %v4556 = vlaneseq
  %v4557 = vshrl.u32 %v4556, 7
  %v4558 = vsub.s32 %v1189, %v4557
  %v4559 = vrot.slane %v3987, %v4558
  %v4560 = vsel %vm1194, %v4559, %v4555
  %v4561 = vlaneseq
  %v4562 = vshrl.u32 %v4561, 7
  %v4563 = vsub.s32 %v1196, %v4562
  %v4564 = vrot.slane %v3990, %v4563
  %v4565 = vsel %vm1201, %v4564, %v4560
  %v4566 = vlaneseq
  %v4567 = vshrl.u32 %v4566, 7
  %v4568 = vsub.s32 %v1203, %v4567
  %v4569 = vrot.slane %v3993, %v4568
  %v4570 = vsel %vm1208, %v4569, %v4565
  %v4571 = vlaneseq
  %v4572 = vshrl.u32 %v4571, 7
  %v4573 = vsub.s32 %v1210, %v4572
  %v4574 = vrot.slane %v3996, %v4573
  %v4575 = vsel %vm1215, %v4574, %v4570
  %v4576 = vlaneseq
  %v4577 = vshrl.u32 %v4576, 7
  %v4578 = vsub.s32 %v1217, %v4577
  %v4579 = vrot.slane %v3999, %v4578
  %v4580 = vsel %vm1222, %v4579, %v4575
  %v4581 = vlaneseq
  %v4582 = vshrl.u32 %v4581, 7
  %v4583 = vsub.s32 %v1224, %v4582
  %v4584 = vrot.slane %v4002, %v4583
  %v4585 = vsel %vm1229, %v4584, %v4580
  %v4586 = vlaneseq
  %v4587 = vshrl.u32 %v4586, 7
  %v4588 = vsub.s32 %v1231, %v4587
  %v4589 = vrot.slane %v4005, %v4588
  %v4590 = vsel %vm1236, %v4589, %v4585
  %v4591 = vlaneseq
  %v4592 = vshrl.u32 %v4591, 7
  %v4593 = vsub.s32 %v1238, %v4592
  %v4594 = vrot.slane %v4008, %v4593
  %v4595 = vsel %vm1243, %v4594, %v4590
  %v4596 = vlaneseq
  %v4597 = vshrl.u32 %v4596, 7
  %v4598 = vsub.s32 %v1245, %v4597
  %v4599 = vrot.slane %v4011, %v4598
  %v4600 = vsel %vm1250, %v4599, %v4595
  %v4601 = vlaneseq
  %v4602 = vshrl.u32 %v4601, 7
  %v4603 = vsub.s32 %v1252, %v4602
  %v4604 = vrot.slane %v4014, %v4603
  %v4605 = vsel %vm1257, %v4604, %v4600
  %v4606 = vlaneseq
  %v4607 = vshrl.u32 %v4606, 7
  %v4608 = vsub.s32 %v1259, %v4607
  %v4609 = vrot.slane %v4017, %v4608
  %v4610 = vsel %vm1264, %v4609, %v4605
  %v4611 = vlaneseq
  %v4612 = vshrl.u32 %v4611, 7
  %v4613 = vsub.s32 %v1266, %v4612
  %v4614 = vrot.slane %v4020, %v4613
  %v4615 = vsel %vm1271, %v4614, %v4610
  %v4616 = vlaneseq
  %v4617 = vshrl.u32 %v4616, 7
  %v4618 = vsub.s32 %v1273, %v4617
  %v4619 = vrot.slane %v4023, %v4618
  %v4620 = vsel %vm1278, %v4619, %v4615
  %v4621 = vlaneseq
  %v4622 = vshrl.u32 %v4621, 7
  %v4623 = vsub.s32 %v1280, %v4622
  %v4624 = vrot.slane %v4026, %v4623
  %v4625 = vsel %vm1285, %v4624, %v4620
  %v4626 = vlaneseq
  %v4627 = vshrl.u32 %v4626, 7
  %v4628 = vsub.s32 %v1287, %v4627
  %v4629 = vrot.slane %v4029, %v4628
  %v4630 = vsel %vm1292, %v4629, %v4625
  %v4631 = vlaneseq
  %v4632 = vshrl.u32 %v4631, 7
  %v4633 = vsub.s32 %v36, %v4632
  %v4634 = vrot.slane %v4032, %v4633
  %v4635 = vlaneseq
  %v4636 = vshrl.u32 %v4635, 7
  %v4637 = vsub.s32 %v1189, %v4636
  %v4638 = vrot.slane %v4035, %v4637
  %v4639 = vsel %vm1194, %v4638, %v4634
  %v4640 = vlaneseq
  %v4641 = vshrl.u32 %v4640, 7
  %v4642 = vsub.s32 %v1196, %v4641
  %v4643 = vrot.slane %v4038, %v4642
  %v4644 = vsel %vm1201, %v4643, %v4639
  %v4645 = vlaneseq
  %v4646 = vshrl.u32 %v4645, 7
  %v4647 = vsub.s32 %v1203, %v4646
  %v4648 = vrot.slane %v4041, %v4647
  %v4649 = vsel %vm1208, %v4648, %v4644
  %v4650 = vlaneseq
  %v4651 = vshrl.u32 %v4650, 7
  %v4652 = vsub.s32 %v1210, %v4651
  %v4653 = vrot.slane %v4044, %v4652
  %v4654 = vsel %vm1215, %v4653, %v4649
  %v4655 = vlaneseq
  %v4656 = vshrl.u32 %v4655, 7
  %v4657 = vsub.s32 %v1217, %v4656
  %v4658 = vrot.slane %v4047, %v4657
  %v4659 = vsel %vm1222, %v4658, %v4654
  %v4660 = vlaneseq
  %v4661 = vshrl.u32 %v4660, 7
  %v4662 = vsub.s32 %v1224, %v4661
  %v4663 = vrot.slane %v4050, %v4662
  %v4664 = vsel %vm1229, %v4663, %v4659
  %v4665 = vlaneseq
  %v4666 = vshrl.u32 %v4665, 7
  %v4667 = vsub.s32 %v1231, %v4666
  %v4668 = vrot.slane %v4053, %v4667
  %v4669 = vsel %vm1236, %v4668, %v4664
  %v4670 = vlaneseq
  %v4671 = vshrl.u32 %v4670, 7
  %v4672 = vsub.s32 %v1238, %v4671
  %v4673 = vrot.slane %v4056, %v4672
  %v4674 = vsel %vm1243, %v4673, %v4669
  %v4675 = vlaneseq
  %v4676 = vshrl.u32 %v4675, 7
  %v4677 = vsub.s32 %v1245, %v4676
  %v4678 = vrot.slane %v4059, %v4677
  %v4679 = vsel %vm1250, %v4678, %v4674
  %v4680 = vlaneseq
  %v4681 = vshrl.u32 %v4680, 7
  %v4682 = vsub.s32 %v1252, %v4681
  %v4683 = vrot.slane %v4062, %v4682
  %v4684 = vsel %vm1257, %v4683, %v4679
  %v4685 = vlaneseq
  %v4686 = vshrl.u32 %v4685, 7
  %v4687 = vsub.s32 %v1259, %v4686
  %v4688 = vrot.slane %v4065, %v4687
  %v4689 = vsel %vm1264, %v4688, %v4684
  %v4690 = vlaneseq
  %v4691 = vshrl.u32 %v4690, 7
  %v4692 = vsub.s32 %v1266, %v4691
  %v4693 = vrot.slane %v4068, %v4692
  %v4694 = vsel %vm1271, %v4693, %v4689
  %v4695 = vlaneseq
  %v4696 = vshrl.u32 %v4695, 7
  %v4697 = vsub.s32 %v1273, %v4696
  %v4698 = vrot.slane %v4071, %v4697
  %v4699 = vsel %vm1278, %v4698, %v4694
  %v4700 = vlaneseq
  %v4701 = vshrl.u32 %v4700, 7
  %v4702 = vsub.s32 %v1280, %v4701
  %v4703 = vrot.slane %v4074, %v4702
  %v4704 = vsel %vm1285, %v4703, %v4699
  %v4705 = vlaneseq
  %v4706 = vshrl.u32 %v4705, 7
  %v4707 = vsub.s32 %v1287, %v4706
  %v4708 = vrot.slane %v4077, %v4707
  %v4709 = vsel %vm1292, %v4708, %v4704
  %v4710 = vsel %vm237, %v4235, %v4156
  %v4711 = vsel %vm239, %v4314, %v4710
  %v4712 = vsel %vm241, %v4393, %v4711
  %v4713 = vsel %vm243, %v4472, %v4712
  %v4714 = vsel %vm245, %v4551, %v4713
  %v4715 = vsel %vm247, %v4630, %v4714
  %v4716 = vsel %vm249, %v4709, %v4715
  %v4718 = vadd.f32 %v3321, %v4716
  %v4719 = vld [vmem:[%s6] sm:$0x1]
  %v4721 = vlaneseq
  %v4722 = vshrl.u32 %v4721, 7
  %v4723 = vsub.s32 0, %v4722
  %v4724 = vrot.slane %v4719, %v4723
  %v4726 = vadd.f32 %v4718, %v4724
  %4727 = vst [vmem:[%s7] sm:$0xff] %v4726
  // Predicated region
  $region30: #{cat_model_forward.2} parent=0 // pred_check
    _
  $region31: #{cat_model_forward.2} parent=0 // pred_check_branch
    %4729 = sbr.rel (0) target = $region33
  $region32: #{cat_model_forward.2} parent=0 // pred_region
    _
  $region33: #{cat_model_forward.2} parent=0 // pred_fallthru
    _
  // Predicated region
  $region34: #{cat_model_forward.2} parent=0 // pred_check
    _
  $region35: #{cat_model_forward.2} parent=0 // pred_check_branch
    %4731 = sbr.rel (0) target = $region37
  $region36: #{cat_model_forward.2} parent=0 // pred_region
    _
  $region37: #{cat_model_forward.2} parent=0 // pred_fallthru
    _

</llo_original>
